<compile_context>
chip_gen: v7x
topology: tpu7x:2x2x1
jax: 0.10.0
libtpu: 0.0.40
codegen_flags: <defaults>
</compile_context>

<pallas_src>
import numpy as np
import jax
import jax.numpy as jnp
from jax.experimental import pallas as pl
from jax.experimental.pallas import tpu as pltpu

C = 128                     # feature channels (2048 in the real net)
ATT_HIDDEN = 64             # conv_att_1 output channels
SPATIAL_SCALE = 1.0 / 32.0  # 0.03125, as in OurNet


# --------------------------------------------------------------------------
# Host-side glue: R-MAC region generation (static, depends only on x.shape)
# --------------------------------------------------------------------------
def get_rmac_region_coordinates(H, W, L):
    ovr = 0.4
    steps = np.array((2, 3, 4, 5, 6, 7), dtype=np.float32)
    w = np.minimum(H, W)
    b = (np.maximum(H, W) - w) / (steps - 1)
    idx = int(np.argmin(np.abs(((w ** 2 - w * b) / w ** 2) - ovr)))
    if H < W:
        Wd, Hd = idx + 1, 0
    elif H > W:
        Wd, Hd = 0, idx + 1
    else:
        Wd, Hd = 0, 0
    regions_xywh = []
    for l in range(1, L + 1):
        wl = np.floor(2 * w / (l + 1))
        wl2 = np.floor(wl / 2 - 1)
        b = 0.0 if (l + Wd - 1) <= 0 else (W - wl) / (l + Wd - 1)
        cenW = np.floor(wl2 + b * np.arange(l - 1 + Wd + 1)) - wl2
        b = 0.0 if (l + Hd - 1) <= 0 else (H - wl) / (l + Hd - 1)
        cenH = np.floor(wl2 + b * np.arange(l - 1 + Hd + 1)) - wl2
        for i_ in cenH:
            for j_ in cenW:
                regions_xywh.append([j_, i_, wl, wl])
    for i in range(len(regions_xywh)):
        for j in range(4):
            regions_xywh[i][j] = int(round(regions_xywh[i][j]))
        if regions_xywh[i][0] + regions_xywh[i][2] > W:
            regions_xywh[i][0] -= (regions_xywh[i][0] + regions_xywh[i][2] - W)
        if regions_xywh[i][1] + regions_xywh[i][3] > H:
            regions_xywh[i][1] -= (regions_xywh[i][1] + regions_xywh[i][3] - H)
    return np.array(regions_xywh, dtype=np.float32)


def pack_regions_for_network(all_regions):
    n_regs = int(np.sum([len(e) for e in all_regions]))
    R = np.zeros((n_regs, 5), dtype=np.float32)
    cnt = 0
    for i, r in enumerate(all_regions):
        R[cnt:cnt + r.shape[0], 0] = i
        R[cnt:cnt + r.shape[0], 1:] = r
        cnt += r.shape[0]
    # xywh -> [batch, x1, y1, x2, y2] (inclusive end)
    R[:, 3] = R[:, 1] + R[:, 3] - 1
    R[:, 4] = R[:, 2] + R[:, 4] - 1
    return R


def rois_to_masks(rois, Hf, Wf, spatial_scale):
    """ROI -> binary spatial mask on the feature map, using the same
    quantization as ContextAwareRegionalAttentionNetwork (pooled 1x1)."""
    R = rois.shape[0]
    masks = np.zeros((R, Hf, Wf), dtype=np.float32)
    for r in range(R):
        x1, y1, x2, y2 = np.round(rois[r, 1:] * spatial_scale).astype(int)
        roi_w = max(x2 - x1 + 1, 1)
        roi_h = max(y2 - y1 + 1, 1)
        hstart = min(Hf, max(0, y1))
        hend = min(Hf, max(0, roi_h + y1))
        wstart = min(Wf, max(0, x1))
        wend = min(Wf, max(0, roi_w + x1))
        masks[r, hstart:hend, wstart:wend] = 1.0
    return masks


def _round_up(x, m):
    return int((x + m - 1) // m) * m


# --------------------------------------------------------------------------
# Kernel 1: per-image ROI stats  (grid over batch)
#   rmean  = (masks @ h) * 1/count        -> MXU matmul for all ROIs at once
#   rmac   = per-ROI masked max (RoIPool 1x1), static unrolled loop
#   gatt   = (global spatial mean) @ w1b + b1, computed ONCE per image
# --------------------------------------------------------------------------
def roi_stats(h_flat, masks, masks_t, inv_counts, w1b, b1, *, rp_real):
    B, S, Cc = (int(d) for d in h_flat.shape)
    Rp_pad = int(masks.shape[0])
    Hatt_pad = int(w1b.shape[1])

    def roi_stats_kernel(h_ref, m_ref, mt_ref, invc_ref, w1b_ref, b1_ref,
                         rmac_ref, rmean_ref, gatt_ref):
        h = h_ref[0]                                   # (S, C)
        m = m_ref[...]                                 # (Rp_pad, S)
        mt = mt_ref[...]                               # (S, Rp_pad)
        invc = invc_ref[...]                           # (Rp_pad, 1)

        # --- all per-ROI sums in one MXU matmul; mean = sum * 1/count -----
        rsum = jnp.dot(m, h, preferred_element_type=jnp.float32)   # (Rp_pad, C)
        rmean_ref[0] = rsum * invc                     # invc==0 zeroes empty/pad rows

        # --- global spatial mean once per image, pushed through the global
        #     half of conv_att_1 (incl. its bias) ----------------------------
        gmean = jnp.sum(h, axis=0, keepdims=True) * jnp.float32(1.0 / S)   # (1, C)
        gatt_ref[0] = (jnp.dot(gmean, w1b_ref[...],
                               preferred_element_type=jnp.float32) + b1_ref[...])

        # --- per-ROI max pool (RoIPool 1x1): no matmul form, keep the loop
        #     over the resident feature block (static, unrolled) -------------
        # TODO(synk): `RoIPool` class body not provided; max pooling with the
        #             same ROI quantization as the attention module is used.
        neg = jnp.float32(-3.4e38)
        for r in range(rp_real):
            mr = mt[:, r:r + 1]                        # (S, 1) lane-0 column
            rmax = jnp.max(jnp.where(mr > 0.0, h, neg), axis=0, keepdims=True)
            ok = invc[r, 0] > 0.0                      # empty-ROI guard
            rmac_ref[0, r:r + 1, :] = jnp.where(ok, rmax, jnp.zeros_like(rmax))
        if Rp_pad > rp_real:
            rmac_ref[0, rp_real:, :] = jnp.zeros((Rp_pad - rp_real, Cc), jnp.float32)

    cost = pl.CostEstimate(
        flops=int(B * (2 * Rp_pad * S * Cc + 2 * Cc * Hatt_pad + 2 * rp_real * S * Cc)),
        transcendentals=0,
        bytes_accessed=int(4 * (B * S * Cc + 2 * Rp_pad * S + Rp_pad
                                + Cc * Hatt_pad + Hatt_pad
                                + B * (2 * Rp_pad * Cc + Hatt_pad))))

    return pl.pallas_call(
        roi_stats_kernel,
        out_shape=(
            jax.ShapeDtypeStruct((B, Rp_pad, Cc), jnp.float32),   # rmac
            jax.ShapeDtypeStruct((B, Rp_pad, Cc), jnp.float32),   # rmean
            jax.ShapeDtypeStruct((B, 1, Hatt_pad), jnp.float32),  # gatt (per image)
        ),
        grid_spec=pltpu.PrefetchScalarGridSpec(
            num_scalar_prefetch=0,
            grid=(B,),
            in_specs=[
                pl.BlockSpec((1, S, Cc), lambda b: (b, 0, 0)),
                pl.BlockSpec((Rp_pad, S), lambda b: (0, 0)),
                pl.BlockSpec((S, Rp_pad), lambda b: (0, 0)),
                pl.BlockSpec((Rp_pad, 1), lambda b: (0, 0)),
                pl.BlockSpec((Cc, Hatt_pad), lambda b: (0, 0)),
                pl.BlockSpec((1, Hatt_pad), lambda b: (0, 0)),
            ],
            out_specs=[
                pl.BlockSpec((1, Rp_pad, Cc), lambda b: (b, 0, 0)),
                pl.BlockSpec((1, Rp_pad, Cc), lambda b: (b, 0, 0)),
                pl.BlockSpec((1, 1, Hatt_pad), lambda b: (b, 0, 0)),
            ],
        ),
        compiler_params=pltpu.CompilerParams(
            dimension_semantics=("parallel",),
            vmem_limit_bytes=64 * 1024 * 1024),
        cost_estimate=cost,
    )(h_flat, masks, masks_t, inv_counts, w1b, b1)


# --------------------------------------------------------------------------
# Kernel 2: head over flattened ROI rows (grid over row tiles; each tile is
# kb whole images = kb*Rp_pad rows).  PCA shift+matmul+L2, attention MLP,
# per-image attention-weighted mean and final L2 norm, fused.
# --------------------------------------------------------------------------
def head(rmac_rows, rmean_rows, gatt_rows, valid_rows, shift_b, pca_wt,
         w1a, w2, b2, *, batch, kb, rp_pad, rp_real):
    Mtot, Cc = (int(d) for d in rmac_rows.shape)
    Hatt_pad = int(gatt_rows.shape[1])
    TM = kb * rp_pad                     # rows per grid step (whole images)

    def head_kernel(rmac_ref, rmean_ref, gatt_ref, valid_ref,
                    shiftb_ref, pcawt_ref, w1a_ref, w2_ref, b2_ref, out_ref):
        eps = jnp.float32(1e-12)
        # PCA branch: Shift -> Linear(no bias) -> L2 norm (bf16 MXU, f32 acc)
        # TODO(synk): `Shift` class body not provided; assumed additive bias.
        x = (rmac_ref[...] + shiftb_ref[...]).astype(jnp.bfloat16)      # (TM, C)
        g = jnp.dot(x, pcawt_ref[...], preferred_element_type=jnp.float32)
        norm = jnp.sqrt(jnp.sum(g * g, axis=1, keepdims=True))
        g = g / jnp.maximum(norm, eps)
        # Regional attention: conv1(2C->Hatt) split into regional half (matmul)
        # + per-image global half (already projected, incl. b1), tanh,
        # conv2(Hatt->1) as a lane reduction, softplus.
        pre = (jnp.dot(rmean_ref[...].astype(jnp.bfloat16), w1a_ref[...],
                       preferred_element_type=jnp.float32) + gatt_ref[...])
        t = jnp.tanh(pre)                                               # (TM, Hatt_pad)
        s = jnp.sum(t * w2_ref[...], axis=1, keepdims=True) + b2_ref[...]   # (TM, 1)
        k = jnp.maximum(s, 0.0) + jnp.log1p(jnp.exp(-jnp.abs(s)))       # softplus
        gw = g * k * valid_ref[...]                                     # zero padded rows
        # Per-image mean over the rp_real regions + final L2 norm
        rows = []
        for i in range(kb):
            rows.append(jnp.sum(gw[i * rp_pad:(i + 1) * rp_pad], axis=0, keepdims=True))
        agg = jnp.concatenate(rows, axis=0) * jnp.float32(1.0 / rp_real)  # (kb, C)
        n2 = jnp.sqrt(jnp.sum(agg * agg, axis=1, keepdims=True))
        normed = agg / jnp.maximum(n2, eps)
        for i in range(kb):
            out_ref[i] = normed[i:i + 1, :]

    cost = pl.CostEstimate(
        flops=int(Mtot * (2 * Cc * Cc + 2 * Cc * Hatt_pad + 8 * Cc + 4 * Hatt_pad)),
        transcendentals=int(Mtot * (Hatt_pad + 4) + 2 * batch),
        bytes_accessed=int(4 * Mtot * (2 * Cc + Hatt_pad + 1)
                           + 2 * (Cc * Cc + Cc * Hatt_pad)
                           + 4 * (Cc + Hatt_pad + 1) + 4 * batch * Cc))

    row_map = lambda i: (i, 0)
    full2 = lambda i: (0, 0)
    out = pl.pallas_call(
        head_kernel,
        out_shape=jax.ShapeDtypeStruct((batch, 1, Cc), jnp.float32),
        grid_spec=pltpu.PrefetchScalarGridSpec(
            num_scalar_prefetch=0,
            grid=(Mtot // TM,),
            in_specs=[
                pl.BlockSpec((TM, Cc), row_map),
                pl.BlockSpec((TM, Cc), row_map),
                pl.BlockSpec((TM, Hatt_pad), row_map),
                pl.BlockSpec((TM, 1), row_map),
                pl.BlockSpec((1, Cc), full2),
                # NOTE: constant-index weight specs; at real C=2048 keep them
                # bf16 and raise vmem_limit_bytes (pl.Buffered(1) also works).
                pl.BlockSpec((Cc, Cc), full2),
                pl.BlockSpec((Cc, Hatt_pad), full2),
                pl.BlockSpec((1, Hatt_pad), full2),
                pl.BlockSpec((1, 1), full2),
            ],
            out_specs=pl.BlockSpec((kb, 1, Cc), lambda i: (i, 0, 0)),
        ),
        compiler_params=pltpu.CompilerParams(
            dimension_semantics=("parallel",),
            vmem_limit_bytes=64 * 1024 * 1024),
        cost_estimate=cost,
    )(rmac_rows, rmean_rows, gatt_rows, valid_rows, shift_b, pca_wt, w1a, w2, b2)
    return out


# --------------------------------------------------------------------------
# Backbone stand-in + full forward
# --------------------------------------------------------------------------
def backbone(x_nchw, proj):
    # TODO(synk): resnet101 backbone + checkpoint load not implemented; stand-in
    #             is a deterministic stride-32 average pool + fixed 1x1 projection.
    B, Cin, H, W = x_nchw.shape
    xr = x_nchw.reshape(B, Cin, H // 32, 32, W // 32, 32).mean(axis=(3, 5))
    return jnp.einsum("bchw,cd->bdhw", xr, proj)            # (B, C, Hf, Wf)


def ournet_forward(x, params):
    B, _, H, W = x.shape
    # regions depend only on (H, W): identical for every batch element
    regions = get_rmac_region_coordinates(H, W, 5)
    rois = pack_regions_for_network([regions])               # (Rp, 5)
    Rp = int(rois.shape[0])
    Rp_pad = _round_up(Rp, 8)

    h = backbone(x, params["proj"])                          # (B, C, Hf, Wf)
    Hf, Wf = int(h.shape[2]), int(h.shape[3])
    S = Hf * Wf
    h_flat = jnp.transpose(h, (0, 2, 3, 1)).reshape(B, S, C)  # NHWC, spatial flattened

    # host-side ROI masks / counts, padded to Rp_pad rows
    masks_np = rois_to_masks(rois, Hf, Wf, SPATIAL_SCALE).reshape(Rp, S)
    counts = masks_np.sum(axis=1)
    invc_np = np.where(counts > 0, 1.0 / np.maximum(counts, 1.0), 0.0).astype(np.float32)
    masks_pad = np.zeros((Rp_pad, S), np.float32)
    masks_pad[:Rp] = masks_np
    invc_pad = np.zeros((Rp_pad, 1), np.float32)
    invc_pad[:Rp, 0] = invc_np

    # attention weights: split conv_att_1 into regional/global halves and pad
    # the hidden dim to a full lane width (zero cols contribute tanh(0)*0 = 0)
    Hatt_pad = _round_up(ATT_HIDDEN, 128)
    w1 = params["att_w1"]                                    # (Hatt, 2C)
    w1a = jnp.zeros((C, Hatt_pad), jnp.bfloat16).at[:, :ATT_HIDDEN].set(
        w1[:, :C].T.astype(jnp.bfloat16))                    # regional-mean half (bf16)
    w1b = jnp.zeros((C, Hatt_pad), jnp.float32).at[:, :ATT_HIDDEN].set(w1[:, C:].T)
    b1 = jnp.zeros((1, Hatt_pad), jnp.float32).at[0, :ATT_HIDDEN].set(params["att_b1"])
    w2 = jnp.zeros((1, Hatt_pad), jnp.float32).at[0, :ATT_HIDDEN].set(
        params["att_w2"].reshape(-1))
    b2 = params["att_b2"].reshape(1, 1)
    shift_b = params["pca_mean"].reshape(1, C)
    pca_wt = params["pca_w"].T.astype(jnp.bfloat16)          # Linear: y = x @ W^T

    rmac, rmean, gatt = roi_stats(h_flat, jnp.asarray(masks_pad),
                                  jnp.asarray(masks_pad.T.copy()),
                                  jnp.asarray(invc_pad), w1b, b1, rp_real=Rp)

    # flatten ROI rows across the batch for the head; pick a row tile that
    # covers whole images (kb images per grid step, at most ~256 rows)
    Mtot = B * Rp_pad
    kb = 1
    for cand in range(B, 0, -1):
        if B % cand == 0 and cand * Rp_pad <= 256:
            kb = cand
            break
    rmac_rows = rmac.reshape(Mtot, C)
    rmean_rows = rmean.reshape(Mtot, C)
    # NOTE: global-mean attention term is per image (not gated per ROI); for
    # R-MAC regions the empty-ROI case cannot occur so this matches the reference.
    gatt_rows = jnp.broadcast_to(gatt, (B, Rp_pad, Hatt_pad)).reshape(Mtot, Hatt_pad)
    valid_np = np.zeros((Rp_pad, 1), np.float32)
    valid_np[:Rp] = 1.0
    valid_rows = jnp.asarray(np.tile(valid_np, (B, 1)))

    out = head(rmac_rows, rmean_rows, gatt_rows, valid_rows, shift_b, pca_wt,
               w1a, w2, b2, batch=B, kb=kb, rp_pad=Rp_pad, rp_real=Rp)
    return out.reshape(B, C)


if __name__ == "__main__":
    B, H, W = 2, 128, 128      # image input -> feature map (B, C, 4, 4)
    key = jax.random.PRNGKey(0)
    ks = jax.random.split(key, 8)
    x = jax.random.normal(ks[0], (B, 3, H, W), jnp.float32)
    params = {
        "proj":     jax.random.normal(ks[1], (3, C), jnp.float32) * 0.1,
        "pca_mean": jax.random.normal(ks[2], (C,), jnp.float32) * 0.01,
        "pca_w":    jax.random.normal(ks[3], (C, C), jnp.float32) / np.sqrt(C),
        "att_w1":   jax.random.normal(ks[4], (ATT_HIDDEN, 2 * C), jnp.float32) * 0.02,
        "att_b1":   jax.random.normal(ks[5], (ATT_HIDDEN,), jnp.float32) * 0.01,
        "att_w2":   jax.random.normal(ks[6], (1, ATT_HIDDEN), jnp.float32) * 0.02,
        "att_b2":   jax.random.normal(ks[7], (1,), jnp.float32) * 0.01,
    }
    out = ournet_forward(x, params)
    out = jax.block_until_ready(out)
    assert out.shape == (B, C)
    assert bool(jnp.all(jnp.isfinite(out)))
    print("KERNEL_OK")
</pallas_src>

<mosaic_0001>
module attributes {stable_mosaic.version = 11 : i64} {
  func.func @roi_stats_kernel(%arg0: i32, %arg1: memref<1x16x128xf32, #tpu.memory_space<vmem>>, %arg2: memref<56x16xf32, #tpu.memory_space<vmem>>, %arg3: memref<16x56xf32, #tpu.memory_space<vmem>>, %arg4: memref<56x1xf32, #tpu.memory_space<vmem>>, %arg5: memref<128x128xf32, #tpu.memory_space<vmem>>, %arg6: memref<1x128xf32, #tpu.memory_space<vmem>>, %arg7: memref<1x56x128xf32, #tpu.memory_space<vmem>>, %arg8: memref<1x56x128xf32, #tpu.memory_space<vmem>>, %arg9: memref<1x1x128xf32, #tpu.memory_space<vmem>>) attributes {dimension_semantics = [#tpu.dimension_semantics<parallel>], iteration_bounds = array<i64: 2>, scalar_prefetch = 0 : i64, scratch_operands = 0 : i64, tpu.core_type = #tpu.core_type<tc>, window_params = [{transform_indices = @transform_0, window_bounds = array<i64: 1, 16, 128>}, {pipeline_mode = #tpu.pipeline_mode<synchronous>, transform_indices = @transform_1, window_bounds = array<i64: 56, 16>}, {pipeline_mode = #tpu.pipeline_mode<synchronous>, transform_indices = @transform_2, window_bounds = array<i64: 16, 56>}, {pipeline_mode = #tpu.pipeline_mode<synchronous>, transform_indices = @transform_3, window_bounds = array<i64: 56, 1>}, {pipeline_mode = #tpu.pipeline_mode<synchronous>, transform_indices = @transform_4, window_bounds = array<i64: 128, 128>}, {pipeline_mode = #tpu.pipeline_mode<synchronous>, transform_indices = @transform_5, window_bounds = array<i64: 1, 128>}, {transform_indices = @transform_6, window_bounds = array<i64: 1, 56, 128>}, {transform_indices = @transform_7, window_bounds = array<i64: 1, 56, 128>}, {transform_indices = @transform_8, window_bounds = array<i64: 1, 1, 128>}]} {
    %c0 = arith.constant 0 : index
    %c0_0 = arith.constant 0 : index
    %c0_1 = arith.constant 0 : index
    %0 = vector.load %arg1[%c0, %c0_0, %c0_1] : memref<1x16x128xf32, #tpu.memory_space<vmem>>, vector<1x16x128xf32>
    %1 = vector.shape_cast %0 : vector<1x16x128xf32> to vector<16x128xf32>
    %c0_2 = arith.constant 0 : index
    %c0_3 = arith.constant 0 : index
    %2 = vector.load %arg2[%c0_2, %c0_3] : memref<56x16xf32, #tpu.memory_space<vmem>>, vector<56x16xf32>
    %c0_4 = arith.constant 0 : index
    %c0_5 = arith.constant 0 : index
    %3 = vector.load %arg3[%c0_4, %c0_5] : memref<16x56xf32, #tpu.memory_space<vmem>>, vector<16x56xf32>
    %c0_6 = arith.constant 0 : index
    %c0_7 = arith.constant 0 : index
    %4 = vector.load %arg4[%c0_6, %c0_7] : memref<56x1xf32, #tpu.memory_space<vmem>>, vector<56x1xf32>
    %cst = arith.constant dense<0.000000e+00> : vector<56x128xf32>
    %5 = tpu.matmul %2, %1, %cst {dimension_numbers = #tpu.dot_dimension_numbers<[1], [0], [0], [1], [0, 0, 1, 1], [], []>} : vector<56x16xf32>, vector<16x128xf32>, vector<56x128xf32> -> vector<56x128xf32>
    %6 = vector.broadcast %4 : vector<56x1xf32> to vector<56x128xf32>
    %7 = arith.mulf %5, %6 : vector<56x128xf32>
    %c0_8 = arith.constant 0 : index
    %c0_9 = arith.constant 0 : index
    %c0_10 = arith.constant 0 : index
    %8 = vector.load %arg8[%c0_8, %c0_9, %c0_10] : memref<1x56x128xf32, #tpu.memory_space<vmem>>, vector<1x56x128xf32>
    %9 = vector.shape_cast %8 : vector<1x56x128xf32> to vector<56x128xf32>
    %10 = vector.shape_cast %7 : vector<56x128xf32> to vector<1x56x128xf32>
    tpu.vector_store %arg8[%c0_8, %c0_9, %c0_10], %10 {strides = array<i32>} : memref<1x56x128xf32, #tpu.memory_space<vmem>>, vector<1x56x128xf32>,
    %cst_11 = arith.constant dense<0.000000e+00> : vector<128xf32>
    %11 = vector.multi_reduction <add>, %1, %cst_11 [0] : vector<16x128xf32> to vector<128xf32>
    %12 = vector.shape_cast %11 : vector<128xf32> to vector<1x128xf32>
    %cst_12 = arith.constant 6.250000e-02 : f32
    %13 = vector.broadcast %cst_12 : f32 to vector<1x128xf32>
    %14 = arith.mulf %12, %13 : vector<1x128xf32>
    %c0_13 = arith.constant 0 : index
    %c0_14 = arith.constant 0 : index
    %15 = vector.load %arg5[%c0_13, %c0_14] : memref<128x128xf32, #tpu.memory_space<vmem>>, vector<128x128xf32>
    %cst_15 = arith.constant dense<0.000000e+00> : vector<1x128xf32>
    %16 = tpu.matmul %14, %15, %cst_15 {dimension_numbers = #tpu.dot_dimension_numbers<[1], [0], [0], [1], [0, 0, 1, 1], [], []>} : vector<1x128xf32>, vector<128x128xf32>, vector<1x128xf32> -> vector<1x128xf32>
    %c0_16 = arith.constant 0 : index
    %c0_17 = arith.constant 0 : index
    %17 = vector.load %arg6[%c0_16, %c0_17] : memref<1x128xf32, #tpu.memory_space<vmem>>, vector<1x128xf32>
    %18 = arith.addf %16, %17 : vector<1x128xf32>
    %c0_18 = arith.constant 0 : index
    %c0_19 = arith.constant 0 : index
    %c0_20 = arith.constant 0 : index
    %19 = vector.load %arg9[%c0_18, %c0_19, %c0_20] : memref<1x1x128xf32, #tpu.memory_space<vmem>>, vector<1x1x128xf32>
    %20 = vector.shape_cast %19 : vector<1x1x128xf32> to vector<1x128xf32>
    %21 = vector.shape_cast %18 : vector<1x128xf32> to vector<1x1x128xf32>
    tpu.vector_store %arg9[%c0_18, %c0_19, %c0_20], %21 {strides = array<i32>} : memref<1x1x128xf32, #tpu.memory_space<vmem>>, vector<1x1x128xf32>,
    %22 = vector.extract_strided_slice %3 {offsets = [0, 0], sizes = [16, 1], strides = [1, 1]} : vector<16x56xf32> to vector<16x1xf32>
    %cst_21 = arith.constant 0.000000e+00 : f32
    %23 = vector.broadcast %cst_21 : f32 to vector<16x1xf32>
    %24 = arith.cmpf ogt, %22, %23 : vector<16x1xf32>
    %cst_22 = arith.constant -3.400000e+38 : f32
    %25 = vector.shape_cast %24 : vector<16x1xi1> to vector<16x1xi1>
    %26 = vector.broadcast %25 : vector<16x1xi1> to vector<16x128xi1>
    %27 = vector.broadcast %cst_22 : f32 to vector<16x128xf32>
    %28 = arith.select %26, %1, %27 : vector<16x128xi1>, vector<16x128xf32>
    %cst_23 = arith.constant dense<0xFF800000> : vector<128xf32>
    %29 = vector.multi_reduction <maximumf>, %28, %cst_23 [0] : vector<16x128xf32> to vector<128xf32>
    %30 = vector.shape_cast %29 : vector<128xf32> to vector<1x128xf32>
    %31 = vector.extract_strided_slice %4 {offsets = [0, 0], sizes = [1, 1], strides = [1, 1]} : vector<56x1xf32> to vector<1x1xf32>
    %32 = vector.extract %31[0, 0] : f32 from vector<1x1xf32>
    %cst_24 = arith.constant 0.000000e+00 : f32
    %33 = arith.cmpf ogt, %32, %cst_24 : f32
    %cst_25 = arith.constant 0.000000e+00 : f32
    %34 = vector.broadcast %cst_25 : f32 to vector<1x128xf32>
    %35 = arith.select %33, %30, %34 : vector<1x128xf32>
    %c0_26 = arith.constant 0 : index
    %c0_27 = arith.constant 0 : index
    %c0_28 = arith.constant 0 : index
    %36 = vector.load %arg7[%c0_26, %c0_27, %c0_28] : memref<1x56x128xf32, #tpu.memory_space<vmem>>, vector<1x1x128xf32>
    %37 = vector.shape_cast %36 : vector<1x1x128xf32> to vector<1x128xf32>
    %38 = vector.shape_cast %35 : vector<1x128xf32> to vector<1x1x128xf32>
    tpu.vector_store %arg7[%c0_26, %c0_27, %c0_28], %38 {strides = array<i32>} : memref<1x56x128xf32, #tpu.memory_space<vmem>>, vector<1x1x128xf32>,
    %39 = vector.extract_strided_slice %3 {offsets = [0, 1], sizes = [16, 1], strides = [1, 1]} : vector<16x56xf32> to vector<16x1xf32>
    %cst_29 = arith.constant 0.000000e+00 : f32
    %40 = vector.broadcast %cst_29 : f32 to vector<16x1xf32>
    %41 = arith.cmpf ogt, %39, %40 : vector<16x1xf32>
    %cst_30 = arith.constant -3.400000e+38 : f32
    %42 = vector.shape_cast %41 : vector<16x1xi1> to vector<16x1xi1>
    %43 = vector.broadcast %42 : vector<16x1xi1> to vector<16x128xi1>
    %44 = vector.broadcast %cst_30 : f32 to vector<16x128xf32>
    %45 = arith.select %43, %1, %44 : vector<16x128xi1>, vector<16x128xf32>
    %cst_31 = arith.constant dense<0xFF800000> : vector<128xf32>
    %46 = vector.multi_reduction <maximumf>, %45, %cst_31 [0] : vector<16x128xf32> to vector<128xf32>
    %47 = vector.shape_cast %46 : vector<128xf32> to vector<1x128xf32>
    %48 = vector.extract_strided_slice %4 {offsets = [1, 0], sizes = [1, 1], strides = [1, 1]} : vector<56x1xf32> to vector<1x1xf32>
    %49 = vector.extract %48[0, 0] : f32 from vector<1x1xf32>
    %cst_32 = arith.constant 0.000000e+00 : f32
    %50 = arith.cmpf ogt, %49, %cst_32 : f32
    %cst_33 = arith.constant 0.000000e+00 : f32
    %51 = vector.broadcast %cst_33 : f32 to vector<1x128xf32>
    %52 = arith.select %50, %47, %51 : vector<1x128xf32>
    %c0_34 = arith.constant 0 : index
    %c1 = arith.constant 1 : index
    %c0_35 = arith.constant 0 : index
    %53 = vector.load %arg7[%c0_34, %c1, %c0_35] : memref<1x56x128xf32, #tpu.memory_space<vmem>>, vector<1x1x128xf32>
    %54 = vector.shape_cast %53 : vector<1x1x128xf32> to vector<1x128xf32>
    %55 = vector.shape_cast %52 : vector<1x128xf32> to vector<1x1x128xf32>
    tpu.vector_store %arg7[%c0_34, %c1, %c0_35], %55 {strides = array<i32>} : memref<1x56x128xf32, #tpu.memory_space<vmem>>, vector<1x1x128xf32>,
    %56 = vector.extract_strided_slice %3 {offsets = [0, 2], sizes = [16, 1], strides = [1, 1]} : vector<16x56xf32> to vector<16x1xf32>
    %cst_36 = arith.constant 0.000000e+00 : f32
    %57 = vector.broadcast %cst_36 : f32 to vector<16x1xf32>
    %58 = arith.cmpf ogt, %56, %57 : vector<16x1xf32>
    %cst_37 = arith.constant -3.400000e+38 : f32
    %59 = vector.shape_cast %58 : vector<16x1xi1> to vector<16x1xi1>
    %60 = vector.broadcast %59 : vector<16x1xi1> to vector<16x128xi1>
    %61 = vector.broadcast %cst_37 : f32 to vector<16x128xf32>
    %62 = arith.select %60, %1, %61 : vector<16x128xi1>, vector<16x128xf32>
    %cst_38 = arith.constant dense<0xFF800000> : vector<128xf32>
    %63 = vector.multi_reduction <maximumf>, %62, %cst_38 [0] : vector<16x128xf32> to vector<128xf32>
    %64 = vector.shape_cast %63 : vector<128xf32> to vector<1x128xf32>
    %65 = vector.extract_strided_slice %4 {offsets = [2, 0], sizes = [1, 1], strides = [1, 1]} : vector<56x1xf32> to vector<1x1xf32>
    %66 = vector.extract %65[0, 0] : f32 from vector<1x1xf32>
    %cst_39 = arith.constant 0.000000e+00 : f32
    %67 = arith.cmpf ogt, %66, %cst_39 : f32
    %cst_40 = arith.constant 0.000000e+00 : f32
    %68 = vector.broadcast %cst_40 : f32 to vector<1x128xf32>
    %69 = arith.select %67, %64, %68 : vector<1x128xf32>
    %c0_41 = arith.constant 0 : index
    %c2 = arith.constant 2 : index
    %c0_42 = arith.constant 0 : index
    %70 = vector.load %arg7[%c0_41, %c2, %c0_42] : memref<1x56x128xf32, #tpu.memory_space<vmem>>, vector<1x1x128xf32>
    %71 = vector.shape_cast %70 : vector<1x1x128xf32> to vector<1x128xf32>
    %72 = vector.shape_cast %69 : vector<1x128xf32> to vector<1x1x128xf32>
    tpu.vector_store %arg7[%c0_41, %c2, %c0_42], %72 {strides = array<i32>} : memref<1x56x128xf32, #tpu.memory_space<vmem>>, vector<1x1x128xf32>,
    %73 = vector.extract_strided_slice %3 {offsets = [0, 3], sizes = [16, 1], strides = [1, 1]} : vector<16x56xf32> to vector<16x1xf32>
    %cst_43 = arith.constant 0.000000e+00 : f32
    %74 = vector.broadcast %cst_43 : f32 to vector<16x1xf32>
    %75 = arith.cmpf ogt, %73, %74 : vector<16x1xf32>
    %cst_44 = arith.constant -3.400000e+38 : f32
    %76 = vector.shape_cast %75 : vector<16x1xi1> to vector<16x1xi1>
    %77 = vector.broadcast %76 : vector<16x1xi1> to vector<16x128xi1>
    %78 = vector.broadcast %cst_44 : f32 to vector<16x128xf32>
    %79 = arith.select %77, %1, %78 : vector<16x128xi1>, vector<16x128xf32>
    %cst_45 = arith.constant dense<0xFF800000> : vector<128xf32>
    %80 = vector.multi_reduction <maximumf>, %79, %cst_45 [0] : vector<16x128xf32> to vector<128xf32>
    %81 = vector.shape_cast %80 : vector<128xf32> to vector<1x128xf32>
    %82 = vector.extract_strided_slice %4 {offsets = [3, 0], sizes = [1, 1], strides = [1, 1]} : vector<56x1xf32> to vector<1x1xf32>
    %83 = vector.extract %82[0, 0] : f32 from vector<1x1xf32>
    %cst_46 = arith.constant 0.000000e+00 : f32
    %84 = arith.cmpf ogt, %83, %cst_46 : f32
    %cst_47 = arith.constant 0.000000e+00 : f32
    %85 = vector.broadcast %cst_47 : f32 to vector<1x128xf32>
    %86 = arith.select %84, %81, %85 : vector<1x128xf32>
    %c0_48 = arith.constant 0 : index
    %c3 = arith.constant 3 : index
    %c0_49 = arith.constant 0 : index
    %87 = vector.load %arg7[%c0_48, %c3, %c0_49] : memref<1x56x128xf32, #tpu.memory_space<vmem>>, vector<1x1x128xf32>
    %88 = vector.shape_cast %87 : vector<1x1x128xf32> to vector<1x128xf32>
    %89 = vector.shape_cast %86 : vector<1x128xf32> to vector<1x1x128xf32>
    tpu.vector_store %arg7[%c0_48, %c3, %c0_49], %89 {strides = array<i32>} : memref<1x56x128xf32, #tpu.memory_space<vmem>>, vector<1x1x128xf32>,
    %90 = vector.extract_strided_slice %3 {offsets = [0, 4], sizes = [16, 1], strides = [1, 1]} : vector<16x56xf32> to vector<16x1xf32>
    %cst_50 = arith.constant 0.000000e+00 : f32
    %91 = vector.broadcast %cst_50 : f32 to vector<16x1xf32>
    %92 = arith.cmpf ogt, %90, %91 : vector<16x1xf32>
    %cst_51 = arith.constant -3.400000e+38 : f32
    %93 = vector.shape_cast %92 : vector<16x1xi1> to vector<16x1xi1>
    %94 = vector.broadcast %93 : vector<16x1xi1> to vector<16x128xi1>
    %95 = vector.broadcast %cst_51 : f32 to vector<16x128xf32>
    %96 = arith.select %94, %1, %95 : vector<16x128xi1>, vector<16x128xf32>
    %cst_52 = arith.constant dense<0xFF800000> : vector<128xf32>
    %97 = vector.multi_reduction <maximumf>, %96, %cst_52 [0] : vector<16x128xf32> to vector<128xf32>
    %98 = vector.shape_cast %97 : vector<128xf32> to vector<1x128xf32>
    %99 = vector.extract_strided_slice %4 {offsets = [4, 0], sizes = [1, 1], strides = [1, 1]} : vector<56x1xf32> to vector<1x1xf32>
    %100 = vector.extract %99[0, 0] : f32 from vector<1x1xf32>
    %cst_53 = arith.constant 0.000000e+00 : f32
    %101 = arith.cmpf ogt, %100, %cst_53 : f32
    %cst_54 = arith.constant 0.000000e+00 : f32
    %102 = vector.broadcast %cst_54 : f32 to vector<1x128xf32>
    %103 = arith.select %101, %98, %102 : vector<1x128xf32>
    %c0_55 = arith.constant 0 : index
    %c4 = arith.constant 4 : index
    %c0_56 = arith.constant 0 : index
    %104 = vector.load %arg7[%c0_55, %c4, %c0_56] : memref<1x56x128xf32, #tpu.memory_space<vmem>>, vector<1x1x128xf32>
    %105 = vector.shape_cast %104 : vector<1x1x128xf32> to vector<1x128xf32>
    %106 = vector.shape_cast %103 : vector<1x128xf32> to vector<1x1x128xf32>
    tpu.vector_store %arg7[%c0_55, %c4, %c0_56], %106 {strides = array<i32>} : memref<1x56x128xf32, #tpu.memory_space<vmem>>, vector<1x1x128xf32>,
    %107 = vector.extract_strided_slice %3 {offsets = [0, 5], sizes = [16, 1], strides = [1, 1]} : vector<16x56xf32> to vector<16x1xf32>
    %cst_57 = arith.constant 0.000000e+00 : f32
    %108 = vector.broadcast %cst_57 : f32 to vector<16x1xf32>
    %109 = arith.cmpf ogt, %107, %108 : vector<16x1xf32>
    %cst_58 = arith.constant -3.400000e+38 : f32
    %110 = vector.shape_cast %109 : vector<16x1xi1> to vector<16x1xi1>
    %111 = vector.broadcast %110 : vector<16x1xi1> to vector<16x128xi1>
    %112 = vector.broadcast %cst_58 : f32 to vector<16x128xf32>
    %113 = arith.select %111, %1, %112 : vector<16x128xi1>, vector<16x128xf32>
    %cst_59 = arith.constant dense<0xFF800000> : vector<128xf32>
    %114 = vector.multi_reduction <maximumf>, %113, %cst_59 [0] : vector<16x128xf32> to vector<128xf32>
    %115 = vector.shape_cast %114 : vector<128xf32> to vector<1x128xf32>
    %116 = vector.extract_strided_slice %4 {offsets = [5, 0], sizes = [1, 1], strides = [1, 1]} : vector<56x1xf32> to vector<1x1xf32>
    %117 = vector.extract %116[0, 0] : f32 from vector<1x1xf32>
    %cst_60 = arith.constant 0.000000e+00 : f32
    %118 = arith.cmpf ogt, %117, %cst_60 : f32
    %cst_61 = arith.constant 0.000000e+00 : f32
    %119 = vector.broadcast %cst_61 : f32 to vector<1x128xf32>
    %120 = arith.select %118, %115, %119 : vector<1x128xf32>
    %c0_62 = arith.constant 0 : index
    %c5 = arith.constant 5 : index
    %c0_63 = arith.constant 0 : index
    %121 = vector.load %arg7[%c0_62, %c5, %c0_63] : memref<1x56x128xf32, #tpu.memory_space<vmem>>, vector<1x1x128xf32>
    %122 = vector.shape_cast %121 : vector<1x1x128xf32> to vector<1x128xf32>
    %123 = vector.shape_cast %120 : vector<1x128xf32> to vector<1x1x128xf32>
    tpu.vector_store %arg7[%c0_62, %c5, %c0_63], %123 {strides = array<i32>} : memref<1x56x128xf32, #tpu.memory_space<vmem>>, vector<1x1x128xf32>,
    %124 = vector.extract_strided_slice %3 {offsets = [0, 6], sizes = [16, 1], strides = [1, 1]} : vector<16x56xf32> to vector<16x1xf32>
    %cst_64 = arith.constant 0.000000e+00 : f32
    %125 = vector.broadcast %cst_64 : f32 to vector<16x1xf32>
    %126 = arith.cmpf ogt, %124, %125 : vector<16x1xf32>
    %cst_65 = arith.constant -3.400000e+38 : f32
    %127 = vector.shape_cast %126 : vector<16x1xi1> to vector<16x1xi1>
    %128 = vector.broadcast %127 : vector<16x1xi1> to vector<16x128xi1>
    %129 = vector.broadcast %cst_65 : f32 to vector<16x128xf32>
    %130 = arith.select %128, %1, %129 : vector<16x128xi1>, vector<16x128xf32>
    %cst_66 = arith.constant dense<0xFF800000> : vector<128xf32>
    %131 = vector.multi_reduction <maximumf>, %130, %cst_66 [0] : vector<16x128xf32> to vector<128xf32>
    %132 = vector.shape_cast %131 : vector<128xf32> to vector<1x128xf32>
    %133 = vector.extract_strided_slice %4 {offsets = [6, 0], sizes = [1, 1], strides = [1, 1]} : vector<56x1xf32> to vector<1x1xf32>
    %134 = vector.extract %133[0, 0] : f32 from vector<1x1xf32>
    %cst_67 = arith.constant 0.000000e+00 : f32
    %135 = arith.cmpf ogt, %134, %cst_67 : f32
    %cst_68 = arith.constant 0.000000e+00 : f32
    %136 = vector.broadcast %cst_68 : f32 to vector<1x128xf32>
    %137 = arith.select %135, %132, %136 : vector<1x128xf32>
    %c0_69 = arith.constant 0 : index
    %c6 = arith.constant 6 : index
    %c0_70 = arith.constant 0 : index
    %138 = vector.load %arg7[%c0_69, %c6, %c0_70] : memref<1x56x128xf32, #tpu.memory_space<vmem>>, vector<1x1x128xf32>
    %139 = vector.shape_cast %138 : vector<1x1x128xf32> to vector<1x128xf32>
    %140 = vector.shape_cast %137 : vector<1x128xf32> to vector<1x1x128xf32>
    tpu.vector_store %arg7[%c0_69, %c6, %c0_70], %140 {strides = array<i32>} : memref<1x56x128xf32, #tpu.memory_space<vmem>>, vector<1x1x128xf32>,
    %141 = vector.extract_strided_slice %3 {offsets = [0, 7], sizes = [16, 1], strides = [1, 1]} : vector<16x56xf32> to vector<16x1xf32>
    %cst_71 = arith.constant 0.000000e+00 : f32
    %142 = vector.broadcast %cst_71 : f32 to vector<16x1xf32>
    %143 = arith.cmpf ogt, %141, %142 : vector<16x1xf32>
    %cst_72 = arith.constant -3.400000e+38 : f32
    %144 = vector.shape_cast %143 : vector<16x1xi1> to vector<16x1xi1>
    %145 = vector.broadcast %144 : vector<16x1xi1> to vector<16x128xi1>
    %146 = vector.broadcast %cst_72 : f32 to vector<16x128xf32>
    %147 = arith.select %145, %1, %146 : vector<16x128xi1>, vector<16x128xf32>
    %cst_73 = arith.constant dense<0xFF800000> : vector<128xf32>
    %148 = vector.multi_reduction <maximumf>, %147, %cst_73 [0] : vector<16x128xf32> to vector<128xf32>
    %149 = vector.shape_cast %148 : vector<128xf32> to vector<1x128xf32>
    %150 = vector.extract_strided_slice %4 {offsets = [7, 0], sizes = [1, 1], strides = [1, 1]} : vector<56x1xf32> to vector<1x1xf32>
    %151 = vector.extract %150[0, 0] : f32 from vector<1x1xf32>
    %cst_74 = arith.constant 0.000000e+00 : f32
    %152 = arith.cmpf ogt, %151, %cst_74 : f32
    %cst_75 = arith.constant 0.000000e+00 : f32
    %153 = vector.broadcast %cst_75 : f32 to vector<1x128xf32>
    %154 = arith.select %152, %149, %153 : vector<1x128xf32>
    %c0_76 = arith.constant 0 : index
    %c7 = arith.constant 7 : index
    %c0_77 = arith.constant 0 : index
    %155 = vector.load %arg7[%c0_76, %c7, %c0_77] : memref<1x56x128xf32, #tpu.memory_space<vmem>>, vector<1x1x128xf32>
    %156 = vector.shape_cast %155 : vector<1x1x128xf32> to vector<1x128xf32>
    %157 = vector.shape_cast %154 : vector<1x128xf32> to vector<1x1x128xf32>
    tpu.vector_store %arg7[%c0_76, %c7, %c0_77], %157 {strides = array<i32>} : memref<1x56x128xf32, #tpu.memory_space<vmem>>, vector<1x1x128xf32>,
    %158 = vector.extract_strided_slice %3 {offsets = [0, 8], sizes = [16, 1], strides = [1, 1]} : vector<16x56xf32> to vector<16x1xf32>
    %cst_78 = arith.constant 0.000000e+00 : f32
    %159 = vector.broadcast %cst_78 : f32 to vector<16x1xf32>
    %160 = arith.cmpf ogt, %158, %159 : vector<16x1xf32>
    %cst_79 = arith.constant -3.400000e+38 : f32
    %161 = vector.shape_cast %160 : vector<16x1xi1> to vector<16x1xi1>
    %162 = vector.broadcast %161 : vector<16x1xi1> to vector<16x128xi1>
    %163 = vector.broadcast %cst_79 : f32 to vector<16x128xf32>
    %164 = arith.select %162, %1, %163 : vector<16x128xi1>, vector<16x128xf32>
    %cst_80 = arith.constant dense<0xFF800000> : vector<128xf32>
    %165 = vector.multi_reduction <maximumf>, %164, %cst_80 [0] : vector<16x128xf32> to vector<128xf32>
    %166 = vector.shape_cast %165 : vector<128xf32> to vector<1x128xf32>
    %167 = vector.extract_strided_slice %4 {offsets = [8, 0], sizes = [1, 1], strides = [1, 1]} : vector<56x1xf32> to vector<1x1xf32>
    %168 = vector.extract %167[0, 0] : f32 from vector<1x1xf32>
    %cst_81 = arith.constant 0.000000e+00 : f32
    %169 = arith.cmpf ogt, %168, %cst_81 : f32
    %cst_82 = arith.constant 0.000000e+00 : f32
    %170 = vector.broadcast %cst_82 : f32 to vector<1x128xf32>
    %171 = arith.select %169, %166, %170 : vector<1x128xf32>
    %c0_83 = arith.constant 0 : index
    %c8 = arith.constant 8 : index
    %c0_84 = arith.constant 0 : index
    %172 = vector.load %arg7[%c0_83, %c8, %c0_84] : memref<1x56x128xf32, #tpu.memory_space<vmem>>, vector<1x1x128xf32>
    %173 = vector.shape_cast %172 : vector<1x1x128xf32> to vector<1x128xf32>
    %174 = vector.shape_cast %171 : vector<1x128xf32> to vector<1x1x128xf32>
    tpu.vector_store %arg7[%c0_83, %c8, %c0_84], %174 {strides = array<i32>} : memref<1x56x128xf32, #tpu.memory_space<vmem>>, vector<1x1x128xf32>,
    %175 = vector.extract_strided_slice %3 {offsets = [0, 9], sizes = [16, 1], strides = [1, 1]} : vector<16x56xf32> to vector<16x1xf32>
    %cst_85 = arith.constant 0.000000e+00 : f32
    %176 = vector.broadcast %cst_85 : f32 to vector<16x1xf32>
    %177 = arith.cmpf ogt, %175, %176 : vector<16x1xf32>
    %cst_86 = arith.constant -3.400000e+38 : f32
    %178 = vector.shape_cast %177 : vector<16x1xi1> to vector<16x1xi1>
    %179 = vector.broadcast %178 : vector<16x1xi1> to vector<16x128xi1>
    %180 = vector.broadcast %cst_86 : f32 to vector<16x128xf32>
    %181 = arith.select %179, %1, %180 : vector<16x128xi1>, vector<16x128xf32>
    %cst_87 = arith.constant dense<0xFF800000> : vector<128xf32>
    %182 = vector.multi_reduction <maximumf>, %181, %cst_87 [0] : vector<16x128xf32> to vector<128xf32>
    %183 = vector.shape_cast %182 : vector<128xf32> to vector<1x128xf32>
    %184 = vector.extract_strided_slice %4 {offsets = [9, 0], sizes = [1, 1], strides = [1, 1]} : vector<56x1xf32> to vector<1x1xf32>
    %185 = vector.extract %184[0, 0] : f32 from vector<1x1xf32>
    %cst_88 = arith.constant 0.000000e+00 : f32
    %186 = arith.cmpf ogt, %185, %cst_88 : f32
    %cst_89 = arith.constant 0.000000e+00 : f32
    %187 = vector.broadcast %cst_89 : f32 to vector<1x128xf32>
    %188 = arith.select %186, %183, %187 : vector<1x128xf32>
    %c0_90 = arith.constant 0 : index
    %c9 = arith.constant 9 : index
    %c0_91 = arith.constant 0 : index
    %189 = vector.load %arg7[%c0_90, %c9, %c0_91] : memref<1x56x128xf32, #tpu.memory_space<vmem>>, vector<1x1x128xf32>
    %190 = vector.shape_cast %189 : vector<1x1x128xf32> to vector<1x128xf32>
    %191 = vector.shape_cast %188 : vector<1x128xf32> to vector<1x1x128xf32>
    tpu.vector_store %arg7[%c0_90, %c9, %c0_91], %191 {strides = array<i32>} : memref<1x56x128xf32, #tpu.memory_space<vmem>>, vector<1x1x128xf32>,
    %192 = vector.extract_strided_slice %3 {offsets = [0, 10], sizes = [16, 1], strides = [1, 1]} : vector<16x56xf32> to vector<16x1xf32>
    %cst_92 = arith.constant 0.000000e+00 : f32
    %193 = vector.broadcast %cst_92 : f32 to vector<16x1xf32>
    %194 = arith.cmpf ogt, %192, %193 : vector<16x1xf32>
    %cst_93 = arith.constant -3.400000e+38 : f32
    %195 = vector.shape_cast %194 : vector<16x1xi1> to vector<16x1xi1>
    %196 = vector.broadcast %195 : vector<16x1xi1> to vector<16x128xi1>
    %197 = vector.broadcast %cst_93 : f32 to vector<16x128xf32>
    %198 = arith.select %196, %1, %197 : vector<16x128xi1>, vector<16x128xf32>
    %cst_94 = arith.constant dense<0xFF800000> : vector<128xf32>
    %199 = vector.multi_reduction <maximumf>, %198, %cst_94 [0] : vector<16x128xf32> to vector<128xf32>
    %200 = vector.shape_cast %199 : vector<128xf32> to vector<1x128xf32>
    %201 = vector.extract_strided_slice %4 {offsets = [10, 0], sizes = [1, 1], strides = [1, 1]} : vector<56x1xf32> to vector<1x1xf32>
    %202 = vector.extract %201[0, 0] : f32 from vector<1x1xf32>
    %cst_95 = arith.constant 0.000000e+00 : f32
    %203 = arith.cmpf ogt, %202, %cst_95 : f32
    %cst_96 = arith.constant 0.000000e+00 : f32
    %204 = vector.broadcast %cst_96 : f32 to vector<1x128xf32>
    %205 = arith.select %203, %200, %204 : vector<1x128xf32>
    %c0_97 = arith.constant 0 : index
    %c10 = arith.constant 10 : index
    %c0_98 = arith.constant 0 : index
    %206 = vector.load %arg7[%c0_97, %c10, %c0_98] : memref<1x56x128xf32, #tpu.memory_space<vmem>>, vector<1x1x128xf32>
    %207 = vector.shape_cast %206 : vector<1x1x128xf32> to vector<1x128xf32>
    %208 = vector.shape_cast %205 : vector<1x128xf32> to vector<1x1x128xf32>
    tpu.vector_store %arg7[%c0_97, %c10, %c0_98], %208 {strides = array<i32>} : memref<1x56x128xf32, #tpu.memory_space<vmem>>, vector<1x1x128xf32>,
    %209 = vector.extract_strided_slice %3 {offsets = [0, 11], sizes = [16, 1], strides = [1, 1]} : vector<16x56xf32> to vector<16x1xf32>
    %cst_99 = arith.constant 0.000000e+00 : f32
    %210 = vector.broadcast %cst_99 : f32 to vector<16x1xf32>
    %211 = arith.cmpf ogt, %209, %210 : vector<16x1xf32>
    %cst_100 = arith.constant -3.400000e+38 : f32
    %212 = vector.shape_cast %211 : vector<16x1xi1> to vector<16x1xi1>
    %213 = vector.broadcast %212 : vector<16x1xi1> to vector<16x128xi1>
    %214 = vector.broadcast %cst_100 : f32 to vector<16x128xf32>
    %215 = arith.select %213, %1, %214 : vector<16x128xi1>, vector<16x128xf32>
    %cst_101 = arith.constant dense<0xFF800000> : vector<128xf32>
    %216 = vector.multi_reduction <maximumf>, %215, %cst_101 [0] : vector<16x128xf32> to vector<128xf32>
    %217 = vector.shape_cast %216 : vector<128xf32> to vector<1x128xf32>
    %218 = vector.extract_strided_slice %4 {offsets = [11, 0], sizes = [1, 1], strides = [1, 1]} : vector<56x1xf32> to vector<1x1xf32>
    %219 = vector.extract %218[0, 0] : f32 from vector<1x1xf32>
    %cst_102 = arith.constant 0.000000e+00 : f32
    %220 = arith.cmpf ogt, %219, %cst_102 : f32
    %cst_103 = arith.constant 0.000000e+00 : f32
    %221 = vector.broadcast %cst_103 : f32 to vector<1x128xf32>
    %222 = arith.select %220, %217, %221 : vector<1x128xf32>
    %c0_104 = arith.constant 0 : index
    %c11 = arith.constant 11 : index
    %c0_105 = arith.constant 0 : index
    %223 = vector.load %arg7[%c0_104, %c11, %c0_105] : memref<1x56x128xf32, #tpu.memory_space<vmem>>, vector<1x1x128xf32>
    %224 = vector.shape_cast %223 : vector<1x1x128xf32> to vector<1x128xf32>
    %225 = vector.shape_cast %222 : vector<1x128xf32> to vector<1x1x128xf32>
    tpu.vector_store %arg7[%c0_104, %c11, %c0_105], %225 {strides = array<i32>} : memref<1x56x128xf32, #tpu.memory_space<vmem>>, vector<1x1x128xf32>,
    %226 = vector.extract_strided_slice %3 {offsets = [0, 12], sizes = [16, 1], strides = [1, 1]} : vector<16x56xf32> to vector<16x1xf32>
    %cst_106 = arith.constant 0.000000e+00 : f32
    %227 = vector.broadcast %cst_106 : f32 to vector<16x1xf32>
    %228 = arith.cmpf ogt, %226, %227 : vector<16x1xf32>
    %cst_107 = arith.constant -3.400000e+38 : f32
    %229 = vector.shape_cast %228 : vector<16x1xi1> to vector<16x1xi1>
    %230 = vector.broadcast %229 : vector<16x1xi1> to vector<16x128xi1>
    %231 = vector.broadcast %cst_107 : f32 to vector<16x128xf32>
    %232 = arith.select %230, %1, %231 : vector<16x128xi1>, vector<16x128xf32>
    %cst_108 = arith.constant dense<0xFF800000> : vector<128xf32>
    %233 = vector.multi_reduction <maximumf>, %232, %cst_108 [0] : vector<16x128xf32> to vector<128xf32>
    %234 = vector.shape_cast %233 : vector<128xf32> to vector<1x128xf32>
    %235 = vector.extract_strided_slice %4 {offsets = [12, 0], sizes = [1, 1], strides = [1, 1]} : vector<56x1xf32> to vector<1x1xf32>
    %236 = vector.extract %235[0, 0] : f32 from vector<1x1xf32>
    %cst_109 = arith.constant 0.000000e+00 : f32
    %237 = arith.cmpf ogt, %236, %cst_109 : f32
    %cst_110 = arith.constant 0.000000e+00 : f32
    %238 = vector.broadcast %cst_110 : f32 to vector<1x128xf32>
    %239 = arith.select %237, %234, %238 : vector<1x128xf32>
    %c0_111 = arith.constant 0 : index
    %c12 = arith.constant 12 : index
    %c0_112 = arith.constant 0 : index
    %240 = vector.load %arg7[%c0_111, %c12, %c0_112] : memref<1x56x128xf32, #tpu.memory_space<vmem>>, vector<1x1x128xf32>
    %241 = vector.shape_cast %240 : vector<1x1x128xf32> to vector<1x128xf32>
    %242 = vector.shape_cast %239 : vector<1x128xf32> to vector<1x1x128xf32>
    tpu.vector_store %arg7[%c0_111, %c12, %c0_112], %242 {strides = array<i32>} : memref<1x56x128xf32, #tpu.memory_space<vmem>>, vector<1x1x128xf32>,
    %243 = vector.extract_strided_slice %3 {offsets = [0, 13], sizes = [16, 1], strides = [1, 1]} : vector<16x56xf32> to vector<16x1xf32>
    %cst_113 = arith.constant 0.000000e+00 : f32
    %244 = vector.broadcast %cst_113 : f32 to vector<16x1xf32>
    %245 = arith.cmpf ogt, %243, %244 : vector<16x1xf32>
    %cst_114 = arith.constant -3.400000e+38 : f32
    %246 = vector.shape_cast %245 : vector<16x1xi1> to vector<16x1xi1>
    %247 = vector.broadcast %246 : vector<16x1xi1> to vector<16x128xi1>
    %248 = vector.broadcast %cst_114 : f32 to vector<16x128xf32>
    %249 = arith.select %247, %1, %248 : vector<16x128xi1>, vector<16x128xf32>
    %cst_115 = arith.constant dense<0xFF800000> : vector<128xf32>
    %250 = vector.multi_reduction <maximumf>, %249, %cst_115 [0] : vector<16x128xf32> to vector<128xf32>
    %251 = vector.shape_cast %250 : vector<128xf32> to vector<1x128xf32>
    %252 = vector.extract_strided_slice %4 {offsets = [13, 0], sizes = [1, 1], strides = [1, 1]} : vector<56x1xf32> to vector<1x1xf32>
    %253 = vector.extract %252[0, 0] : f32 from vector<1x1xf32>
    %cst_116 = arith.constant 0.000000e+00 : f32
    %254 = arith.cmpf ogt, %253, %cst_116 : f32
    %cst_117 = arith.constant 0.000000e+00 : f32
    %255 = vector.broadcast %cst_117 : f32 to vector<1x128xf32>
    %256 = arith.select %254, %251, %255 : vector<1x128xf32>
    %c0_118 = arith.constant 0 : index
    %c13 = arith.constant 13 : index
    %c0_119 = arith.constant 0 : index
    %257 = vector.load %arg7[%c0_118, %c13, %c0_119] : memref<1x56x128xf32, #tpu.memory_space<vmem>>, vector<1x1x128xf32>
    %258 = vector.shape_cast %257 : vector<1x1x128xf32> to vector<1x128xf32>
    %259 = vector.shape_cast %256 : vector<1x128xf32> to vector<1x1x128xf32>
    tpu.vector_store %arg7[%c0_118, %c13, %c0_119], %259 {strides = array<i32>} : memref<1x56x128xf32, #tpu.memory_space<vmem>>, vector<1x1x128xf32>,
    %260 = vector.extract_strided_slice %3 {offsets = [0, 14], sizes = [16, 1], strides = [1, 1]} : vector<16x56xf32> to vector<16x1xf32>
    %cst_120 = arith.constant 0.000000e+00 : f32
    %261 = vector.broadcast %cst_120 : f32 to vector<16x1xf32>
    %262 = arith.cmpf ogt, %260, %261 : vector<16x1xf32>
    %cst_121 = arith.constant -3.400000e+38 : f32
    %263 = vector.shape_cast %262 : vector<16x1xi1> to vector<16x1xi1>
    %264 = vector.broadcast %263 : vector<16x1xi1> to vector<16x128xi1>
    %265 = vector.broadcast %cst_121 : f32 to vector<16x128xf32>
    %266 = arith.select %264, %1, %265 : vector<16x128xi1>, vector<16x128xf32>
    %cst_122 = arith.constant dense<0xFF800000> : vector<128xf32>
    %267 = vector.multi_reduction <maximumf>, %266, %cst_122 [0] : vector<16x128xf32> to vector<128xf32>
    %268 = vector.shape_cast %267 : vector<128xf32> to vector<1x128xf32>
    %269 = vector.extract_strided_slice %4 {offsets = [14, 0], sizes = [1, 1], strides = [1, 1]} : vector<56x1xf32> to vector<1x1xf32>
    %270 = vector.extract %269[0, 0] : f32 from vector<1x1xf32>
    %cst_123 = arith.constant 0.000000e+00 : f32
    %271 = arith.cmpf ogt, %270, %cst_123 : f32
    %cst_124 = arith.constant 0.000000e+00 : f32
    %272 = vector.broadcast %cst_124 : f32 to vector<1x128xf32>
    %273 = arith.select %271, %268, %272 : vector<1x128xf32>
    %c0_125 = arith.constant 0 : index
    %c14 = arith.constant 14 : index
    %c0_126 = arith.constant 0 : index
    %274 = vector.load %arg7[%c0_125, %c14, %c0_126] : memref<1x56x128xf32, #tpu.memory_space<vmem>>, vector<1x1x128xf32>
    %275 = vector.shape_cast %274 : vector<1x1x128xf32> to vector<1x128xf32>
    %276 = vector.shape_cast %273 : vector<1x128xf32> to vector<1x1x128xf32>
    tpu.vector_store %arg7[%c0_125, %c14, %c0_126], %276 {strides = array<i32>} : memref<1x56x128xf32, #tpu.memory_space<vmem>>, vector<1x1x128xf32>,
    %277 = vector.extract_strided_slice %3 {offsets = [0, 15], sizes = [16, 1], strides = [1, 1]} : vector<16x56xf32> to vector<16x1xf32>
    %cst_127 = arith.constant 0.000000e+00 : f32
    %278 = vector.broadcast %cst_127 : f32 to vector<16x1xf32>
    %279 = arith.cmpf ogt, %277, %278 : vector<16x1xf32>
    %cst_128 = arith.constant -3.400000e+38 : f32
    %280 = vector.shape_cast %279 : vector<16x1xi1> to vector<16x1xi1>
    %281 = vector.broadcast %280 : vector<16x1xi1> to vector<16x128xi1>
    %282 = vector.broadcast %cst_128 : f32 to vector<16x128xf32>
    %283 = arith.select %281, %1, %282 : vector<16x128xi1>, vector<16x128xf32>
    %cst_129 = arith.constant dense<0xFF800000> : vector<128xf32>
    %284 = vector.multi_reduction <maximumf>, %283, %cst_129 [0] : vector<16x128xf32> to vector<128xf32>
    %285 = vector.shape_cast %284 : vector<128xf32> to vector<1x128xf32>
    %286 = vector.extract_strided_slice %4 {offsets = [15, 0], sizes = [1, 1], strides = [1, 1]} : vector<56x1xf32> to vector<1x1xf32>
    %287 = vector.extract %286[0, 0] : f32 from vector<1x1xf32>
    %cst_130 = arith.constant 0.000000e+00 : f32
    %288 = arith.cmpf ogt, %287, %cst_130 : f32
    %cst_131 = arith.constant 0.000000e+00 : f32
    %289 = vector.broadcast %cst_131 : f32 to vector<1x128xf32>
    %290 = arith.select %288, %285, %289 : vector<1x128xf32>
    %c0_132 = arith.constant 0 : index
    %c15 = arith.constant 15 : index
    %c0_133 = arith.constant 0 : index
    %291 = vector.load %arg7[%c0_132, %c15, %c0_133] : memref<1x56x128xf32, #tpu.memory_space<vmem>>, vector<1x1x128xf32>
    %292 = vector.shape_cast %291 : vector<1x1x128xf32> to vector<1x128xf32>
    %293 = vector.shape_cast %290 : vector<1x128xf32> to vector<1x1x128xf32>
    tpu.vector_store %arg7[%c0_132, %c15, %c0_133], %293 {strides = array<i32>} : memref<1x56x128xf32, #tpu.memory_space<vmem>>, vector<1x1x128xf32>,
    %294 = vector.extract_strided_slice %3 {offsets = [0, 16], sizes = [16, 1], strides = [1, 1]} : vector<16x56xf32> to vector<16x1xf32>
    %cst_134 = arith.constant 0.000000e+00 : f32
    %295 = vector.broadcast %cst_134 : f32 to vector<16x1xf32>
    %296 = arith.cmpf ogt, %294, %295 : vector<16x1xf32>
    %cst_135 = arith.constant -3.400000e+38 : f32
    %297 = vector.shape_cast %296 : vector<16x1xi1> to vector<16x1xi1>
    %298 = vector.broadcast %297 : vector<16x1xi1> to vector<16x128xi1>
    %299 = vector.broadcast %cst_135 : f32 to vector<16x128xf32>
    %300 = arith.select %298, %1, %299 : vector<16x128xi1>, vector<16x128xf32>
    %cst_136 = arith.constant dense<0xFF800000> : vector<128xf32>
    %301 = vector.multi_reduction <maximumf>, %300, %cst_136 [0] : vector<16x128xf32> to vector<128xf32>
    %302 = vector.shape_cast %301 : vector<128xf32> to vector<1x128xf32>
    %303 = vector.extract_strided_slice %4 {offsets = [16, 0], sizes = [1, 1], strides = [1, 1]} : vector<56x1xf32> to vector<1x1xf32>
    %304 = vector.extract %303[0, 0] : f32 from vector<1x1xf32>
    %cst_137 = arith.constant 0.000000e+00 : f32
    %305 = arith.cmpf ogt, %304, %cst_137 : f32
    %cst_138 = arith.constant 0.000000e+00 : f32
    %306 = vector.broadcast %cst_138 : f32 to vector<1x128xf32>
    %307 = arith.select %305, %302, %306 : vector<1x128xf32>
    %c0_139 = arith.constant 0 : index
    %c16 = arith.constant 16 : index
    %c0_140 = arith.constant 0 : index
    %308 = vector.load %arg7[%c0_139, %c16, %c0_140] : memref<1x56x128xf32, #tpu.memory_space<vmem>>, vector<1x1x128xf32>
    %309 = vector.shape_cast %308 : vector<1x1x128xf32> to vector<1x128xf32>
    %310 = vector.shape_cast %307 : vector<1x128xf32> to vector<1x1x128xf32>
    tpu.vector_store %arg7[%c0_139, %c16, %c0_140], %310 {strides = array<i32>} : memref<1x56x128xf32, #tpu.memory_space<vmem>>, vector<1x1x128xf32>,
    %311 = vector.extract_strided_slice %3 {offsets = [0, 17], sizes = [16, 1], strides = [1, 1]} : vector<16x56xf32> to vector<16x1xf32>
    %cst_141 = arith.constant 0.000000e+00 : f32
    %312 = vector.broadcast %cst_141 : f32 to vector<16x1xf32>
    %313 = arith.cmpf ogt, %311, %312 : vector<16x1xf32>
    %cst_142 = arith.constant -3.400000e+38 : f32
    %314 = vector.shape_cast %313 : vector<16x1xi1> to vector<16x1xi1>
    %315 = vector.broadcast %314 : vector<16x1xi1> to vector<16x128xi1>
    %316 = vector.broadcast %cst_142 : f32 to vector<16x128xf32>
    %317 = arith.select %315, %1, %316 : vector<16x128xi1>, vector<16x128xf32>
    %cst_143 = arith.constant dense<0xFF800000> : vector<128xf32>
    %318 = vector.multi_reduction <maximumf>, %317, %cst_143 [0] : vector<16x128xf32> to vector<128xf32>
    %319 = vector.shape_cast %318 : vector<128xf32> to vector<1x128xf32>
    %320 = vector.extract_strided_slice %4 {offsets = [17, 0], sizes = [1, 1], strides = [1, 1]} : vector<56x1xf32> to vector<1x1xf32>
    %321 = vector.extract %320[0, 0] : f32 from vector<1x1xf32>
    %cst_144 = arith.constant 0.000000e+00 : f32
    %322 = arith.cmpf ogt, %321, %cst_144 : f32
    %cst_145 = arith.constant 0.000000e+00 : f32
    %323 = vector.broadcast %cst_145 : f32 to vector<1x128xf32>
    %324 = arith.select %322, %319, %323 : vector<1x128xf32>
    %c0_146 = arith.constant 0 : index
    %c17 = arith.constant 17 : index
    %c0_147 = arith.constant 0 : index
    %325 = vector.load %arg7[%c0_146, %c17, %c0_147] : memref<1x56x128xf32, #tpu.memory_space<vmem>>, vector<1x1x128xf32>
    %326 = vector.shape_cast %325 : vector<1x1x128xf32> to vector<1x128xf32>
    %327 = vector.shape_cast %324 : vector<1x128xf32> to vector<1x1x128xf32>
    tpu.vector_store %arg7[%c0_146, %c17, %c0_147], %327 {strides = array<i32>} : memref<1x56x128xf32, #tpu.memory_space<vmem>>, vector<1x1x128xf32>,
    %328 = vector.extract_strided_slice %3 {offsets = [0, 18], sizes = [16, 1], strides = [1, 1]} : vector<16x56xf32> to vector<16x1xf32>
    %cst_148 = arith.constant 0.000000e+00 : f32
    %329 = vector.broadcast %cst_148 : f32 to vector<16x1xf32>
    %330 = arith.cmpf ogt, %328, %329 : vector<16x1xf32>
    %cst_149 = arith.constant -3.400000e+38 : f32
    %331 = vector.shape_cast %330 : vector<16x1xi1> to vector<16x1xi1>
    %332 = vector.broadcast %331 : vector<16x1xi1> to vector<16x128xi1>
    %333 = vector.broadcast %cst_149 : f32 to vector<16x128xf32>
    %334 = arith.select %332, %1, %333 : vector<16x128xi1>, vector<16x128xf32>
    %cst_150 = arith.constant dense<0xFF800000> : vector<128xf32>
    %335 = vector.multi_reduction <maximumf>, %334, %cst_150 [0] : vector<16x128xf32> to vector<128xf32>
    %336 = vector.shape_cast %335 : vector<128xf32> to vector<1x128xf32>
    %337 = vector.extract_strided_slice %4 {offsets = [18, 0], sizes = [1, 1], strides = [1, 1]} : vector<56x1xf32> to vector<1x1xf32>
    %338 = vector.extract %337[0, 0] : f32 from vector<1x1xf32>
    %cst_151 = arith.constant 0.000000e+00 : f32
    %339 = arith.cmpf ogt, %338, %cst_151 : f32
    %cst_152 = arith.constant 0.000000e+00 : f32
    %340 = vector.broadcast %cst_152 : f32 to vector<1x128xf32>
    %341 = arith.select %339, %336, %340 : vector<1x128xf32>
    %c0_153 = arith.constant 0 : index
    %c18 = arith.constant 18 : index
    %c0_154 = arith.constant 0 : index
    %342 = vector.load %arg7[%c0_153, %c18, %c0_154] : memref<1x56x128xf32, #tpu.memory_space<vmem>>, vector<1x1x128xf32>
    %343 = vector.shape_cast %342 : vector<1x1x128xf32> to vector<1x128xf32>
    %344 = vector.shape_cast %341 : vector<1x128xf32> to vector<1x1x128xf32>
    tpu.vector_store %arg7[%c0_153, %c18, %c0_154], %344 {strides = array<i32>} : memref<1x56x128xf32, #tpu.memory_space<vmem>>, vector<1x1x128xf32>,
    %345 = vector.extract_strided_slice %3 {offsets = [0, 19], sizes = [16, 1], strides = [1, 1]} : vector<16x56xf32> to vector<16x1xf32>
    %cst_155 = arith.constant 0.000000e+00 : f32
    %346 = vector.broadcast %cst_155 : f32 to vector<16x1xf32>
    %347 = arith.cmpf ogt, %345, %346 : vector<16x1xf32>
    %cst_156 = arith.constant -3.400000e+38 : f32
    %348 = vector.shape_cast %347 : vector<16x1xi1> to vector<16x1xi1>
    %349 = vector.broadcast %348 : vector<16x1xi1> to vector<16x128xi1>
    %350 = vector.broadcast %cst_156 : f32 to vector<16x128xf32>
    %351 = arith.select %349, %1, %350 : vector<16x128xi1>, vector<16x128xf32>
    %cst_157 = arith.constant dense<0xFF800000> : vector<128xf32>
    %352 = vector.multi_reduction <maximumf>, %351, %cst_157 [0] : vector<16x128xf32> to vector<128xf32>
    %353 = vector.shape_cast %352 : vector<128xf32> to vector<1x128xf32>
    %354 = vector.extract_strided_slice %4 {offsets = [19, 0], sizes = [1, 1], strides = [1, 1]} : vector<56x1xf32> to vector<1x1xf32>
    %355 = vector.extract %354[0, 0] : f32 from vector<1x1xf32>
    %cst_158 = arith.constant 0.000000e+00 : f32
    %356 = arith.cmpf ogt, %355, %cst_158 : f32
    %cst_159 = arith.constant 0.000000e+00 : f32
    %357 = vector.broadcast %cst_159 : f32 to vector<1x128xf32>
    %358 = arith.select %356, %353, %357 : vector<1x128xf32>
    %c0_160 = arith.constant 0 : index
    %c19 = arith.constant 19 : index
    %c0_161 = arith.constant 0 : index
    %359 = vector.load %arg7[%c0_160, %c19, %c0_161] : memref<1x56x128xf32, #tpu.memory_space<vmem>>, vector<1x1x128xf32>
    %360 = vector.shape_cast %359 : vector<1x1x128xf32> to vector<1x128xf32>
    %361 = vector.shape_cast %358 : vector<1x128xf32> to vector<1x1x128xf32>
    tpu.vector_store %arg7[%c0_160, %c19, %c0_161], %361 {strides = array<i32>} : memref<1x56x128xf32, #tpu.memory_space<vmem>>, vector<1x1x128xf32>,
    %362 = vector.extract_strided_slice %3 {offsets = [0, 20], sizes = [16, 1], strides = [1, 1]} : vector<16x56xf32> to vector<16x1xf32>
    %cst_162 = arith.constant 0.000000e+00 : f32
    %363 = vector.broadcast %cst_162 : f32 to vector<16x1xf32>
    %364 = arith.cmpf ogt, %362, %363 : vector<16x1xf32>
    %cst_163 = arith.constant -3.400000e+38 : f32
    %365 = vector.shape_cast %364 : vector<16x1xi1> to vector<16x1xi1>
    %366 = vector.broadcast %365 : vector<16x1xi1> to vector<16x128xi1>
    %367 = vector.broadcast %cst_163 : f32 to vector<16x128xf32>
    %368 = arith.select %366, %1, %367 : vector<16x128xi1>, vector<16x128xf32>
    %cst_164 = arith.constant dense<0xFF800000> : vector<128xf32>
    %369 = vector.multi_reduction <maximumf>, %368, %cst_164 [0] : vector<16x128xf32> to vector<128xf32>
    %370 = vector.shape_cast %369 : vector<128xf32> to vector<1x128xf32>
    %371 = vector.extract_strided_slice %4 {offsets = [20, 0], sizes = [1, 1], strides = [1, 1]} : vector<56x1xf32> to vector<1x1xf32>
    %372 = vector.extract %371[0, 0] : f32 from vector<1x1xf32>
    %cst_165 = arith.constant 0.000000e+00 : f32
    %373 = arith.cmpf ogt, %372, %cst_165 : f32
    %cst_166 = arith.constant 0.000000e+00 : f32
    %374 = vector.broadcast %cst_166 : f32 to vector<1x128xf32>
    %375 = arith.select %373, %370, %374 : vector<1x128xf32>
    %c0_167 = arith.constant 0 : index
    %c20 = arith.constant 20 : index
    %c0_168 = arith.constant 0 : index
    %376 = vector.load %arg7[%c0_167, %c20, %c0_168] : memref<1x56x128xf32, #tpu.memory_space<vmem>>, vector<1x1x128xf32>
    %377 = vector.shape_cast %376 : vector<1x1x128xf32> to vector<1x128xf32>
    %378 = vector.shape_cast %375 : vector<1x128xf32> to vector<1x1x128xf32>
    tpu.vector_store %arg7[%c0_167, %c20, %c0_168], %378 {strides = array<i32>} : memref<1x56x128xf32, #tpu.memory_space<vmem>>, vector<1x1x128xf32>,
    %379 = vector.extract_strided_slice %3 {offsets = [0, 21], sizes = [16, 1], strides = [1, 1]} : vector<16x56xf32> to vector<16x1xf32>
    %cst_169 = arith.constant 0.000000e+00 : f32
    %380 = vector.broadcast %cst_169 : f32 to vector<16x1xf32>
    %381 = arith.cmpf ogt, %379, %380 : vector<16x1xf32>
    %cst_170 = arith.constant -3.400000e+38 : f32
    %382 = vector.shape_cast %381 : vector<16x1xi1> to vector<16x1xi1>
    %383 = vector.broadcast %382 : vector<16x1xi1> to vector<16x128xi1>
    %384 = vector.broadcast %cst_170 : f32 to vector<16x128xf32>
    %385 = arith.select %383, %1, %384 : vector<16x128xi1>, vector<16x128xf32>
    %cst_171 = arith.constant dense<0xFF800000> : vector<128xf32>
    %386 = vector.multi_reduction <maximumf>, %385, %cst_171 [0] : vector<16x128xf32> to vector<128xf32>
    %387 = vector.shape_cast %386 : vector<128xf32> to vector<1x128xf32>
    %388 = vector.extract_strided_slice %4 {offsets = [21, 0], sizes = [1, 1], strides = [1, 1]} : vector<56x1xf32> to vector<1x1xf32>
    %389 = vector.extract %388[0, 0] : f32 from vector<1x1xf32>
    %cst_172 = arith.constant 0.000000e+00 : f32
    %390 = arith.cmpf ogt, %389, %cst_172 : f32
    %cst_173 = arith.constant 0.000000e+00 : f32
    %391 = vector.broadcast %cst_173 : f32 to vector<1x128xf32>
    %392 = arith.select %390, %387, %391 : vector<1x128xf32>
    %c0_174 = arith.constant 0 : index
    %c21 = arith.constant 21 : index
    %c0_175 = arith.constant 0 : index
    %393 = vector.load %arg7[%c0_174, %c21, %c0_175] : memref<1x56x128xf32, #tpu.memory_space<vmem>>, vector<1x1x128xf32>
    %394 = vector.shape_cast %393 : vector<1x1x128xf32> to vector<1x128xf32>
    %395 = vector.shape_cast %392 : vector<1x128xf32> to vector<1x1x128xf32>
    tpu.vector_store %arg7[%c0_174, %c21, %c0_175], %395 {strides = array<i32>} : memref<1x56x128xf32, #tpu.memory_space<vmem>>, vector<1x1x128xf32>,
    %396 = vector.extract_strided_slice %3 {offsets = [0, 22], sizes = [16, 1], strides = [1, 1]} : vector<16x56xf32> to vector<16x1xf32>
    %cst_176 = arith.constant 0.000000e+00 : f32
    %397 = vector.broadcast %cst_176 : f32 to vector<16x1xf32>
    %398 = arith.cmpf ogt, %396, %397 : vector<16x1xf32>
    %cst_177 = arith.constant -3.400000e+38 : f32
    %399 = vector.shape_cast %398 : vector<16x1xi1> to vector<16x1xi1>
    %400 = vector.broadcast %399 : vector<16x1xi1> to vector<16x128xi1>
    %401 = vector.broadcast %cst_177 : f32 to vector<16x128xf32>
    %402 = arith.select %400, %1, %401 : vector<16x128xi1>, vector<16x128xf32>
    %cst_178 = arith.constant dense<0xFF800000> : vector<128xf32>
    %403 = vector.multi_reduction <maximumf>, %402, %cst_178 [0] : vector<16x128xf32> to vector<128xf32>
    %404 = vector.shape_cast %403 : vector<128xf32> to vector<1x128xf32>
    %405 = vector.extract_strided_slice %4 {offsets = [22, 0], sizes = [1, 1], strides = [1, 1]} : vector<56x1xf32> to vector<1x1xf32>
    %406 = vector.extract %405[0, 0] : f32 from vector<1x1xf32>
    %cst_179 = arith.constant 0.000000e+00 : f32
    %407 = arith.cmpf ogt, %406, %cst_179 : f32
    %cst_180 = arith.constant 0.000000e+00 : f32
    %408 = vector.broadcast %cst_180 : f32 to vector<1x128xf32>
    %409 = arith.select %407, %404, %408 : vector<1x128xf32>
    %c0_181 = arith.constant 0 : index
    %c22 = arith.constant 22 : index
    %c0_182 = arith.constant 0 : index
    %410 = vector.load %arg7[%c0_181, %c22, %c0_182] : memref<1x56x128xf32, #tpu.memory_space<vmem>>, vector<1x1x128xf32>
    %411 = vector.shape_cast %410 : vector<1x1x128xf32> to vector<1x128xf32>
    %412 = vector.shape_cast %409 : vector<1x128xf32> to vector<1x1x128xf32>
    tpu.vector_store %arg7[%c0_181, %c22, %c0_182], %412 {strides = array<i32>} : memref<1x56x128xf32, #tpu.memory_space<vmem>>, vector<1x1x128xf32>,
    %413 = vector.extract_strided_slice %3 {offsets = [0, 23], sizes = [16, 1], strides = [1, 1]} : vector<16x56xf32> to vector<16x1xf32>
    %cst_183 = arith.constant 0.000000e+00 : f32
    %414 = vector.broadcast %cst_183 : f32 to vector<16x1xf32>
    %415 = arith.cmpf ogt, %413, %414 : vector<16x1xf32>
    %cst_184 = arith.constant -3.400000e+38 : f32
    %416 = vector.shape_cast %415 : vector<16x1xi1> to vector<16x1xi1>
    %417 = vector.broadcast %416 : vector<16x1xi1> to vector<16x128xi1>
    %418 = vector.broadcast %cst_184 : f32 to vector<16x128xf32>
    %419 = arith.select %417, %1, %418 : vector<16x128xi1>, vector<16x128xf32>
    %cst_185 = arith.constant dense<0xFF800000> : vector<128xf32>
    %420 = vector.multi_reduction <maximumf>, %419, %cst_185 [0] : vector<16x128xf32> to vector<128xf32>
    %421 = vector.shape_cast %420 : vector<128xf32> to vector<1x128xf32>
    %422 = vector.extract_strided_slice %4 {offsets = [23, 0], sizes = [1, 1], strides = [1, 1]} : vector<56x1xf32> to vector<1x1xf32>
    %423 = vector.extract %422[0, 0] : f32 from vector<1x1xf32>
    %cst_186 = arith.constant 0.000000e+00 : f32
    %424 = arith.cmpf ogt, %423, %cst_186 : f32
    %cst_187 = arith.constant 0.000000e+00 : f32
    %425 = vector.broadcast %cst_187 : f32 to vector<1x128xf32>
    %426 = arith.select %424, %421, %425 : vector<1x128xf32>
    %c0_188 = arith.constant 0 : index
    %c23 = arith.constant 23 : index
    %c0_189 = arith.constant 0 : index
    %427 = vector.load %arg7[%c0_188, %c23, %c0_189] : memref<1x56x128xf32, #tpu.memory_space<vmem>>, vector<1x1x128xf32>
    %428 = vector.shape_cast %427 : vector<1x1x128xf32> to vector<1x128xf32>
    %429 = vector.shape_cast %426 : vector<1x128xf32> to vector<1x1x128xf32>
    tpu.vector_store %arg7[%c0_188, %c23, %c0_189], %429 {strides = array<i32>} : memref<1x56x128xf32, #tpu.memory_space<vmem>>, vector<1x1x128xf32>,
    %430 = vector.extract_strided_slice %3 {offsets = [0, 24], sizes = [16, 1], strides = [1, 1]} : vector<16x56xf32> to vector<16x1xf32>
    %cst_190 = arith.constant 0.000000e+00 : f32
    %431 = vector.broadcast %cst_190 : f32 to vector<16x1xf32>
    %432 = arith.cmpf ogt, %430, %431 : vector<16x1xf32>
    %cst_191 = arith.constant -3.400000e+38 : f32
    %433 = vector.shape_cast %432 : vector<16x1xi1> to vector<16x1xi1>
    %434 = vector.broadcast %433 : vector<16x1xi1> to vector<16x128xi1>
    %435 = vector.broadcast %cst_191 : f32 to vector<16x128xf32>
    %436 = arith.select %434, %1, %435 : vector<16x128xi1>, vector<16x128xf32>
    %cst_192 = arith.constant dense<0xFF800000> : vector<128xf32>
    %437 = vector.multi_reduction <maximumf>, %436, %cst_192 [0] : vector<16x128xf32> to vector<128xf32>
    %438 = vector.shape_cast %437 : vector<128xf32> to vector<1x128xf32>
    %439 = vector.extract_strided_slice %4 {offsets = [24, 0], sizes = [1, 1], strides = [1, 1]} : vector<56x1xf32> to vector<1x1xf32>
    %440 = vector.extract %439[0, 0] : f32 from vector<1x1xf32>
    %cst_193 = arith.constant 0.000000e+00 : f32
    %441 = arith.cmpf ogt, %440, %cst_193 : f32
    %cst_194 = arith.constant 0.000000e+00 : f32
    %442 = vector.broadcast %cst_194 : f32 to vector<1x128xf32>
    %443 = arith.select %441, %438, %442 : vector<1x128xf32>
    %c0_195 = arith.constant 0 : index
    %c24 = arith.constant 24 : index
    %c0_196 = arith.constant 0 : index
    %444 = vector.load %arg7[%c0_195, %c24, %c0_196] : memref<1x56x128xf32, #tpu.memory_space<vmem>>, vector<1x1x128xf32>
    %445 = vector.shape_cast %444 : vector<1x1x128xf32> to vector<1x128xf32>
    %446 = vector.shape_cast %443 : vector<1x128xf32> to vector<1x1x128xf32>
    tpu.vector_store %arg7[%c0_195, %c24, %c0_196], %446 {strides = array<i32>} : memref<1x56x128xf32, #tpu.memory_space<vmem>>, vector<1x1x128xf32>,
    %447 = vector.extract_strided_slice %3 {offsets = [0, 25], sizes = [16, 1], strides = [1, 1]} : vector<16x56xf32> to vector<16x1xf32>
    %cst_197 = arith.constant 0.000000e+00 : f32
    %448 = vector.broadcast %cst_197 : f32 to vector<16x1xf32>
    %449 = arith.cmpf ogt, %447, %448 : vector<16x1xf32>
    %cst_198 = arith.constant -3.400000e+38 : f32
    %450 = vector.shape_cast %449 : vector<16x1xi1> to vector<16x1xi1>
    %451 = vector.broadcast %450 : vector<16x1xi1> to vector<16x128xi1>
    %452 = vector.broadcast %cst_198 : f32 to vector<16x128xf32>
    %453 = arith.select %451, %1, %452 : vector<16x128xi1>, vector<16x128xf32>
    %cst_199 = arith.constant dense<0xFF800000> : vector<128xf32>
    %454 = vector.multi_reduction <maximumf>, %453, %cst_199 [0] : vector<16x128xf32> to vector<128xf32>
    %455 = vector.shape_cast %454 : vector<128xf32> to vector<1x128xf32>
    %456 = vector.extract_strided_slice %4 {offsets = [25, 0], sizes = [1, 1], strides = [1, 1]} : vector<56x1xf32> to vector<1x1xf32>
    %457 = vector.extract %456[0, 0] : f32 from vector<1x1xf32>
    %cst_200 = arith.constant 0.000000e+00 : f32
    %458 = arith.cmpf ogt, %457, %cst_200 : f32
    %cst_201 = arith.constant 0.000000e+00 : f32
    %459 = vector.broadcast %cst_201 : f32 to vector<1x128xf32>
    %460 = arith.select %458, %455, %459 : vector<1x128xf32>
    %c0_202 = arith.constant 0 : index
    %c25 = arith.constant 25 : index
    %c0_203 = arith.constant 0 : index
    %461 = vector.load %arg7[%c0_202, %c25, %c0_203] : memref<1x56x128xf32, #tpu.memory_space<vmem>>, vector<1x1x128xf32>
    %462 = vector.shape_cast %461 : vector<1x1x128xf32> to vector<1x128xf32>
    %463 = vector.shape_cast %460 : vector<1x128xf32> to vector<1x1x128xf32>
    tpu.vector_store %arg7[%c0_202, %c25, %c0_203], %463 {strides = array<i32>} : memref<1x56x128xf32, #tpu.memory_space<vmem>>, vector<1x1x128xf32>,
    %464 = vector.extract_strided_slice %3 {offsets = [0, 26], sizes = [16, 1], strides = [1, 1]} : vector<16x56xf32> to vector<16x1xf32>
    %cst_204 = arith.constant 0.000000e+00 : f32
    %465 = vector.broadcast %cst_204 : f32 to vector<16x1xf32>
    %466 = arith.cmpf ogt, %464, %465 : vector<16x1xf32>
    %cst_205 = arith.constant -3.400000e+38 : f32
    %467 = vector.shape_cast %466 : vector<16x1xi1> to vector<16x1xi1>
    %468 = vector.broadcast %467 : vector<16x1xi1> to vector<16x128xi1>
    %469 = vector.broadcast %cst_205 : f32 to vector<16x128xf32>
    %470 = arith.select %468, %1, %469 : vector<16x128xi1>, vector<16x128xf32>
    %cst_206 = arith.constant dense<0xFF800000> : vector<128xf32>
    %471 = vector.multi_reduction <maximumf>, %470, %cst_206 [0] : vector<16x128xf32> to vector<128xf32>
    %472 = vector.shape_cast %471 : vector<128xf32> to vector<1x128xf32>
    %473 = vector.extract_strided_slice %4 {offsets = [26, 0], sizes = [1, 1], strides = [1, 1]} : vector<56x1xf32> to vector<1x1xf32>
    %474 = vector.extract %473[0, 0] : f32 from vector<1x1xf32>
    %cst_207 = arith.constant 0.000000e+00 : f32
    %475 = arith.cmpf ogt, %474, %cst_207 : f32
    %cst_208 = arith.constant 0.000000e+00 : f32
    %476 = vector.broadcast %cst_208 : f32 to vector<1x128xf32>
    %477 = arith.select %475, %472, %476 : vector<1x128xf32>
    %c0_209 = arith.constant 0 : index
    %c26 = arith.constant 26 : index
    %c0_210 = arith.constant 0 : index
    %478 = vector.load %arg7[%c0_209, %c26, %c0_210] : memref<1x56x128xf32, #tpu.memory_space<vmem>>, vector<1x1x128xf32>
    %479 = vector.shape_cast %478 : vector<1x1x128xf32> to vector<1x128xf32>
    %480 = vector.shape_cast %477 : vector<1x128xf32> to vector<1x1x128xf32>
    tpu.vector_store %arg7[%c0_209, %c26, %c0_210], %480 {strides = array<i32>} : memref<1x56x128xf32, #tpu.memory_space<vmem>>, vector<1x1x128xf32>,
    %481 = vector.extract_strided_slice %3 {offsets = [0, 27], sizes = [16, 1], strides = [1, 1]} : vector<16x56xf32> to vector<16x1xf32>
    %cst_211 = arith.constant 0.000000e+00 : f32
    %482 = vector.broadcast %cst_211 : f32 to vector<16x1xf32>
    %483 = arith.cmpf ogt, %481, %482 : vector<16x1xf32>
    %cst_212 = arith.constant -3.400000e+38 : f32
    %484 = vector.shape_cast %483 : vector<16x1xi1> to vector<16x1xi1>
    %485 = vector.broadcast %484 : vector<16x1xi1> to vector<16x128xi1>
    %486 = vector.broadcast %cst_212 : f32 to vector<16x128xf32>
    %487 = arith.select %485, %1, %486 : vector<16x128xi1>, vector<16x128xf32>
    %cst_213 = arith.constant dense<0xFF800000> : vector<128xf32>
    %488 = vector.multi_reduction <maximumf>, %487, %cst_213 [0] : vector<16x128xf32> to vector<128xf32>
    %489 = vector.shape_cast %488 : vector<128xf32> to vector<1x128xf32>
    %490 = vector.extract_strided_slice %4 {offsets = [27, 0], sizes = [1, 1], strides = [1, 1]} : vector<56x1xf32> to vector<1x1xf32>
    %491 = vector.extract %490[0, 0] : f32 from vector<1x1xf32>
    %cst_214 = arith.constant 0.000000e+00 : f32
    %492 = arith.cmpf ogt, %491, %cst_214 : f32
    %cst_215 = arith.constant 0.000000e+00 : f32
    %493 = vector.broadcast %cst_215 : f32 to vector<1x128xf32>
    %494 = arith.select %492, %489, %493 : vector<1x128xf32>
    %c0_216 = arith.constant 0 : index
    %c27 = arith.constant 27 : index
    %c0_217 = arith.constant 0 : index
    %495 = vector.load %arg7[%c0_216, %c27, %c0_217] : memref<1x56x128xf32, #tpu.memory_space<vmem>>, vector<1x1x128xf32>
    %496 = vector.shape_cast %495 : vector<1x1x128xf32> to vector<1x128xf32>
    %497 = vector.shape_cast %494 : vector<1x128xf32> to vector<1x1x128xf32>
    tpu.vector_store %arg7[%c0_216, %c27, %c0_217], %497 {strides = array<i32>} : memref<1x56x128xf32, #tpu.memory_space<vmem>>, vector<1x1x128xf32>,
    %498 = vector.extract_strided_slice %3 {offsets = [0, 28], sizes = [16, 1], strides = [1, 1]} : vector<16x56xf32> to vector<16x1xf32>
    %cst_218 = arith.constant 0.000000e+00 : f32
    %499 = vector.broadcast %cst_218 : f32 to vector<16x1xf32>
    %500 = arith.cmpf ogt, %498, %499 : vector<16x1xf32>
    %cst_219 = arith.constant -3.400000e+38 : f32
    %501 = vector.shape_cast %500 : vector<16x1xi1> to vector<16x1xi1>
    %502 = vector.broadcast %501 : vector<16x1xi1> to vector<16x128xi1>
    %503 = vector.broadcast %cst_219 : f32 to vector<16x128xf32>
    %504 = arith.select %502, %1, %503 : vector<16x128xi1>, vector<16x128xf32>
    %cst_220 = arith.constant dense<0xFF800000> : vector<128xf32>
    %505 = vector.multi_reduction <maximumf>, %504, %cst_220 [0] : vector<16x128xf32> to vector<128xf32>
    %506 = vector.shape_cast %505 : vector<128xf32> to vector<1x128xf32>
    %507 = vector.extract_strided_slice %4 {offsets = [28, 0], sizes = [1, 1], strides = [1, 1]} : vector<56x1xf32> to vector<1x1xf32>
    %508 = vector.extract %507[0, 0] : f32 from vector<1x1xf32>
    %cst_221 = arith.constant 0.000000e+00 : f32
    %509 = arith.cmpf ogt, %508, %cst_221 : f32
    %cst_222 = arith.constant 0.000000e+00 : f32
    %510 = vector.broadcast %cst_222 : f32 to vector<1x128xf32>
    %511 = arith.select %509, %506, %510 : vector<1x128xf32>
    %c0_223 = arith.constant 0 : index
    %c28 = arith.constant 28 : index
    %c0_224 = arith.constant 0 : index
    %512 = vector.load %arg7[%c0_223, %c28, %c0_224] : memref<1x56x128xf32, #tpu.memory_space<vmem>>, vector<1x1x128xf32>
    %513 = vector.shape_cast %512 : vector<1x1x128xf32> to vector<1x128xf32>
    %514 = vector.shape_cast %511 : vector<1x128xf32> to vector<1x1x128xf32>
    tpu.vector_store %arg7[%c0_223, %c28, %c0_224], %514 {strides = array<i32>} : memref<1x56x128xf32, #tpu.memory_space<vmem>>, vector<1x1x128xf32>,
    %515 = vector.extract_strided_slice %3 {offsets = [0, 29], sizes = [16, 1], strides = [1, 1]} : vector<16x56xf32> to vector<16x1xf32>
    %cst_225 = arith.constant 0.000000e+00 : f32
    %516 = vector.broadcast %cst_225 : f32 to vector<16x1xf32>
    %517 = arith.cmpf ogt, %515, %516 : vector<16x1xf32>
    %cst_226 = arith.constant -3.400000e+38 : f32
    %518 = vector.shape_cast %517 : vector<16x1xi1> to vector<16x1xi1>
    %519 = vector.broadcast %518 : vector<16x1xi1> to vector<16x128xi1>
    %520 = vector.broadcast %cst_226 : f32 to vector<16x128xf32>
    %521 = arith.select %519, %1, %520 : vector<16x128xi1>, vector<16x128xf32>
    %cst_227 = arith.constant dense<0xFF800000> : vector<128xf32>
    %522 = vector.multi_reduction <maximumf>, %521, %cst_227 [0] : vector<16x128xf32> to vector<128xf32>
    %523 = vector.shape_cast %522 : vector<128xf32> to vector<1x128xf32>
    %524 = vector.extract_strided_slice %4 {offsets = [29, 0], sizes = [1, 1], strides = [1, 1]} : vector<56x1xf32> to vector<1x1xf32>
    %525 = vector.extract %524[0, 0] : f32 from vector<1x1xf32>
    %cst_228 = arith.constant 0.000000e+00 : f32
    %526 = arith.cmpf ogt, %525, %cst_228 : f32
    %cst_229 = arith.constant 0.000000e+00 : f32
    %527 = vector.broadcast %cst_229 : f32 to vector<1x128xf32>
    %528 = arith.select %526, %523, %527 : vector<1x128xf32>
    %c0_230 = arith.constant 0 : index
    %c29 = arith.constant 29 : index
    %c0_231 = arith.constant 0 : index
    %529 = vector.load %arg7[%c0_230, %c29, %c0_231] : memref<1x56x128xf32, #tpu.memory_space<vmem>>, vector<1x1x128xf32>
    %530 = vector.shape_cast %529 : vector<1x1x128xf32> to vector<1x128xf32>
    %531 = vector.shape_cast %528 : vector<1x128xf32> to vector<1x1x128xf32>
    tpu.vector_store %arg7[%c0_230, %c29, %c0_231], %531 {strides = array<i32>} : memref<1x56x128xf32, #tpu.memory_space<vmem>>, vector<1x1x128xf32>,
    %532 = vector.extract_strided_slice %3 {offsets = [0, 30], sizes = [16, 1], strides = [1, 1]} : vector<16x56xf32> to vector<16x1xf32>
    %cst_232 = arith.constant 0.000000e+00 : f32
    %533 = vector.broadcast %cst_232 : f32 to vector<16x1xf32>
    %534 = arith.cmpf ogt, %532, %533 : vector<16x1xf32>
    %cst_233 = arith.constant -3.400000e+38 : f32
    %535 = vector.shape_cast %534 : vector<16x1xi1> to vector<16x1xi1>
    %536 = vector.broadcast %535 : vector<16x1xi1> to vector<16x128xi1>
    %537 = vector.broadcast %cst_233 : f32 to vector<16x128xf32>
    %538 = arith.select %536, %1, %537 : vector<16x128xi1>, vector<16x128xf32>
    %cst_234 = arith.constant dense<0xFF800000> : vector<128xf32>
    %539 = vector.multi_reduction <maximumf>, %538, %cst_234 [0] : vector<16x128xf32> to vector<128xf32>
    %540 = vector.shape_cast %539 : vector<128xf32> to vector<1x128xf32>
    %541 = vector.extract_strided_slice %4 {offsets = [30, 0], sizes = [1, 1], strides = [1, 1]} : vector<56x1xf32> to vector<1x1xf32>
    %542 = vector.extract %541[0, 0] : f32 from vector<1x1xf32>
    %cst_235 = arith.constant 0.000000e+00 : f32
    %543 = arith.cmpf ogt, %542, %cst_235 : f32
    %cst_236 = arith.constant 0.000000e+00 : f32
    %544 = vector.broadcast %cst_236 : f32 to vector<1x128xf32>
    %545 = arith.select %543, %540, %544 : vector<1x128xf32>
    %c0_237 = arith.constant 0 : index
    %c30 = arith.constant 30 : index
    %c0_238 = arith.constant 0 : index
    %546 = vector.load %arg7[%c0_237, %c30, %c0_238] : memref<1x56x128xf32, #tpu.memory_space<vmem>>, vector<1x1x128xf32>
    %547 = vector.shape_cast %546 : vector<1x1x128xf32> to vector<1x128xf32>
    %548 = vector.shape_cast %545 : vector<1x128xf32> to vector<1x1x128xf32>
    tpu.vector_store %arg7[%c0_237, %c30, %c0_238], %548 {strides = array<i32>} : memref<1x56x128xf32, #tpu.memory_space<vmem>>, vector<1x1x128xf32>,
    %549 = vector.extract_strided_slice %3 {offsets = [0, 31], sizes = [16, 1], strides = [1, 1]} : vector<16x56xf32> to vector<16x1xf32>
    %cst_239 = arith.constant 0.000000e+00 : f32
    %550 = vector.broadcast %cst_239 : f32 to vector<16x1xf32>
    %551 = arith.cmpf ogt, %549, %550 : vector<16x1xf32>
    %cst_240 = arith.constant -3.400000e+38 : f32
    %552 = vector.shape_cast %551 : vector<16x1xi1> to vector<16x1xi1>
    %553 = vector.broadcast %552 : vector<16x1xi1> to vector<16x128xi1>
    %554 = vector.broadcast %cst_240 : f32 to vector<16x128xf32>
    %555 = arith.select %553, %1, %554 : vector<16x128xi1>, vector<16x128xf32>
    %cst_241 = arith.constant dense<0xFF800000> : vector<128xf32>
    %556 = vector.multi_reduction <maximumf>, %555, %cst_241 [0] : vector<16x128xf32> to vector<128xf32>
    %557 = vector.shape_cast %556 : vector<128xf32> to vector<1x128xf32>
    %558 = vector.extract_strided_slice %4 {offsets = [31, 0], sizes = [1, 1], strides = [1, 1]} : vector<56x1xf32> to vector<1x1xf32>
    %559 = vector.extract %558[0, 0] : f32 from vector<1x1xf32>
    %cst_242 = arith.constant 0.000000e+00 : f32
    %560 = arith.cmpf ogt, %559, %cst_242 : f32
    %cst_243 = arith.constant 0.000000e+00 : f32
    %561 = vector.broadcast %cst_243 : f32 to vector<1x128xf32>
    %562 = arith.select %560, %557, %561 : vector<1x128xf32>
    %c0_244 = arith.constant 0 : index
    %c31 = arith.constant 31 : index
    %c0_245 = arith.constant 0 : index
    %563 = vector.load %arg7[%c0_244, %c31, %c0_245] : memref<1x56x128xf32, #tpu.memory_space<vmem>>, vector<1x1x128xf32>
    %564 = vector.shape_cast %563 : vector<1x1x128xf32> to vector<1x128xf32>
    %565 = vector.shape_cast %562 : vector<1x128xf32> to vector<1x1x128xf32>
    tpu.vector_store %arg7[%c0_244, %c31, %c0_245], %565 {strides = array<i32>} : memref<1x56x128xf32, #tpu.memory_space<vmem>>, vector<1x1x128xf32>,
    %566 = vector.extract_strided_slice %3 {offsets = [0, 32], sizes = [16, 1], strides = [1, 1]} : vector<16x56xf32> to vector<16x1xf32>
    %cst_246 = arith.constant 0.000000e+00 : f32
    %567 = vector.broadcast %cst_246 : f32 to vector<16x1xf32>
    %568 = arith.cmpf ogt, %566, %567 : vector<16x1xf32>
    %cst_247 = arith.constant -3.400000e+38 : f32
    %569 = vector.shape_cast %568 : vector<16x1xi1> to vector<16x1xi1>
    %570 = vector.broadcast %569 : vector<16x1xi1> to vector<16x128xi1>
    %571 = vector.broadcast %cst_247 : f32 to vector<16x128xf32>
    %572 = arith.select %570, %1, %571 : vector<16x128xi1>, vector<16x128xf32>
    %cst_248 = arith.constant dense<0xFF800000> : vector<128xf32>
    %573 = vector.multi_reduction <maximumf>, %572, %cst_248 [0] : vector<16x128xf32> to vector<128xf32>
    %574 = vector.shape_cast %573 : vector<128xf32> to vector<1x128xf32>
    %575 = vector.extract_strided_slice %4 {offsets = [32, 0], sizes = [1, 1], strides = [1, 1]} : vector<56x1xf32> to vector<1x1xf32>
    %576 = vector.extract %575[0, 0] : f32 from vector<1x1xf32>
    %cst_249 = arith.constant 0.000000e+00 : f32
    %577 = arith.cmpf ogt, %576, %cst_249 : f32
    %cst_250 = arith.constant 0.000000e+00 : f32
    %578 = vector.broadcast %cst_250 : f32 to vector<1x128xf32>
    %579 = arith.select %577, %574, %578 : vector<1x128xf32>
    %c0_251 = arith.constant 0 : index
    %c32 = arith.constant 32 : index
    %c0_252 = arith.constant 0 : index
    %580 = vector.load %arg7[%c0_251, %c32, %c0_252] : memref<1x56x128xf32, #tpu.memory_space<vmem>>, vector<1x1x128xf32>
    %581 = vector.shape_cast %580 : vector<1x1x128xf32> to vector<1x128xf32>
    %582 = vector.shape_cast %579 : vector<1x128xf32> to vector<1x1x128xf32>
    tpu.vector_store %arg7[%c0_251, %c32, %c0_252], %582 {strides = array<i32>} : memref<1x56x128xf32, #tpu.memory_space<vmem>>, vector<1x1x128xf32>,
    %583 = vector.extract_strided_slice %3 {offsets = [0, 33], sizes = [16, 1], strides = [1, 1]} : vector<16x56xf32> to vector<16x1xf32>
    %cst_253 = arith.constant 0.000000e+00 : f32
    %584 = vector.broadcast %cst_253 : f32 to vector<16x1xf32>
    %585 = arith.cmpf ogt, %583, %584 : vector<16x1xf32>
    %cst_254 = arith.constant -3.400000e+38 : f32
    %586 = vector.shape_cast %585 : vector<16x1xi1> to vector<16x1xi1>
    %587 = vector.broadcast %586 : vector<16x1xi1> to vector<16x128xi1>
    %588 = vector.broadcast %cst_254 : f32 to vector<16x128xf32>
    %589 = arith.select %587, %1, %588 : vector<16x128xi1>, vector<16x128xf32>
    %cst_255 = arith.constant dense<0xFF800000> : vector<128xf32>
    %590 = vector.multi_reduction <maximumf>, %589, %cst_255 [0] : vector<16x128xf32> to vector<128xf32>
    %591 = vector.shape_cast %590 : vector<128xf32> to vector<1x128xf32>
    %592 = vector.extract_strided_slice %4 {offsets = [33, 0], sizes = [1, 1], strides = [1, 1]} : vector<56x1xf32> to vector<1x1xf32>
    %593 = vector.extract %592[0, 0] : f32 from vector<1x1xf32>
    %cst_256 = arith.constant 0.000000e+00 : f32
    %594 = arith.cmpf ogt, %593, %cst_256 : f32
    %cst_257 = arith.constant 0.000000e+00 : f32
    %595 = vector.broadcast %cst_257 : f32 to vector<1x128xf32>
    %596 = arith.select %594, %591, %595 : vector<1x128xf32>
    %c0_258 = arith.constant 0 : index
    %c33 = arith.constant 33 : index
    %c0_259 = arith.constant 0 : index
    %597 = vector.load %arg7[%c0_258, %c33, %c0_259] : memref<1x56x128xf32, #tpu.memory_space<vmem>>, vector<1x1x128xf32>
    %598 = vector.shape_cast %597 : vector<1x1x128xf32> to vector<1x128xf32>
    %599 = vector.shape_cast %596 : vector<1x128xf32> to vector<1x1x128xf32>
    tpu.vector_store %arg7[%c0_258, %c33, %c0_259], %599 {strides = array<i32>} : memref<1x56x128xf32, #tpu.memory_space<vmem>>, vector<1x1x128xf32>,
    %600 = vector.extract_strided_slice %3 {offsets = [0, 34], sizes = [16, 1], strides = [1, 1]} : vector<16x56xf32> to vector<16x1xf32>
    %cst_260 = arith.constant 0.000000e+00 : f32
    %601 = vector.broadcast %cst_260 : f32 to vector<16x1xf32>
    %602 = arith.cmpf ogt, %600, %601 : vector<16x1xf32>
    %cst_261 = arith.constant -3.400000e+38 : f32
    %603 = vector.shape_cast %602 : vector<16x1xi1> to vector<16x1xi1>
    %604 = vector.broadcast %603 : vector<16x1xi1> to vector<16x128xi1>
    %605 = vector.broadcast %cst_261 : f32 to vector<16x128xf32>
    %606 = arith.select %604, %1, %605 : vector<16x128xi1>, vector<16x128xf32>
    %cst_262 = arith.constant dense<0xFF800000> : vector<128xf32>
    %607 = vector.multi_reduction <maximumf>, %606, %cst_262 [0] : vector<16x128xf32> to vector<128xf32>
    %608 = vector.shape_cast %607 : vector<128xf32> to vector<1x128xf32>
    %609 = vector.extract_strided_slice %4 {offsets = [34, 0], sizes = [1, 1], strides = [1, 1]} : vector<56x1xf32> to vector<1x1xf32>
    %610 = vector.extract %609[0, 0] : f32 from vector<1x1xf32>
    %cst_263 = arith.constant 0.000000e+00 : f32
    %611 = arith.cmpf ogt, %610, %cst_263 : f32
    %cst_264 = arith.constant 0.000000e+00 : f32
    %612 = vector.broadcast %cst_264 : f32 to vector<1x128xf32>
    %613 = arith.select %611, %608, %612 : vector<1x128xf32>
    %c0_265 = arith.constant 0 : index
    %c34 = arith.constant 34 : index
    %c0_266 = arith.constant 0 : index
    %614 = vector.load %arg7[%c0_265, %c34, %c0_266] : memref<1x56x128xf32, #tpu.memory_space<vmem>>, vector<1x1x128xf32>
    %615 = vector.shape_cast %614 : vector<1x1x128xf32> to vector<1x128xf32>
    %616 = vector.shape_cast %613 : vector<1x128xf32> to vector<1x1x128xf32>
    tpu.vector_store %arg7[%c0_265, %c34, %c0_266], %616 {strides = array<i32>} : memref<1x56x128xf32, #tpu.memory_space<vmem>>, vector<1x1x128xf32>,
    %617 = vector.extract_strided_slice %3 {offsets = [0, 35], sizes = [16, 1], strides = [1, 1]} : vector<16x56xf32> to vector<16x1xf32>
    %cst_267 = arith.constant 0.000000e+00 : f32
    %618 = vector.broadcast %cst_267 : f32 to vector<16x1xf32>
    %619 = arith.cmpf ogt, %617, %618 : vector<16x1xf32>
    %cst_268 = arith.constant -3.400000e+38 : f32
    %620 = vector.shape_cast %619 : vector<16x1xi1> to vector<16x1xi1>
    %621 = vector.broadcast %620 : vector<16x1xi1> to vector<16x128xi1>
    %622 = vector.broadcast %cst_268 : f32 to vector<16x128xf32>
    %623 = arith.select %621, %1, %622 : vector<16x128xi1>, vector<16x128xf32>
    %cst_269 = arith.constant dense<0xFF800000> : vector<128xf32>
    %624 = vector.multi_reduction <maximumf>, %623, %cst_269 [0] : vector<16x128xf32> to vector<128xf32>
    %625 = vector.shape_cast %624 : vector<128xf32> to vector<1x128xf32>
    %626 = vector.extract_strided_slice %4 {offsets = [35, 0], sizes = [1, 1], strides = [1, 1]} : vector<56x1xf32> to vector<1x1xf32>
    %627 = vector.extract %626[0, 0] : f32 from vector<1x1xf32>
    %cst_270 = arith.constant 0.000000e+00 : f32
    %628 = arith.cmpf ogt, %627, %cst_270 : f32
    %cst_271 = arith.constant 0.000000e+00 : f32
    %629 = vector.broadcast %cst_271 : f32 to vector<1x128xf32>
    %630 = arith.select %628, %625, %629 : vector<1x128xf32>
    %c0_272 = arith.constant 0 : index
    %c35 = arith.constant 35 : index
    %c0_273 = arith.constant 0 : index
    %631 = vector.load %arg7[%c0_272, %c35, %c0_273] : memref<1x56x128xf32, #tpu.memory_space<vmem>>, vector<1x1x128xf32>
    %632 = vector.shape_cast %631 : vector<1x1x128xf32> to vector<1x128xf32>
    %633 = vector.shape_cast %630 : vector<1x128xf32> to vector<1x1x128xf32>
    tpu.vector_store %arg7[%c0_272, %c35, %c0_273], %633 {strides = array<i32>} : memref<1x56x128xf32, #tpu.memory_space<vmem>>, vector<1x1x128xf32>,
    %634 = vector.extract_strided_slice %3 {offsets = [0, 36], sizes = [16, 1], strides = [1, 1]} : vector<16x56xf32> to vector<16x1xf32>
    %cst_274 = arith.constant 0.000000e+00 : f32
    %635 = vector.broadcast %cst_274 : f32 to vector<16x1xf32>
    %636 = arith.cmpf ogt, %634, %635 : vector<16x1xf32>
    %cst_275 = arith.constant -3.400000e+38 : f32
    %637 = vector.shape_cast %636 : vector<16x1xi1> to vector<16x1xi1>
    %638 = vector.broadcast %637 : vector<16x1xi1> to vector<16x128xi1>
    %639 = vector.broadcast %cst_275 : f32 to vector<16x128xf32>
    %640 = arith.select %638, %1, %639 : vector<16x128xi1>, vector<16x128xf32>
    %cst_276 = arith.constant dense<0xFF800000> : vector<128xf32>
    %641 = vector.multi_reduction <maximumf>, %640, %cst_276 [0] : vector<16x128xf32> to vector<128xf32>
    %642 = vector.shape_cast %641 : vector<128xf32> to vector<1x128xf32>
    %643 = vector.extract_strided_slice %4 {offsets = [36, 0], sizes = [1, 1], strides = [1, 1]} : vector<56x1xf32> to vector<1x1xf32>
    %644 = vector.extract %643[0, 0] : f32 from vector<1x1xf32>
    %cst_277 = arith.constant 0.000000e+00 : f32
    %645 = arith.cmpf ogt, %644, %cst_277 : f32
    %cst_278 = arith.constant 0.000000e+00 : f32
    %646 = vector.broadcast %cst_278 : f32 to vector<1x128xf32>
    %647 = arith.select %645, %642, %646 : vector<1x128xf32>
    %c0_279 = arith.constant 0 : index
    %c36 = arith.constant 36 : index
    %c0_280 = arith.constant 0 : index
    %648 = vector.load %arg7[%c0_279, %c36, %c0_280] : memref<1x56x128xf32, #tpu.memory_space<vmem>>, vector<1x1x128xf32>
    %649 = vector.shape_cast %648 : vector<1x1x128xf32> to vector<1x128xf32>
    %650 = vector.shape_cast %647 : vector<1x128xf32> to vector<1x1x128xf32>
    tpu.vector_store %arg7[%c0_279, %c36, %c0_280], %650 {strides = array<i32>} : memref<1x56x128xf32, #tpu.memory_space<vmem>>, vector<1x1x128xf32>,
    %651 = vector.extract_strided_slice %3 {offsets = [0, 37], sizes = [16, 1], strides = [1, 1]} : vector<16x56xf32> to vector<16x1xf32>
    %cst_281 = arith.constant 0.000000e+00 : f32
    %652 = vector.broadcast %cst_281 : f32 to vector<16x1xf32>
    %653 = arith.cmpf ogt, %651, %652 : vector<16x1xf32>
    %cst_282 = arith.constant -3.400000e+38 : f32
    %654 = vector.shape_cast %653 : vector<16x1xi1> to vector<16x1xi1>
    %655 = vector.broadcast %654 : vector<16x1xi1> to vector<16x128xi1>
    %656 = vector.broadcast %cst_282 : f32 to vector<16x128xf32>
    %657 = arith.select %655, %1, %656 : vector<16x128xi1>, vector<16x128xf32>
    %cst_283 = arith.constant dense<0xFF800000> : vector<128xf32>
    %658 = vector.multi_reduction <maximumf>, %657, %cst_283 [0] : vector<16x128xf32> to vector<128xf32>
    %659 = vector.shape_cast %658 : vector<128xf32> to vector<1x128xf32>
    %660 = vector.extract_strided_slice %4 {offsets = [37, 0], sizes = [1, 1], strides = [1, 1]} : vector<56x1xf32> to vector<1x1xf32>
    %661 = vector.extract %660[0, 0] : f32 from vector<1x1xf32>
    %cst_284 = arith.constant 0.000000e+00 : f32
    %662 = arith.cmpf ogt, %661, %cst_284 : f32
    %cst_285 = arith.constant 0.000000e+00 : f32
    %663 = vector.broadcast %cst_285 : f32 to vector<1x128xf32>
    %664 = arith.select %662, %659, %663 : vector<1x128xf32>
    %c0_286 = arith.constant 0 : index
    %c37 = arith.constant 37 : index
    %c0_287 = arith.constant 0 : index
    %665 = vector.load %arg7[%c0_286, %c37, %c0_287] : memref<1x56x128xf32, #tpu.memory_space<vmem>>, vector<1x1x128xf32>
    %666 = vector.shape_cast %665 : vector<1x1x128xf32> to vector<1x128xf32>
    %667 = vector.shape_cast %664 : vector<1x128xf32> to vector<1x1x128xf32>
    tpu.vector_store %arg7[%c0_286, %c37, %c0_287], %667 {strides = array<i32>} : memref<1x56x128xf32, #tpu.memory_space<vmem>>, vector<1x1x128xf32>,
    %668 = vector.extract_strided_slice %3 {offsets = [0, 38], sizes = [16, 1], strides = [1, 1]} : vector<16x56xf32> to vector<16x1xf32>
    %cst_288 = arith.constant 0.000000e+00 : f32
    %669 = vector.broadcast %cst_288 : f32 to vector<16x1xf32>
    %670 = arith.cmpf ogt, %668, %669 : vector<16x1xf32>
    %cst_289 = arith.constant -3.400000e+38 : f32
    %671 = vector.shape_cast %670 : vector<16x1xi1> to vector<16x1xi1>
    %672 = vector.broadcast %671 : vector<16x1xi1> to vector<16x128xi1>
    %673 = vector.broadcast %cst_289 : f32 to vector<16x128xf32>
    %674 = arith.select %672, %1, %673 : vector<16x128xi1>, vector<16x128xf32>
    %cst_290 = arith.constant dense<0xFF800000> : vector<128xf32>
    %675 = vector.multi_reduction <maximumf>, %674, %cst_290 [0] : vector<16x128xf32> to vector<128xf32>
    %676 = vector.shape_cast %675 : vector<128xf32> to vector<1x128xf32>
    %677 = vector.extract_strided_slice %4 {offsets = [38, 0], sizes = [1, 1], strides = [1, 1]} : vector<56x1xf32> to vector<1x1xf32>
    %678 = vector.extract %677[0, 0] : f32 from vector<1x1xf32>
    %cst_291 = arith.constant 0.000000e+00 : f32
    %679 = arith.cmpf ogt, %678, %cst_291 : f32
    %cst_292 = arith.constant 0.000000e+00 : f32
    %680 = vector.broadcast %cst_292 : f32 to vector<1x128xf32>
    %681 = arith.select %679, %676, %680 : vector<1x128xf32>
    %c0_293 = arith.constant 0 : index
    %c38 = arith.constant 38 : index
    %c0_294 = arith.constant 0 : index
    %682 = vector.load %arg7[%c0_293, %c38, %c0_294] : memref<1x56x128xf32, #tpu.memory_space<vmem>>, vector<1x1x128xf32>
    %683 = vector.shape_cast %682 : vector<1x1x128xf32> to vector<1x128xf32>
    %684 = vector.shape_cast %681 : vector<1x128xf32> to vector<1x1x128xf32>
    tpu.vector_store %arg7[%c0_293, %c38, %c0_294], %684 {strides = array<i32>} : memref<1x56x128xf32, #tpu.memory_space<vmem>>, vector<1x1x128xf32>,
    %685 = vector.extract_strided_slice %3 {offsets = [0, 39], sizes = [16, 1], strides = [1, 1]} : vector<16x56xf32> to vector<16x1xf32>
    %cst_295 = arith.constant 0.000000e+00 : f32
    %686 = vector.broadcast %cst_295 : f32 to vector<16x1xf32>
    %687 = arith.cmpf ogt, %685, %686 : vector<16x1xf32>
    %cst_296 = arith.constant -3.400000e+38 : f32
    %688 = vector.shape_cast %687 : vector<16x1xi1> to vector<16x1xi1>
    %689 = vector.broadcast %688 : vector<16x1xi1> to vector<16x128xi1>
    %690 = vector.broadcast %cst_296 : f32 to vector<16x128xf32>
    %691 = arith.select %689, %1, %690 : vector<16x128xi1>, vector<16x128xf32>
    %cst_297 = arith.constant dense<0xFF800000> : vector<128xf32>
    %692 = vector.multi_reduction <maximumf>, %691, %cst_297 [0] : vector<16x128xf32> to vector<128xf32>
    %693 = vector.shape_cast %692 : vector<128xf32> to vector<1x128xf32>
    %694 = vector.extract_strided_slice %4 {offsets = [39, 0], sizes = [1, 1], strides = [1, 1]} : vector<56x1xf32> to vector<1x1xf32>
    %695 = vector.extract %694[0, 0] : f32 from vector<1x1xf32>
    %cst_298 = arith.constant 0.000000e+00 : f32
    %696 = arith.cmpf ogt, %695, %cst_298 : f32
    %cst_299 = arith.constant 0.000000e+00 : f32
    %697 = vector.broadcast %cst_299 : f32 to vector<1x128xf32>
    %698 = arith.select %696, %693, %697 : vector<1x128xf32>
    %c0_300 = arith.constant 0 : index
    %c39 = arith.constant 39 : index
    %c0_301 = arith.constant 0 : index
    %699 = vector.load %arg7[%c0_300, %c39, %c0_301] : memref<1x56x128xf32, #tpu.memory_space<vmem>>, vector<1x1x128xf32>
    %700 = vector.shape_cast %699 : vector<1x1x128xf32> to vector<1x128xf32>
    %701 = vector.shape_cast %698 : vector<1x128xf32> to vector<1x1x128xf32>
    tpu.vector_store %arg7[%c0_300, %c39, %c0_301], %701 {strides = array<i32>} : memref<1x56x128xf32, #tpu.memory_space<vmem>>, vector<1x1x128xf32>,
    %702 = vector.extract_strided_slice %3 {offsets = [0, 40], sizes = [16, 1], strides = [1, 1]} : vector<16x56xf32> to vector<16x1xf32>
    %cst_302 = arith.constant 0.000000e+00 : f32
    %703 = vector.broadcast %cst_302 : f32 to vector<16x1xf32>
    %704 = arith.cmpf ogt, %702, %703 : vector<16x1xf32>
    %cst_303 = arith.constant -3.400000e+38 : f32
    %705 = vector.shape_cast %704 : vector<16x1xi1> to vector<16x1xi1>
    %706 = vector.broadcast %705 : vector<16x1xi1> to vector<16x128xi1>
    %707 = vector.broadcast %cst_303 : f32 to vector<16x128xf32>
    %708 = arith.select %706, %1, %707 : vector<16x128xi1>, vector<16x128xf32>
    %cst_304 = arith.constant dense<0xFF800000> : vector<128xf32>
    %709 = vector.multi_reduction <maximumf>, %708, %cst_304 [0] : vector<16x128xf32> to vector<128xf32>
    %710 = vector.shape_cast %709 : vector<128xf32> to vector<1x128xf32>
    %711 = vector.extract_strided_slice %4 {offsets = [40, 0], sizes = [1, 1], strides = [1, 1]} : vector<56x1xf32> to vector<1x1xf32>
    %712 = vector.extract %711[0, 0] : f32 from vector<1x1xf32>
    %cst_305 = arith.constant 0.000000e+00 : f32
    %713 = arith.cmpf ogt, %712, %cst_305 : f32
    %cst_306 = arith.constant 0.000000e+00 : f32
    %714 = vector.broadcast %cst_306 : f32 to vector<1x128xf32>
    %715 = arith.select %713, %710, %714 : vector<1x128xf32>
    %c0_307 = arith.constant 0 : index
    %c40 = arith.constant 40 : index
    %c0_308 = arith.constant 0 : index
    %716 = vector.load %arg7[%c0_307, %c40, %c0_308] : memref<1x56x128xf32, #tpu.memory_space<vmem>>, vector<1x1x128xf32>
    %717 = vector.shape_cast %716 : vector<1x1x128xf32> to vector<1x128xf32>
    %718 = vector.shape_cast %715 : vector<1x128xf32> to vector<1x1x128xf32>
    tpu.vector_store %arg7[%c0_307, %c40, %c0_308], %718 {strides = array<i32>} : memref<1x56x128xf32, #tpu.memory_space<vmem>>, vector<1x1x128xf32>,
    %719 = vector.extract_strided_slice %3 {offsets = [0, 41], sizes = [16, 1], strides = [1, 1]} : vector<16x56xf32> to vector<16x1xf32>
    %cst_309 = arith.constant 0.000000e+00 : f32
    %720 = vector.broadcast %cst_309 : f32 to vector<16x1xf32>
    %721 = arith.cmpf ogt, %719, %720 : vector<16x1xf32>
    %cst_310 = arith.constant -3.400000e+38 : f32
    %722 = vector.shape_cast %721 : vector<16x1xi1> to vector<16x1xi1>
    %723 = vector.broadcast %722 : vector<16x1xi1> to vector<16x128xi1>
    %724 = vector.broadcast %cst_310 : f32 to vector<16x128xf32>
    %725 = arith.select %723, %1, %724 : vector<16x128xi1>, vector<16x128xf32>
    %cst_311 = arith.constant dense<0xFF800000> : vector<128xf32>
    %726 = vector.multi_reduction <maximumf>, %725, %cst_311 [0] : vector<16x128xf32> to vector<128xf32>
    %727 = vector.shape_cast %726 : vector<128xf32> to vector<1x128xf32>
    %728 = vector.extract_strided_slice %4 {offsets = [41, 0], sizes = [1, 1], strides = [1, 1]} : vector<56x1xf32> to vector<1x1xf32>
    %729 = vector.extract %728[0, 0] : f32 from vector<1x1xf32>
    %cst_312 = arith.constant 0.000000e+00 : f32
    %730 = arith.cmpf ogt, %729, %cst_312 : f32
    %cst_313 = arith.constant 0.000000e+00 : f32
    %731 = vector.broadcast %cst_313 : f32 to vector<1x128xf32>
    %732 = arith.select %730, %727, %731 : vector<1x128xf32>
    %c0_314 = arith.constant 0 : index
    %c41 = arith.constant 41 : index
    %c0_315 = arith.constant 0 : index
    %733 = vector.load %arg7[%c0_314, %c41, %c0_315] : memref<1x56x128xf32, #tpu.memory_space<vmem>>, vector<1x1x128xf32>
    %734 = vector.shape_cast %733 : vector<1x1x128xf32> to vector<1x128xf32>
    %735 = vector.shape_cast %732 : vector<1x128xf32> to vector<1x1x128xf32>
    tpu.vector_store %arg7[%c0_314, %c41, %c0_315], %735 {strides = array<i32>} : memref<1x56x128xf32, #tpu.memory_space<vmem>>, vector<1x1x128xf32>,
    %736 = vector.extract_strided_slice %3 {offsets = [0, 42], sizes = [16, 1], strides = [1, 1]} : vector<16x56xf32> to vector<16x1xf32>
    %cst_316 = arith.constant 0.000000e+00 : f32
    %737 = vector.broadcast %cst_316 : f32 to vector<16x1xf32>
    %738 = arith.cmpf ogt, %736, %737 : vector<16x1xf32>
    %cst_317 = arith.constant -3.400000e+38 : f32
    %739 = vector.shape_cast %738 : vector<16x1xi1> to vector<16x1xi1>
    %740 = vector.broadcast %739 : vector<16x1xi1> to vector<16x128xi1>
    %741 = vector.broadcast %cst_317 : f32 to vector<16x128xf32>
    %742 = arith.select %740, %1, %741 : vector<16x128xi1>, vector<16x128xf32>
    %cst_318 = arith.constant dense<0xFF800000> : vector<128xf32>
    %743 = vector.multi_reduction <maximumf>, %742, %cst_318 [0] : vector<16x128xf32> to vector<128xf32>
    %744 = vector.shape_cast %743 : vector<128xf32> to vector<1x128xf32>
    %745 = vector.extract_strided_slice %4 {offsets = [42, 0], sizes = [1, 1], strides = [1, 1]} : vector<56x1xf32> to vector<1x1xf32>
    %746 = vector.extract %745[0, 0] : f32 from vector<1x1xf32>
    %cst_319 = arith.constant 0.000000e+00 : f32
    %747 = arith.cmpf ogt, %746, %cst_319 : f32
    %cst_320 = arith.constant 0.000000e+00 : f32
    %748 = vector.broadcast %cst_320 : f32 to vector<1x128xf32>
    %749 = arith.select %747, %744, %748 : vector<1x128xf32>
    %c0_321 = arith.constant 0 : index
    %c42 = arith.constant 42 : index
    %c0_322 = arith.constant 0 : index
    %750 = vector.load %arg7[%c0_321, %c42, %c0_322] : memref<1x56x128xf32, #tpu.memory_space<vmem>>, vector<1x1x128xf32>
    %751 = vector.shape_cast %750 : vector<1x1x128xf32> to vector<1x128xf32>
    %752 = vector.shape_cast %749 : vector<1x128xf32> to vector<1x1x128xf32>
    tpu.vector_store %arg7[%c0_321, %c42, %c0_322], %752 {strides = array<i32>} : memref<1x56x128xf32, #tpu.memory_space<vmem>>, vector<1x1x128xf32>,
    %753 = vector.extract_strided_slice %3 {offsets = [0, 43], sizes = [16, 1], strides = [1, 1]} : vector<16x56xf32> to vector<16x1xf32>
    %cst_323 = arith.constant 0.000000e+00 : f32
    %754 = vector.broadcast %cst_323 : f32 to vector<16x1xf32>
    %755 = arith.cmpf ogt, %753, %754 : vector<16x1xf32>
    %cst_324 = arith.constant -3.400000e+38 : f32
    %756 = vector.shape_cast %755 : vector<16x1xi1> to vector<16x1xi1>
    %757 = vector.broadcast %756 : vector<16x1xi1> to vector<16x128xi1>
    %758 = vector.broadcast %cst_324 : f32 to vector<16x128xf32>
    %759 = arith.select %757, %1, %758 : vector<16x128xi1>, vector<16x128xf32>
    %cst_325 = arith.constant dense<0xFF800000> : vector<128xf32>
    %760 = vector.multi_reduction <maximumf>, %759, %cst_325 [0] : vector<16x128xf32> to vector<128xf32>
    %761 = vector.shape_cast %760 : vector<128xf32> to vector<1x128xf32>
    %762 = vector.extract_strided_slice %4 {offsets = [43, 0], sizes = [1, 1], strides = [1, 1]} : vector<56x1xf32> to vector<1x1xf32>
    %763 = vector.extract %762[0, 0] : f32 from vector<1x1xf32>
    %cst_326 = arith.constant 0.000000e+00 : f32
    %764 = arith.cmpf ogt, %763, %cst_326 : f32
    %cst_327 = arith.constant 0.000000e+00 : f32
    %765 = vector.broadcast %cst_327 : f32 to vector<1x128xf32>
    %766 = arith.select %764, %761, %765 : vector<1x128xf32>
    %c0_328 = arith.constant 0 : index
    %c43 = arith.constant 43 : index
    %c0_329 = arith.constant 0 : index
    %767 = vector.load %arg7[%c0_328, %c43, %c0_329] : memref<1x56x128xf32, #tpu.memory_space<vmem>>, vector<1x1x128xf32>
    %768 = vector.shape_cast %767 : vector<1x1x128xf32> to vector<1x128xf32>
    %769 = vector.shape_cast %766 : vector<1x128xf32> to vector<1x1x128xf32>
    tpu.vector_store %arg7[%c0_328, %c43, %c0_329], %769 {strides = array<i32>} : memref<1x56x128xf32, #tpu.memory_space<vmem>>, vector<1x1x128xf32>,
    %770 = vector.extract_strided_slice %3 {offsets = [0, 44], sizes = [16, 1], strides = [1, 1]} : vector<16x56xf32> to vector<16x1xf32>
    %cst_330 = arith.constant 0.000000e+00 : f32
    %771 = vector.broadcast %cst_330 : f32 to vector<16x1xf32>
    %772 = arith.cmpf ogt, %770, %771 : vector<16x1xf32>
    %cst_331 = arith.constant -3.400000e+38 : f32
    %773 = vector.shape_cast %772 : vector<16x1xi1> to vector<16x1xi1>
    %774 = vector.broadcast %773 : vector<16x1xi1> to vector<16x128xi1>
    %775 = vector.broadcast %cst_331 : f32 to vector<16x128xf32>
    %776 = arith.select %774, %1, %775 : vector<16x128xi1>, vector<16x128xf32>
    %cst_332 = arith.constant dense<0xFF800000> : vector<128xf32>
    %777 = vector.multi_reduction <maximumf>, %776, %cst_332 [0] : vector<16x128xf32> to vector<128xf32>
    %778 = vector.shape_cast %777 : vector<128xf32> to vector<1x128xf32>
    %779 = vector.extract_strided_slice %4 {offsets = [44, 0], sizes = [1, 1], strides = [1, 1]} : vector<56x1xf32> to vector<1x1xf32>
    %780 = vector.extract %779[0, 0] : f32 from vector<1x1xf32>
    %cst_333 = arith.constant 0.000000e+00 : f32
    %781 = arith.cmpf ogt, %780, %cst_333 : f32
    %cst_334 = arith.constant 0.000000e+00 : f32
    %782 = vector.broadcast %cst_334 : f32 to vector<1x128xf32>
    %783 = arith.select %781, %778, %782 : vector<1x128xf32>
    %c0_335 = arith.constant 0 : index
    %c44 = arith.constant 44 : index
    %c0_336 = arith.constant 0 : index
    %784 = vector.load %arg7[%c0_335, %c44, %c0_336] : memref<1x56x128xf32, #tpu.memory_space<vmem>>, vector<1x1x128xf32>
    %785 = vector.shape_cast %784 : vector<1x1x128xf32> to vector<1x128xf32>
    %786 = vector.shape_cast %783 : vector<1x128xf32> to vector<1x1x128xf32>
    tpu.vector_store %arg7[%c0_335, %c44, %c0_336], %786 {strides = array<i32>} : memref<1x56x128xf32, #tpu.memory_space<vmem>>, vector<1x1x128xf32>,
    %787 = vector.extract_strided_slice %3 {offsets = [0, 45], sizes = [16, 1], strides = [1, 1]} : vector<16x56xf32> to vector<16x1xf32>
    %cst_337 = arith.constant 0.000000e+00 : f32
    %788 = vector.broadcast %cst_337 : f32 to vector<16x1xf32>
    %789 = arith.cmpf ogt, %787, %788 : vector<16x1xf32>
    %cst_338 = arith.constant -3.400000e+38 : f32
    %790 = vector.shape_cast %789 : vector<16x1xi1> to vector<16x1xi1>
    %791 = vector.broadcast %790 : vector<16x1xi1> to vector<16x128xi1>
    %792 = vector.broadcast %cst_338 : f32 to vector<16x128xf32>
    %793 = arith.select %791, %1, %792 : vector<16x128xi1>, vector<16x128xf32>
    %cst_339 = arith.constant dense<0xFF800000> : vector<128xf32>
    %794 = vector.multi_reduction <maximumf>, %793, %cst_339 [0] : vector<16x128xf32> to vector<128xf32>
    %795 = vector.shape_cast %794 : vector<128xf32> to vector<1x128xf32>
    %796 = vector.extract_strided_slice %4 {offsets = [45, 0], sizes = [1, 1], strides = [1, 1]} : vector<56x1xf32> to vector<1x1xf32>
    %797 = vector.extract %796[0, 0] : f32 from vector<1x1xf32>
    %cst_340 = arith.constant 0.000000e+00 : f32
    %798 = arith.cmpf ogt, %797, %cst_340 : f32
    %cst_341 = arith.constant 0.000000e+00 : f32
    %799 = vector.broadcast %cst_341 : f32 to vector<1x128xf32>
    %800 = arith.select %798, %795, %799 : vector<1x128xf32>
    %c0_342 = arith.constant 0 : index
    %c45 = arith.constant 45 : index
    %c0_343 = arith.constant 0 : index
    %801 = vector.load %arg7[%c0_342, %c45, %c0_343] : memref<1x56x128xf32, #tpu.memory_space<vmem>>, vector<1x1x128xf32>
    %802 = vector.shape_cast %801 : vector<1x1x128xf32> to vector<1x128xf32>
    %803 = vector.shape_cast %800 : vector<1x128xf32> to vector<1x1x128xf32>
    tpu.vector_store %arg7[%c0_342, %c45, %c0_343], %803 {strides = array<i32>} : memref<1x56x128xf32, #tpu.memory_space<vmem>>, vector<1x1x128xf32>,
    %804 = vector.extract_strided_slice %3 {offsets = [0, 46], sizes = [16, 1], strides = [1, 1]} : vector<16x56xf32> to vector<16x1xf32>
    %cst_344 = arith.constant 0.000000e+00 : f32
    %805 = vector.broadcast %cst_344 : f32 to vector<16x1xf32>
    %806 = arith.cmpf ogt, %804, %805 : vector<16x1xf32>
    %cst_345 = arith.constant -3.400000e+38 : f32
    %807 = vector.shape_cast %806 : vector<16x1xi1> to vector<16x1xi1>
    %808 = vector.broadcast %807 : vector<16x1xi1> to vector<16x128xi1>
    %809 = vector.broadcast %cst_345 : f32 to vector<16x128xf32>
    %810 = arith.select %808, %1, %809 : vector<16x128xi1>, vector<16x128xf32>
    %cst_346 = arith.constant dense<0xFF800000> : vector<128xf32>
    %811 = vector.multi_reduction <maximumf>, %810, %cst_346 [0] : vector<16x128xf32> to vector<128xf32>
    %812 = vector.shape_cast %811 : vector<128xf32> to vector<1x128xf32>
    %813 = vector.extract_strided_slice %4 {offsets = [46, 0], sizes = [1, 1], strides = [1, 1]} : vector<56x1xf32> to vector<1x1xf32>
    %814 = vector.extract %813[0, 0] : f32 from vector<1x1xf32>
    %cst_347 = arith.constant 0.000000e+00 : f32
    %815 = arith.cmpf ogt, %814, %cst_347 : f32
    %cst_348 = arith.constant 0.000000e+00 : f32
    %816 = vector.broadcast %cst_348 : f32 to vector<1x128xf32>
    %817 = arith.select %815, %812, %816 : vector<1x128xf32>
    %c0_349 = arith.constant 0 : index
    %c46 = arith.constant 46 : index
    %c0_350 = arith.constant 0 : index
    %818 = vector.load %arg7[%c0_349, %c46, %c0_350] : memref<1x56x128xf32, #tpu.memory_space<vmem>>, vector<1x1x128xf32>
    %819 = vector.shape_cast %818 : vector<1x1x128xf32> to vector<1x128xf32>
    %820 = vector.shape_cast %817 : vector<1x128xf32> to vector<1x1x128xf32>
    tpu.vector_store %arg7[%c0_349, %c46, %c0_350], %820 {strides = array<i32>} : memref<1x56x128xf32, #tpu.memory_space<vmem>>, vector<1x1x128xf32>,
    %821 = vector.extract_strided_slice %3 {offsets = [0, 47], sizes = [16, 1], strides = [1, 1]} : vector<16x56xf32> to vector<16x1xf32>
    %cst_351 = arith.constant 0.000000e+00 : f32
    %822 = vector.broadcast %cst_351 : f32 to vector<16x1xf32>
    %823 = arith.cmpf ogt, %821, %822 : vector<16x1xf32>
    %cst_352 = arith.constant -3.400000e+38 : f32
    %824 = vector.shape_cast %823 : vector<16x1xi1> to vector<16x1xi1>
    %825 = vector.broadcast %824 : vector<16x1xi1> to vector<16x128xi1>
    %826 = vector.broadcast %cst_352 : f32 to vector<16x128xf32>
    %827 = arith.select %825, %1, %826 : vector<16x128xi1>, vector<16x128xf32>
    %cst_353 = arith.constant dense<0xFF800000> : vector<128xf32>
    %828 = vector.multi_reduction <maximumf>, %827, %cst_353 [0] : vector<16x128xf32> to vector<128xf32>
    %829 = vector.shape_cast %828 : vector<128xf32> to vector<1x128xf32>
    %830 = vector.extract_strided_slice %4 {offsets = [47, 0], sizes = [1, 1], strides = [1, 1]} : vector<56x1xf32> to vector<1x1xf32>
    %831 = vector.extract %830[0, 0] : f32 from vector<1x1xf32>
    %cst_354 = arith.constant 0.000000e+00 : f32
    %832 = arith.cmpf ogt, %831, %cst_354 : f32
    %cst_355 = arith.constant 0.000000e+00 : f32
    %833 = vector.broadcast %cst_355 : f32 to vector<1x128xf32>
    %834 = arith.select %832, %829, %833 : vector<1x128xf32>
    %c0_356 = arith.constant 0 : index
    %c47 = arith.constant 47 : index
    %c0_357 = arith.constant 0 : index
    %835 = vector.load %arg7[%c0_356, %c47, %c0_357] : memref<1x56x128xf32, #tpu.memory_space<vmem>>, vector<1x1x128xf32>
    %836 = vector.shape_cast %835 : vector<1x1x128xf32> to vector<1x128xf32>
    %837 = vector.shape_cast %834 : vector<1x128xf32> to vector<1x1x128xf32>
    tpu.vector_store %arg7[%c0_356, %c47, %c0_357], %837 {strides = array<i32>} : memref<1x56x128xf32, #tpu.memory_space<vmem>>, vector<1x1x128xf32>,
    %838 = vector.extract_strided_slice %3 {offsets = [0, 48], sizes = [16, 1], strides = [1, 1]} : vector<16x56xf32> to vector<16x1xf32>
    %cst_358 = arith.constant 0.000000e+00 : f32
    %839 = vector.broadcast %cst_358 : f32 to vector<16x1xf32>
    %840 = arith.cmpf ogt, %838, %839 : vector<16x1xf32>
    %cst_359 = arith.constant -3.400000e+38 : f32
    %841 = vector.shape_cast %840 : vector<16x1xi1> to vector<16x1xi1>
    %842 = vector.broadcast %841 : vector<16x1xi1> to vector<16x128xi1>
    %843 = vector.broadcast %cst_359 : f32 to vector<16x128xf32>
    %844 = arith.select %842, %1, %843 : vector<16x128xi1>, vector<16x128xf32>
    %cst_360 = arith.constant dense<0xFF800000> : vector<128xf32>
    %845 = vector.multi_reduction <maximumf>, %844, %cst_360 [0] : vector<16x128xf32> to vector<128xf32>
    %846 = vector.shape_cast %845 : vector<128xf32> to vector<1x128xf32>
    %847 = vector.extract_strided_slice %4 {offsets = [48, 0], sizes = [1, 1], strides = [1, 1]} : vector<56x1xf32> to vector<1x1xf32>
    %848 = vector.extract %847[0, 0] : f32 from vector<1x1xf32>
    %cst_361 = arith.constant 0.000000e+00 : f32
    %849 = arith.cmpf ogt, %848, %cst_361 : f32
    %cst_362 = arith.constant 0.000000e+00 : f32
    %850 = vector.broadcast %cst_362 : f32 to vector<1x128xf32>
    %851 = arith.select %849, %846, %850 : vector<1x128xf32>
    %c0_363 = arith.constant 0 : index
    %c48 = arith.constant 48 : index
    %c0_364 = arith.constant 0 : index
    %852 = vector.load %arg7[%c0_363, %c48, %c0_364] : memref<1x56x128xf32, #tpu.memory_space<vmem>>, vector<1x1x128xf32>
    %853 = vector.shape_cast %852 : vector<1x1x128xf32> to vector<1x128xf32>
    %854 = vector.shape_cast %851 : vector<1x128xf32> to vector<1x1x128xf32>
    tpu.vector_store %arg7[%c0_363, %c48, %c0_364], %854 {strides = array<i32>} : memref<1x56x128xf32, #tpu.memory_space<vmem>>, vector<1x1x128xf32>,
    %855 = vector.extract_strided_slice %3 {offsets = [0, 49], sizes = [16, 1], strides = [1, 1]} : vector<16x56xf32> to vector<16x1xf32>
    %cst_365 = arith.constant 0.000000e+00 : f32
    %856 = vector.broadcast %cst_365 : f32 to vector<16x1xf32>
    %857 = arith.cmpf ogt, %855, %856 : vector<16x1xf32>
    %cst_366 = arith.constant -3.400000e+38 : f32
    %858 = vector.shape_cast %857 : vector<16x1xi1> to vector<16x1xi1>
    %859 = vector.broadcast %858 : vector<16x1xi1> to vector<16x128xi1>
    %860 = vector.broadcast %cst_366 : f32 to vector<16x128xf32>
    %861 = arith.select %859, %1, %860 : vector<16x128xi1>, vector<16x128xf32>
    %cst_367 = arith.constant dense<0xFF800000> : vector<128xf32>
    %862 = vector.multi_reduction <maximumf>, %861, %cst_367 [0] : vector<16x128xf32> to vector<128xf32>
    %863 = vector.shape_cast %862 : vector<128xf32> to vector<1x128xf32>
    %864 = vector.extract_strided_slice %4 {offsets = [49, 0], sizes = [1, 1], strides = [1, 1]} : vector<56x1xf32> to vector<1x1xf32>
    %865 = vector.extract %864[0, 0] : f32 from vector<1x1xf32>
    %cst_368 = arith.constant 0.000000e+00 : f32
    %866 = arith.cmpf ogt, %865, %cst_368 : f32
    %cst_369 = arith.constant 0.000000e+00 : f32
    %867 = vector.broadcast %cst_369 : f32 to vector<1x128xf32>
    %868 = arith.select %866, %863, %867 : vector<1x128xf32>
    %c0_370 = arith.constant 0 : index
    %c49 = arith.constant 49 : index
    %c0_371 = arith.constant 0 : index
    %869 = vector.load %arg7[%c0_370, %c49, %c0_371] : memref<1x56x128xf32, #tpu.memory_space<vmem>>, vector<1x1x128xf32>
    %870 = vector.shape_cast %869 : vector<1x1x128xf32> to vector<1x128xf32>
    %871 = vector.shape_cast %868 : vector<1x128xf32> to vector<1x1x128xf32>
    tpu.vector_store %arg7[%c0_370, %c49, %c0_371], %871 {strides = array<i32>} : memref<1x56x128xf32, #tpu.memory_space<vmem>>, vector<1x1x128xf32>,
    %872 = vector.extract_strided_slice %3 {offsets = [0, 50], sizes = [16, 1], strides = [1, 1]} : vector<16x56xf32> to vector<16x1xf32>
    %cst_372 = arith.constant 0.000000e+00 : f32
    %873 = vector.broadcast %cst_372 : f32 to vector<16x1xf32>
    %874 = arith.cmpf ogt, %872, %873 : vector<16x1xf32>
    %cst_373 = arith.constant -3.400000e+38 : f32
    %875 = vector.shape_cast %874 : vector<16x1xi1> to vector<16x1xi1>
    %876 = vector.broadcast %875 : vector<16x1xi1> to vector<16x128xi1>
    %877 = vector.broadcast %cst_373 : f32 to vector<16x128xf32>
    %878 = arith.select %876, %1, %877 : vector<16x128xi1>, vector<16x128xf32>
    %cst_374 = arith.constant dense<0xFF800000> : vector<128xf32>
    %879 = vector.multi_reduction <maximumf>, %878, %cst_374 [0] : vector<16x128xf32> to vector<128xf32>
    %880 = vector.shape_cast %879 : vector<128xf32> to vector<1x128xf32>
    %881 = vector.extract_strided_slice %4 {offsets = [50, 0], sizes = [1, 1], strides = [1, 1]} : vector<56x1xf32> to vector<1x1xf32>
    %882 = vector.extract %881[0, 0] : f32 from vector<1x1xf32>
    %cst_375 = arith.constant 0.000000e+00 : f32
    %883 = arith.cmpf ogt, %882, %cst_375 : f32
    %cst_376 = arith.constant 0.000000e+00 : f32
    %884 = vector.broadcast %cst_376 : f32 to vector<1x128xf32>
    %885 = arith.select %883, %880, %884 : vector<1x128xf32>
    %c0_377 = arith.constant 0 : index
    %c50 = arith.constant 50 : index
    %c0_378 = arith.constant 0 : index
    %886 = vector.load %arg7[%c0_377, %c50, %c0_378] : memref<1x56x128xf32, #tpu.memory_space<vmem>>, vector<1x1x128xf32>
    %887 = vector.shape_cast %886 : vector<1x1x128xf32> to vector<1x128xf32>
    %888 = vector.shape_cast %885 : vector<1x128xf32> to vector<1x1x128xf32>
    tpu.vector_store %arg7[%c0_377, %c50, %c0_378], %888 {strides = array<i32>} : memref<1x56x128xf32, #tpu.memory_space<vmem>>, vector<1x1x128xf32>,
    %889 = vector.extract_strided_slice %3 {offsets = [0, 51], sizes = [16, 1], strides = [1, 1]} : vector<16x56xf32> to vector<16x1xf32>
    %cst_379 = arith.constant 0.000000e+00 : f32
    %890 = vector.broadcast %cst_379 : f32 to vector<16x1xf32>
    %891 = arith.cmpf ogt, %889, %890 : vector<16x1xf32>
    %cst_380 = arith.constant -3.400000e+38 : f32
    %892 = vector.shape_cast %891 : vector<16x1xi1> to vector<16x1xi1>
    %893 = vector.broadcast %892 : vector<16x1xi1> to vector<16x128xi1>
    %894 = vector.broadcast %cst_380 : f32 to vector<16x128xf32>
    %895 = arith.select %893, %1, %894 : vector<16x128xi1>, vector<16x128xf32>
    %cst_381 = arith.constant dense<0xFF800000> : vector<128xf32>
    %896 = vector.multi_reduction <maximumf>, %895, %cst_381 [0] : vector<16x128xf32> to vector<128xf32>
    %897 = vector.shape_cast %896 : vector<128xf32> to vector<1x128xf32>
    %898 = vector.extract_strided_slice %4 {offsets = [51, 0], sizes = [1, 1], strides = [1, 1]} : vector<56x1xf32> to vector<1x1xf32>
    %899 = vector.extract %898[0, 0] : f32 from vector<1x1xf32>
    %cst_382 = arith.constant 0.000000e+00 : f32
    %900 = arith.cmpf ogt, %899, %cst_382 : f32
    %cst_383 = arith.constant 0.000000e+00 : f32
    %901 = vector.broadcast %cst_383 : f32 to vector<1x128xf32>
    %902 = arith.select %900, %897, %901 : vector<1x128xf32>
    %c0_384 = arith.constant 0 : index
    %c51 = arith.constant 51 : index
    %c0_385 = arith.constant 0 : index
    %903 = vector.load %arg7[%c0_384, %c51, %c0_385] : memref<1x56x128xf32, #tpu.memory_space<vmem>>, vector<1x1x128xf32>
    %904 = vector.shape_cast %903 : vector<1x1x128xf32> to vector<1x128xf32>
    %905 = vector.shape_cast %902 : vector<1x128xf32> to vector<1x1x128xf32>
    tpu.vector_store %arg7[%c0_384, %c51, %c0_385], %905 {strides = array<i32>} : memref<1x56x128xf32, #tpu.memory_space<vmem>>, vector<1x1x128xf32>,
    %906 = vector.extract_strided_slice %3 {offsets = [0, 52], sizes = [16, 1], strides = [1, 1]} : vector<16x56xf32> to vector<16x1xf32>
    %cst_386 = arith.constant 0.000000e+00 : f32
    %907 = vector.broadcast %cst_386 : f32 to vector<16x1xf32>
    %908 = arith.cmpf ogt, %906, %907 : vector<16x1xf32>
    %cst_387 = arith.constant -3.400000e+38 : f32
    %909 = vector.shape_cast %908 : vector<16x1xi1> to vector<16x1xi1>
    %910 = vector.broadcast %909 : vector<16x1xi1> to vector<16x128xi1>
    %911 = vector.broadcast %cst_387 : f32 to vector<16x128xf32>
    %912 = arith.select %910, %1, %911 : vector<16x128xi1>, vector<16x128xf32>
    %cst_388 = arith.constant dense<0xFF800000> : vector<128xf32>
    %913 = vector.multi_reduction <maximumf>, %912, %cst_388 [0] : vector<16x128xf32> to vector<128xf32>
    %914 = vector.shape_cast %913 : vector<128xf32> to vector<1x128xf32>
    %915 = vector.extract_strided_slice %4 {offsets = [52, 0], sizes = [1, 1], strides = [1, 1]} : vector<56x1xf32> to vector<1x1xf32>
    %916 = vector.extract %915[0, 0] : f32 from vector<1x1xf32>
    %cst_389 = arith.constant 0.000000e+00 : f32
    %917 = arith.cmpf ogt, %916, %cst_389 : f32
    %cst_390 = arith.constant 0.000000e+00 : f32
    %918 = vector.broadcast %cst_390 : f32 to vector<1x128xf32>
    %919 = arith.select %917, %914, %918 : vector<1x128xf32>
    %c0_391 = arith.constant 0 : index
    %c52 = arith.constant 52 : index
    %c0_392 = arith.constant 0 : index
    %920 = vector.load %arg7[%c0_391, %c52, %c0_392] : memref<1x56x128xf32, #tpu.memory_space<vmem>>, vector<1x1x128xf32>
    %921 = vector.shape_cast %920 : vector<1x1x128xf32> to vector<1x128xf32>
    %922 = vector.shape_cast %919 : vector<1x128xf32> to vector<1x1x128xf32>
    tpu.vector_store %arg7[%c0_391, %c52, %c0_392], %922 {strides = array<i32>} : memref<1x56x128xf32, #tpu.memory_space<vmem>>, vector<1x1x128xf32>,
    %923 = vector.extract_strided_slice %3 {offsets = [0, 53], sizes = [16, 1], strides = [1, 1]} : vector<16x56xf32> to vector<16x1xf32>
    %cst_393 = arith.constant 0.000000e+00 : f32
    %924 = vector.broadcast %cst_393 : f32 to vector<16x1xf32>
    %925 = arith.cmpf ogt, %923, %924 : vector<16x1xf32>
    %cst_394 = arith.constant -3.400000e+38 : f32
    %926 = vector.shape_cast %925 : vector<16x1xi1> to vector<16x1xi1>
    %927 = vector.broadcast %926 : vector<16x1xi1> to vector<16x128xi1>
    %928 = vector.broadcast %cst_394 : f32 to vector<16x128xf32>
    %929 = arith.select %927, %1, %928 : vector<16x128xi1>, vector<16x128xf32>
    %cst_395 = arith.constant dense<0xFF800000> : vector<128xf32>
    %930 = vector.multi_reduction <maximumf>, %929, %cst_395 [0] : vector<16x128xf32> to vector<128xf32>
    %931 = vector.shape_cast %930 : vector<128xf32> to vector<1x128xf32>
    %932 = vector.extract_strided_slice %4 {offsets = [53, 0], sizes = [1, 1], strides = [1, 1]} : vector<56x1xf32> to vector<1x1xf32>
    %933 = vector.extract %932[0, 0] : f32 from vector<1x1xf32>
    %cst_396 = arith.constant 0.000000e+00 : f32
    %934 = arith.cmpf ogt, %933, %cst_396 : f32
    %cst_397 = arith.constant 0.000000e+00 : f32
    %935 = vector.broadcast %cst_397 : f32 to vector<1x128xf32>
    %936 = arith.select %934, %931, %935 : vector<1x128xf32>
    %c0_398 = arith.constant 0 : index
    %c53 = arith.constant 53 : index
    %c0_399 = arith.constant 0 : index
    %937 = vector.load %arg7[%c0_398, %c53, %c0_399] : memref<1x56x128xf32, #tpu.memory_space<vmem>>, vector<1x1x128xf32>
    %938 = vector.shape_cast %937 : vector<1x1x128xf32> to vector<1x128xf32>
    %939 = vector.shape_cast %936 : vector<1x128xf32> to vector<1x1x128xf32>
    tpu.vector_store %arg7[%c0_398, %c53, %c0_399], %939 {strides = array<i32>} : memref<1x56x128xf32, #tpu.memory_space<vmem>>, vector<1x1x128xf32>,
    %940 = vector.extract_strided_slice %3 {offsets = [0, 54], sizes = [16, 1], strides = [1, 1]} : vector<16x56xf32> to vector<16x1xf32>
    %cst_400 = arith.constant 0.000000e+00 : f32
    %941 = vector.broadcast %cst_400 : f32 to vector<16x1xf32>
    %942 = arith.cmpf ogt, %940, %941 : vector<16x1xf32>
    %cst_401 = arith.constant -3.400000e+38 : f32
    %943 = vector.shape_cast %942 : vector<16x1xi1> to vector<16x1xi1>
    %944 = vector.broadcast %943 : vector<16x1xi1> to vector<16x128xi1>
    %945 = vector.broadcast %cst_401 : f32 to vector<16x128xf32>
    %946 = arith.select %944, %1, %945 : vector<16x128xi1>, vector<16x128xf32>
    %cst_402 = arith.constant dense<0xFF800000> : vector<128xf32>
    %947 = vector.multi_reduction <maximumf>, %946, %cst_402 [0] : vector<16x128xf32> to vector<128xf32>
    %948 = vector.shape_cast %947 : vector<128xf32> to vector<1x128xf32>
    %949 = vector.extract_strided_slice %4 {offsets = [54, 0], sizes = [1, 1], strides = [1, 1]} : vector<56x1xf32> to vector<1x1xf32>
    %950 = vector.extract %949[0, 0] : f32 from vector<1x1xf32>
    %cst_403 = arith.constant 0.000000e+00 : f32
    %951 = arith.cmpf ogt, %950, %cst_403 : f32
    %cst_404 = arith.constant 0.000000e+00 : f32
    %952 = vector.broadcast %cst_404 : f32 to vector<1x128xf32>
    %953 = arith.select %951, %948, %952 : vector<1x128xf32>
    %c0_405 = arith.constant 0 : index
    %c54 = arith.constant 54 : index
    %c0_406 = arith.constant 0 : index
    %954 = vector.load %arg7[%c0_405, %c54, %c0_406] : memref<1x56x128xf32, #tpu.memory_space<vmem>>, vector<1x1x128xf32>
    %955 = vector.shape_cast %954 : vector<1x1x128xf32> to vector<1x128xf32>
    %956 = vector.shape_cast %953 : vector<1x128xf32> to vector<1x1x128xf32>
    tpu.vector_store %arg7[%c0_405, %c54, %c0_406], %956 {strides = array<i32>} : memref<1x56x128xf32, #tpu.memory_space<vmem>>, vector<1x1x128xf32>,
    %cst_407 = arith.constant 0.000000e+00 : f32
    %957 = vector.broadcast %cst_407 : f32 to vector<1x128xf32>
    %c0_408 = arith.constant 0 : index
    %c55 = arith.constant 55 : index
    %c0_409 = arith.constant 0 : index
    %958 = vector.load %arg7[%c0_408, %c55, %c0_409] : memref<1x56x128xf32, #tpu.memory_space<vmem>>, vector<1x1x128xf32>
    %959 = vector.shape_cast %958 : vector<1x1x128xf32> to vector<1x128xf32>
    %960 = vector.shape_cast %957 : vector<1x128xf32> to vector<1x1x128xf32>
    tpu.vector_store %arg7[%c0_408, %c55, %c0_409], %960 {strides = array<i32>} : memref<1x56x128xf32, #tpu.memory_space<vmem>>, vector<1x1x128xf32>,
    return
  }
  func.func @transform_0(%arg0: i32) -> (i32, i32, i32) {
    %c0_i32 = arith.constant 0 : i32
    %c0_i32_0 = arith.constant 0 : i32
    %c0_i32_1 = arith.constant 0 : i32
    return %arg0, %c0_i32, %c0_i32_0 : i32, i32, i32
  }
  func.func @transform_1(%arg0: i32) -> (i32, i32) {
    %c0_i32 = arith.constant 0 : i32
    %c0_i32_0 = arith.constant 0 : i32
    %c0_i32_1 = arith.constant 0 : i32
    return %c0_i32, %c0_i32_0 : i32, i32
  }
  func.func @transform_2(%arg0: i32) -> (i32, i32) {
    %c0_i32 = arith.constant 0 : i32
    %c0_i32_0 = arith.constant 0 : i32
    %c0_i32_1 = arith.constant 0 : i32
    return %c0_i32, %c0_i32_0 : i32, i32
  }
  func.func @transform_3(%arg0: i32) -> (i32, i32) {
    %c0_i32 = arith.constant 0 : i32
    %c0_i32_0 = arith.constant 0 : i32
    %c0_i32_1 = arith.constant 0 : i32
    return %c0_i32, %c0_i32_0 : i32, i32
  }
  func.func @transform_4(%arg0: i32) -> (i32, i32) {
    %c0_i32 = arith.constant 0 : i32
    %c0_i32_0 = arith.constant 0 : i32
    %c0_i32_1 = arith.constant 0 : i32
    return %c0_i32, %c0_i32_0 : i32, i32
  }
  func.func @transform_5(%arg0: i32) -> (i32, i32) {
    %c0_i32 = arith.constant 0 : i32
    %c0_i32_0 = arith.constant 0 : i32
    %c0_i32_1 = arith.constant 0 : i32
    return %c0_i32, %c0_i32_0 : i32, i32
  }
  func.func @transform_6(%arg0: i32) -> (i32, i32, i32) {
    %c0_i32 = arith.constant 0 : i32
    %c0_i32_0 = arith.constant 0 : i32
    %c0_i32_1 = arith.constant 0 : i32
    return %arg0, %c0_i32, %c0_i32_0 : i32, i32, i32
  }
  func.func @transform_7(%arg0: i32) -> (i32, i32, i32) {
    %c0_i32 = arith.constant 0 : i32
    %c0_i32_0 = arith.constant 0 : i32
    %c0_i32_1 = arith.constant 0 : i32
    return %arg0, %c0_i32, %c0_i32_0 : i32, i32, i32
  }
  func.func @transform_8(%arg0: i32) -> (i32, i32, i32) {
    %c0_i32 = arith.constant 0 : i32
    %c0_i32_0 = arith.constant 0 : i32
    %c0_i32_1 = arith.constant 0 : i32
    return %arg0, %c0_i32, %c0_i32_0 : i32, i32, i32
  }
}

</mosaic_0001>

<llo_original>
// kernel: tpu_custom_call.1
$region0: #{tpu_custom_call.1}
  #allocation0 [shape = 'u32[]', space=smem, size = 0x4, offset = 0x4, fixed_abs, tag = 'smem constant byte address 0x4 - core index']
  #allocation1 [shape = 'u32[144,128]{1,0:T(1,128)}', space=vmem, size = 0x12000, scoped, tag = 'internal scratch']
  %s0 = inlined_call_operand.hbm [shape: f32[2,16,128], index: 0, kind: input, shape index: {}]
  %s1 = inlined_call_operand.hbm [shape: f32[56,16], index: 1, kind: input, shape index: {}]
  %s2 = inlined_call_operand.hbm [shape: f32[16,56], index: 2, kind: input, shape index: {}]
  %s3 = inlined_call_operand.hbm [shape: f32[56,1], index: 3, kind: input, shape index: {}]
  %s4 = inlined_call_operand.hbm [shape: f32[128,128], index: 4, kind: input, shape index: {}]
  %s5 = inlined_call_operand.hbm [shape: f32[1,128], index: 5, kind: input, shape index: {}]
  %s6 = inlined_call_operand.hbm [shape: f32[2,56,128], index: 6, kind: output, shape index: {0}]
  %s7 = inlined_call_operand.hbm [shape: f32[2,56,128], index: 7, kind: output, shape index: {1}]
  %s8 = inlined_call_operand.hbm [shape: f32[2,1,128], index: 8, kind: output, shape index: {2}]
  %9 = xla_tuple %s6, %s7, %s8
  %s10 = sld [smem:[#allocation0]]
  $region97: #{tpu_custom_call.1} parent=0
    _
  %s12 = ssub.s32 1, %s10
  %s13 = scalar_select 0, %s12, %s10
  $region1: #{tpu_custom_call.1} parent=0
    #allocation2 [shape = 'u8[16384]{0}', space=vmem, size = 0x4000, scoped, tag = 'input window, operand 0']
    #allocation3 [shape = 's32[2]{0}', space=sflag, size = 0x8, scoped, tag = 'scoped memory for tpu_custom_call.1']
    #allocation4 [shape = 's32[2]{0}', space=sflag, size = 0x8, scoped, tag = 'scoped memory for tpu_custom_call.1']
    #allocation5 [shape = 'u8[28672]{0}', space=vmem, size = 0x7000, scoped, tag = 'input window, operand 1, single buffered']
    #allocation6 [shape = 's32[1]{0}', space=sflag, size = 0x4, scoped, tag = 'scoped memory for tpu_custom_call.1']
    #allocation7 [shape = 'u8[8192]{0}', space=vmem, size = 0x2000, scoped, tag = 'input window, operand 2, single buffered']
    #allocation8 [shape = 'u8[28672]{0}', space=vmem, size = 0x7000, scoped, tag = 'input window, operand 3, single buffered']
    #allocation9 [shape = 's32[1]{0}', space=sflag, size = 0x4, scoped, tag = 'scoped memory for tpu_custom_call.1']
    #allocation10 [shape = 'u8[65536]{0}', space=vmem, size = 0x10000, scoped, tag = 'input window, operand 4, single buffered']
    #allocation11 [shape = 'u8[512]{0}', space=vmem, size = 0x400, scoped, tag = 'input window, operand 5, single buffered']
    #allocation12 [shape = 's32[1]{0}', space=sflag, size = 0x4, scoped, tag = 'scoped memory for tpu_custom_call.1']
    #allocation13 [shape = 'u8[57344]{0}', space=vmem, size = 0xe000, scoped, tag = 'output window, operand 0']
    #allocation14 [shape = 'u8[57344]{0}', space=vmem, size = 0xe000, scoped, tag = 'output window, operand 1']
    #allocation15 [shape = 's32[2]{0}', space=sflag, size = 0x8, scoped, tag = 'scoped memory for tpu_custom_call.1']
    #allocation16 [shape = 'u8[1024]{0}', space=vmem, size = 0x400, scoped, tag = 'output window, operand 2']
    %14 = vsyncpa [#allocation3], 0
    %s15 = scalar_lea.sflag [#allocation3], 1
    %16 = vsyncpa %s15, 0
    %17 = vsyncpa [#allocation6], 0
    %18 = vsyncpa [#allocation9], 0
    %19 = vsyncpa [#allocation12], 0
    %20 = vsyncpa [#allocation4], 0
    %s21 = scalar_lea.sflag [#allocation4], 1
    %22 = vsyncpa %s21, 0
    %23 = vsyncpa [#allocation15], 0
    %s24 = scalar_lea.sflag [#allocation15], 1
    %25 = vsyncpa %s24, 0
    loop: start=0, step=1, limit=4
    $region2: #{tpu_custom_call.1} parent=1 // loop_pre_header
      _
    $region3: #{tpu_custom_call.1} parent=1 // loop_header
      %s27 = sphi 0, %s31
      %p28 = scmp.ge.s32.totalorder %s27, 4
      %s37 = sphi 0, %s39
      %s40 = sphi 0, %s37
      %s41 = sphi 0, %s40
      %s57 = sphi 0, %s41
      %s61 = sphi 0, %s61
      %s63 = sphi 0, %s61
      %s64 = sphi 0, %s63
      %s78 = sphi 0, %s64
      %s82 = sphi 0, %s82
      %s84 = sphi 0, %s82
      %s85 = sphi 0, %s84
      %s99 = sphi 0, %s85
      %s103 = sphi 0, %s103
      %s105 = sphi 0, %s103
      %s106 = sphi 0, %s105
      %s120 = sphi 0, %s106
      %s124 = sphi 0, %s124
      %s126 = sphi 0, %s124
      %s127 = sphi 0, %s126
      %s141 = sphi 0, %s127
      %s145 = sphi 0, %s145
      %s147 = sphi 0, %s145
      %s148 = sphi 0, %s147
      %s162 = sphi 0, %s148
      %s168 = sphi 0, %s170
      %s171 = sphi 0, %s168
      %s172 = sphi 0, %s171
      %s188 = sphi 0, %s172
      %s194 = sphi 0, %s196
      %s197 = sphi 0, %s194
      %s198 = sphi 0, %s197
      %s214 = sphi 0, %s198
      %s220 = sphi 0, %s222
      %s223 = sphi 0, %s220
      %s224 = sphi 0, %s223
      %s240 = sphi 0, %s224
    $region4: #{tpu_custom_call.1} parent=1 // loop_header_branch
      %30 = sbr.rel (%p28) target = $region8
    $region5: #{tpu_custom_call.1} parent=1 // loop_body
      %s32 = ssub.s32 %s27, 1
      %s33 = ssub.s32 %s27, 2
      %s34 = sadd.s32 %s27, 1
      %s35 = ssub.s32 %s27, %s34
      %p36 = scmp.eq.s32.totalorder %s35, 0
      %s38 = sadd.s32 %s37, 1
      %s39 = scalar_select %p36, %s37, %s38
      %p42 = pneg %p36
      %p43 = scmp.eq.s32.totalorder %s27, 1
      %p44 = por %p42, %p43
      %p45 = scmp.ne.s32.totalorder %s37, %s40
      %p46 = scmp.eq.s32.totalorder %s27, 0
      %p47 = por %p45, %p46
      %p48 = scmp.ne.s32.totalorder %s37, %s40
      %p49 = scmp.eq.s32.totalorder %s32, 1
      %p50 = por %p48, %p49
      %p51 = scmp.ne.s32.totalorder %s40, %s41
      %p52 = scmp.eq.s32.totalorder %s32, 0
      %p53 = por %p51, %p52
      %p54 = scmp.ne.s32.totalorder %s40, %s41
      %p55 = scmp.eq.s32.totalorder %s33, 1
      %p56 = por %p54, %p55
      %p58 = scmp.ne.s32.totalorder %s41, %s57
      %p59 = scmp.eq.s32.totalorder %s33, 0
      %p60 = por %p58, %p59
      %s62 = sadd.s32 %s61, 1
      %p65 = scmp.eq.s32.totalorder %s27, 1
      %p66 = scmp.ne.s32.totalorder %s61, %s63
      %p67 = scmp.eq.s32.totalorder %s27, 0
      %p68 = por %p66, %p67
      %p69 = scmp.ne.s32.totalorder %s61, %s63
      %p70 = scmp.eq.s32.totalorder %s32, 1
      %p71 = por %p69, %p70
      %p72 = scmp.ne.s32.totalorder %s63, %s64
      %p73 = scmp.eq.s32.totalorder %s32, 0
      %p74 = por %p72, %p73
      %p75 = scmp.ne.s32.totalorder %s63, %s64
      %p76 = scmp.eq.s32.totalorder %s33, 1
      %p77 = por %p75, %p76
      %p79 = scmp.ne.s32.totalorder %s64, %s78
      %p80 = scmp.eq.s32.totalorder %s33, 0
      %p81 = por %p79, %p80
      %s83 = sadd.s32 %s82, 1
      %p86 = scmp.eq.s32.totalorder %s27, 1
      %p87 = scmp.ne.s32.totalorder %s82, %s84
      %p88 = scmp.eq.s32.totalorder %s27, 0
      %p89 = por %p87, %p88
      %p90 = scmp.ne.s32.totalorder %s82, %s84
      %p91 = scmp.eq.s32.totalorder %s32, 1
      %p92 = por %p90, %p91
      %p93 = scmp.ne.s32.totalorder %s84, %s85
      %p94 = scmp.eq.s32.totalorder %s32, 0
      %p95 = por %p93, %p94
      %p96 = scmp.ne.s32.totalorder %s84, %s85
      %p97 = scmp.eq.s32.totalorder %s33, 1
      %p98 = por %p96, %p97
      %p100 = scmp.ne.s32.totalorder %s85, %s99
      %p101 = scmp.eq.s32.totalorder %s33, 0
      %p102 = por %p100, %p101
      %s104 = sadd.s32 %s103, 1
      %p107 = scmp.eq.s32.totalorder %s27, 1
      %p108 = scmp.ne.s32.totalorder %s103, %s105
      %p109 = scmp.eq.s32.totalorder %s27, 0
      %p110 = por %p108, %p109
      %p111 = scmp.ne.s32.totalorder %s103, %s105
      %p112 = scmp.eq.s32.totalorder %s32, 1
      %p113 = por %p111, %p112
      %p114 = scmp.ne.s32.totalorder %s105, %s106
      %p115 = scmp.eq.s32.totalorder %s32, 0
      %p116 = por %p114, %p115
      %p117 = scmp.ne.s32.totalorder %s105, %s106
      %p118 = scmp.eq.s32.totalorder %s33, 1
      %p119 = por %p117, %p118
      %p121 = scmp.ne.s32.totalorder %s106, %s120
      %p122 = scmp.eq.s32.totalorder %s33, 0
      %p123 = por %p121, %p122
      %s125 = sadd.s32 %s124, 1
      %p128 = scmp.eq.s32.totalorder %s27, 1
      %p129 = scmp.ne.s32.totalorder %s124, %s126
      %p130 = scmp.eq.s32.totalorder %s27, 0
      %p131 = por %p129, %p130
      %p132 = scmp.ne.s32.totalorder %s124, %s126
      %p133 = scmp.eq.s32.totalorder %s32, 1
      %p134 = por %p132, %p133
      %p135 = scmp.ne.s32.totalorder %s126, %s127
      %p136 = scmp.eq.s32.totalorder %s32, 0
      %p137 = por %p135, %p136
      %p138 = scmp.ne.s32.totalorder %s126, %s127
      %p139 = scmp.eq.s32.totalorder %s33, 1
      %p140 = por %p138, %p139
      %p142 = scmp.ne.s32.totalorder %s127, %s141
      %p143 = scmp.eq.s32.totalorder %s33, 0
      %p144 = por %p142, %p143
      %s146 = sadd.s32 %s145, 1
      %p149 = scmp.eq.s32.totalorder %s27, 1
      %p150 = scmp.ne.s32.totalorder %s145, %s147
      %p151 = scmp.eq.s32.totalorder %s27, 0
      %p152 = por %p150, %p151
      %p153 = scmp.ne.s32.totalorder %s145, %s147
      %p154 = scmp.eq.s32.totalorder %s32, 1
      %p155 = por %p153, %p154
      %p156 = scmp.ne.s32.totalorder %s147, %s148
      %p157 = scmp.eq.s32.totalorder %s32, 0
      %p158 = por %p156, %p157
      %p159 = scmp.ne.s32.totalorder %s147, %s148
      %p160 = scmp.eq.s32.totalorder %s33, 1
      %p161 = por %p159, %p160
      %p163 = scmp.ne.s32.totalorder %s148, %s162
      %p164 = scmp.eq.s32.totalorder %s33, 0
      %p165 = por %p163, %p164
      %s166 = ssub.s32 %s27, %s34
      %p167 = scmp.eq.s32.totalorder %s166, 0
      %s169 = sadd.s32 %s168, 1
      %s170 = scalar_select %p167, %s168, %s169
      %p173 = pneg %p167
      %p174 = scmp.eq.s32.totalorder %s27, 1
      %p175 = por %p173, %p174
      %p176 = scmp.ne.s32.totalorder %s168, %s171
      %p177 = scmp.eq.s32.totalorder %s27, 0
      %p178 = por %p176, %p177
      %p179 = scmp.ne.s32.totalorder %s168, %s171
      %p180 = scmp.eq.s32.totalorder %s32, 1
      %p181 = por %p179, %p180
      %p182 = scmp.ne.s32.totalorder %s171, %s172
      %p183 = scmp.eq.s32.totalorder %s32, 0
      %p184 = por %p182, %p183
      %p185 = scmp.ne.s32.totalorder %s171, %s172
      %p186 = scmp.eq.s32.totalorder %s33, 1
      %p187 = por %p185, %p186
      %p189 = scmp.ne.s32.totalorder %s172, %s188
      %p190 = scmp.eq.s32.totalorder %s33, 0
      %p191 = por %p189, %p190
      %s192 = ssub.s32 %s27, %s34
      %p193 = scmp.eq.s32.totalorder %s192, 0
      %s195 = sadd.s32 %s194, 1
      %s196 = scalar_select %p193, %s194, %s195
      %p199 = pneg %p193
      %p200 = scmp.eq.s32.totalorder %s27, 1
      %p201 = por %p199, %p200
      %p202 = scmp.ne.s32.totalorder %s194, %s197
      %p203 = scmp.eq.s32.totalorder %s27, 0
      %p204 = por %p202, %p203
      %p205 = scmp.ne.s32.totalorder %s194, %s197
      %p206 = scmp.eq.s32.totalorder %s32, 1
      %p207 = por %p205, %p206
      %p208 = scmp.ne.s32.totalorder %s197, %s198
      %p209 = scmp.eq.s32.totalorder %s32, 0
      %p210 = por %p208, %p209
      %p211 = scmp.ne.s32.totalorder %s197, %s198
      %p212 = scmp.eq.s32.totalorder %s33, 1
      %p213 = por %p211, %p212
      %p215 = scmp.ne.s32.totalorder %s198, %s214
      %p216 = scmp.eq.s32.totalorder %s33, 0
      %p217 = por %p215, %p216
      %s218 = ssub.s32 %s27, %s34
      %p219 = scmp.eq.s32.totalorder %s218, 0
      %s221 = sadd.s32 %s220, 1
      %s222 = scalar_select %p219, %s220, %s221
      %p225 = pneg %p219
      %p226 = scmp.eq.s32.totalorder %s27, 1
      %p227 = por %p225, %p226
      %p228 = scmp.ne.s32.totalorder %s220, %s223
      %p229 = scmp.eq.s32.totalorder %s27, 0
      %p230 = por %p228, %p229
      %p231 = scmp.ne.s32.totalorder %s220, %s223
      %p232 = scmp.eq.s32.totalorder %s32, 1
      %p233 = por %p231, %p232
      %p234 = scmp.ne.s32.totalorder %s223, %s224
      %p235 = scmp.eq.s32.totalorder %s32, 0
      %p236 = por %p234, %p235
      %p237 = scmp.ne.s32.totalorder %s223, %s224
      %p238 = scmp.eq.s32.totalorder %s33, 1
      %p239 = por %p237, %p238
      %p241 = scmp.ne.s32.totalorder %s224, %s240
      %p242 = scmp.eq.s32.totalorder %s33, 0
      %p243 = por %p241, %p242
      %p244 = scmp.le.s32.totalorder 1, %s27
      %p245 = scmp.lt.s32.totalorder %s27, 3
      %p246 = pnand %p244, %p245
      %p247 = pneg %p246
      // Predicated region
      $region9: #{tpu_custom_call.1} parent=5 // pred_check
        _
      $region10: #{tpu_custom_call.1} parent=5 // pred_check_branch
        %249 = sbr.rel (%p246) target = $region12
      $region11: #{tpu_custom_call.1} parent=5 // pred_region
        %s250 = ssub.s32 %s27, 1
        // Predicated region
        $region13: #{tpu_custom_call.1} parent=11 // pred_check
          %p251 = pneg %p74
        $region14: #{tpu_custom_call.1} parent=11 // pred_check_branch
          %253 = sbr.rel (%p251) target = $region16
        $region15: #{tpu_custom_call.1} parent=11 // pred_region
          %s255 = ssub.s32 896, 896
          %256 = vsyncadd [#allocation6], %s255
          %s257 = sshll.u32 [#allocation5], 4
          %s258 = int_to_ptr.vmem [resolvable:$true] %s257
          %263 = dma.hbm_to_vmem [thread:$0]  %s1, 896, %s258, [#allocation6], 128, 128, 8
        $region16: #{tpu_custom_call.1} parent=11 // pred_fallthru
          _
        // Predicated region
        $region17: #{tpu_custom_call.1} parent=11 // pred_check
          %p264 = pneg %p95
        $region18: #{tpu_custom_call.1} parent=11 // pred_check_branch
          %266 = sbr.rel (%p264) target = $region20
        $region19: #{tpu_custom_call.1} parent=11 // pred_region
          %s268 = ssub.s32 256, 256
          %269 = vsyncadd [#allocation6], %s268
          %s270 = sshll.u32 [#allocation7], 4
          %s271 = int_to_ptr.vmem [resolvable:$true] %s270
          %276 = dma.hbm_to_vmem [thread:$0]  %s2, 256, %s271, [#allocation6], 128, 128, 8
        $region20: #{tpu_custom_call.1} parent=11 // pred_fallthru
          _
        // Predicated region
        $region21: #{tpu_custom_call.1} parent=11 // pred_check
          %p277 = pneg %p116
        $region22: #{tpu_custom_call.1} parent=11 // pred_check_branch
          %279 = sbr.rel (%p277) target = $region24
        $region23: #{tpu_custom_call.1} parent=11 // pred_region
          %s281 = ssub.s32 896, 896
          %282 = vsyncadd [#allocation9], %s281
          %s283 = sshll.u32 [#allocation8], 4
          %s284 = int_to_ptr.vmem [resolvable:$true] %s283
          %289 = dma.hbm_to_vmem [thread:$0]  %s3, 896, %s284, [#allocation9], 128, 128, 8
        $region24: #{tpu_custom_call.1} parent=11 // pred_fallthru
          _
        // Predicated region
        $region25: #{tpu_custom_call.1} parent=11 // pred_check
          %p290 = pneg %p137
        $region26: #{tpu_custom_call.1} parent=11 // pred_check_branch
          %292 = sbr.rel (%p290) target = $region28
        $region27: #{tpu_custom_call.1} parent=11 // pred_region
          %s294 = ssub.s32 2048, 2048
          %295 = vsyncadd [#allocation9], %s294
          %s296 = sshll.u32 [#allocation10], 4
          %s297 = int_to_ptr.vmem [resolvable:$true] %s296
          %302 = dma.hbm_to_vmem [thread:$0]  %s4, 2048, %s297, [#allocation9], 128, 128, 8
        $region28: #{tpu_custom_call.1} parent=11 // pred_fallthru
          _
        // Predicated region
        $region29: #{tpu_custom_call.1} parent=11 // pred_check
          %p303 = pneg %p158
        $region30: #{tpu_custom_call.1} parent=11 // pred_check_branch
          %305 = sbr.rel (%p303) target = $region32
        $region31: #{tpu_custom_call.1} parent=11 // pred_region
          %s307 = ssub.s32 16, 16
          %308 = vsyncadd [#allocation12], %s307
          %s310 = sshll.u32 [#allocation11], 4
          %s311 = int_to_ptr.vmem [resolvable:$true] %s310
          %313 = dma.hbm_to_vmem [thread:$0]  %s5, 16, %s311, [#allocation12]
        $region32: #{tpu_custom_call.1} parent=11 // pred_fallthru
          _
      $region12: #{tpu_custom_call.1} parent=5 // pred_fallthru
        _
      %p314 = scmp.lt.s32.totalorder %s27, 2
      // Predicated region
      $region33: #{tpu_custom_call.1} parent=5 // pred_check
        %p315 = pneg %p314
      $region34: #{tpu_custom_call.1} parent=5 // pred_check_branch
        %317 = sbr.rel (%p315) target = $region36
      $region35: #{tpu_custom_call.1} parent=5 // pred_region
        // Predicated region
        $region37: #{tpu_custom_call.1} parent=35 // pred_check
          %p318 = pneg %p47
        $region38: #{tpu_custom_call.1} parent=35 // pred_check_branch
          %320 = sbr.rel (%p318) target = $region40
        $region39: #{tpu_custom_call.1} parent=35 // pred_region
          %s321 = sand.u32 %s37, 1
          %s322 = scalar_lea.sflag [#allocation3], %s321
          %s323 = sand.u32 %s37, 1
          %s324 = smul.addr %s323, 16
          %s325 = scalar_lea.vmem [#allocation2], %s324
          %s327 = ssub.s32 256, 256
          %328 = vsyncadd %s322, %s327
          %s329 = smul.addr %s27, 2
          %s330 = smul.addr %s329, 128
          %s331 = scalar_lea.hbm %s0, %s330
          %s332 = sshll.u32 %s325, 4
          %s333 = int_to_ptr.vmem [resolvable:$true] %s332
          %338 = dma.hbm_to_vmem [thread:$0]  %s331, 256, %s333, %s322, 128, 128, 8
        $region40: #{tpu_custom_call.1} parent=35 // pred_fallthru
          _
      $region36: #{tpu_custom_call.1} parent=5 // pred_fallthru
        _
      %p339 = scmp.le.s32.totalorder 1, %s27
      %p340 = scmp.lt.s32.totalorder %s27, 3
      %p341 = pnand %p339, %p340
      %p342 = pneg %p341
      // Predicated region
      $region41: #{tpu_custom_call.1} parent=5 // pred_check
        _
      $region42: #{tpu_custom_call.1} parent=5 // pred_check_branch
        %344 = sbr.rel (%p341) target = $region44
      $region43: #{tpu_custom_call.1} parent=5 // pred_region
        %s345 = ssub.s32 %s27, 1
        %s346 = sand.u32 %s40, 1
        %s347 = scalar_lea.sflag [#allocation3], %s346
        %s348 = sand.u32 %s40, 1
        %s349 = smul.addr %s348, 16
        %s350 = scalar_lea.vmem [#allocation2], %s349
        // Predicated region
        $region45: #{tpu_custom_call.1} parent=43 // pred_check
          %p351 = pneg %p53
        $region46: #{tpu_custom_call.1} parent=43 // pred_check_branch
          %353 = sbr.rel (%p351) target = $region48
        $region47: #{tpu_custom_call.1} parent=43 // pred_region
          %354 = dma.done %s347, 256
        $region48: #{tpu_custom_call.1} parent=43 // pred_fallthru
          _
        // Predicated region
        $region49: #{tpu_custom_call.1} parent=43 // pred_check
          %p355 = pneg %p74
        $region50: #{tpu_custom_call.1} parent=43 // pred_check_branch
          %357 = sbr.rel (%p355) target = $region52
        $region51: #{tpu_custom_call.1} parent=43 // pred_region
          %358 = dma.done [#allocation6], 896
        $region52: #{tpu_custom_call.1} parent=43 // pred_fallthru
          _
        // Predicated region
        $region53: #{tpu_custom_call.1} parent=43 // pred_check
          %p359 = pneg %p95
        $region54: #{tpu_custom_call.1} parent=43 // pred_check_branch
          %361 = sbr.rel (%p359) target = $region56
        $region55: #{tpu_custom_call.1} parent=43 // pred_region
          %362 = dma.done [#allocation6], 256
        $region56: #{tpu_custom_call.1} parent=43 // pred_fallthru
          _
        // Predicated region
        $region57: #{tpu_custom_call.1} parent=43 // pred_check
          %p363 = pneg %p116
        $region58: #{tpu_custom_call.1} parent=43 // pred_check_branch
          %365 = sbr.rel (%p363) target = $region60
        $region59: #{tpu_custom_call.1} parent=43 // pred_region
          %366 = dma.done [#allocation9], 896
        $region60: #{tpu_custom_call.1} parent=43 // pred_fallthru
          _
        // Predicated region
        $region61: #{tpu_custom_call.1} parent=43 // pred_check
          %p367 = pneg %p137
        $region62: #{tpu_custom_call.1} parent=43 // pred_check_branch
          %369 = sbr.rel (%p367) target = $region64
        $region63: #{tpu_custom_call.1} parent=43 // pred_region
          %370 = dma.done [#allocation9], 2048
        $region64: #{tpu_custom_call.1} parent=43 // pred_fallthru
          _
        // Predicated region
        $region65: #{tpu_custom_call.1} parent=43 // pred_check
          %p371 = pneg %p158
        $region66: #{tpu_custom_call.1} parent=43 // pred_check_branch
          %373 = sbr.rel (%p371) target = $region68
        $region67: #{tpu_custom_call.1} parent=43 // pred_region
          %374 = dma.done [#allocation12], 16
        $region68: #{tpu_custom_call.1} parent=43 // pred_fallthru
          _
        %s375 = sand.u32 %s40, 1
        %s376 = scalar_lea.sflag [#allocation3], %s375
        %s377 = sand.u32 %s40, 1
        %s378 = smul.addr %s377, 16
        %s379 = scalar_lea.vmem [#allocation2], %s378
        %p380 = pneg %p53
        %p381 = pneg %p50
        %p382 = pneg %p74
        %p383 = pneg %p71
        %p384 = pneg %p95
        %p385 = pneg %p92
        %p386 = pneg %p116
        %p387 = pneg %p113
        %p388 = pneg %p137
        %p389 = pneg %p134
        %p390 = pneg %p158
        %p391 = pneg %p155
        %p392 = pneg %p184
        %p393 = pneg %p181
        %s394 = sand.u32 %s171, 1
        %s395 = scalar_lea.sflag [#allocation4], %s394
        %s396 = sand.u32 %s171, 1
        %s397 = smul.addr %s396, 56
        %s398 = scalar_lea.vmem [#allocation13], %s397
        %p399 = pneg %p210
        %p400 = pneg %p207
        %s401 = sand.u32 %s32, 1
        %s402 = scalar_lea.sflag [#allocation15], %s401
        %s403 = sand.u32 %s197, 1
        %s404 = smul.addr %s403, 56
        %s405 = scalar_lea.vmem [#allocation14], %s404
        %p406 = pneg %p236
        %p407 = pneg %p233
        %s408 = sand.u32 %s32, 1
        %s409 = scalar_lea.sflag [#allocation15], %s408
        %s410 = sand.u32 %s223, 1
        %s411 = scalar_lea.vmem [#allocation16], %s410
        %v412 = vld [vmem:[%s350] sm:$0xff]
        %v413 = vld [vmem:[%s350 + $0x8] sm:$0xff]
        %v414 = vld [vmem:[#allocation5] sm:$0xff]
        %v415 = vld [vmem:[#allocation5 + $0x8] sm:$0xff]
        %v416 = vld [vmem:[#allocation5 + $0x10] sm:$0xff]
        %v417 = vld [vmem:[#allocation5 + $0x18] sm:$0xff]
        %v418 = vld [vmem:[#allocation5 + $0x20] sm:$0xff]
        %v419 = vld [vmem:[#allocation5 + $0x28] sm:$0xff]
        %v420 = vld [vmem:[#allocation5 + $0x30] sm:$0xff]
        %v421 = vld [vmem:[#allocation7] sm:$0xff]
        %v422 = vld [vmem:[#allocation7 + $0x8] sm:$0xff]
        %v423 = vld [vmem:[#allocation8] sm:$0xff]
        %v424 = vld [vmem:[#allocation8 + $0x8] sm:$0xff]
        %v425 = vld [vmem:[#allocation8 + $0x10] sm:$0xff]
        %v426 = vld [vmem:[#allocation8 + $0x18] sm:$0xff]
        %v427 = vld [vmem:[#allocation8 + $0x20] sm:$0xff]
        %v428 = vld [vmem:[#allocation8 + $0x28] sm:$0xff]
        %v429 = vld [vmem:[#allocation8 + $0x30] sm:$0xff]
        %vm430 = vcmask 130048
        %v432 = vsel %vm430, %v414, 0
        %v435 = vsel %vm430, %v415, 0
        %v438 = vsel %vm430, %v416, 0
        %v441 = vsel %vm430, %v417, 0
        %v444 = vsel %vm430, %v418, 0
        %v447 = vsel %vm430, %v419, 0
        %v450 = vsel %vm430, %v420, 0
        %452 = vmatprep.subr.mxu0 0.0
        %453 = vmatpush1.msra.mxu0 %v412
        %454 = vmatprep.subr.mxu0 0.0
        %455 = vmatpush1.msra.mxu0 %v413
        %456 = vmatprep.subr.mxu0 0.0
        %457 = vmatpush1.msra.mxu0 0.0
        %458 = vmatprep.subr.mxu0 0.0
        %459 = vmatpush1.msra.mxu0 0.0
        %460 = vmatprep.subr.mxu0 0.0
        %461 = vmatpush1.msra.mxu0 0.0
        %462 = vmatprep.subr.mxu0 0.0
        %463 = vmatpush1.msra.mxu0 0.0
        %464 = vmatprep.subr.mxu0 0.0
        %465 = vmatpush1.msra.mxu0 0.0
        %466 = vmatprep.subr.mxu0 0.0
        %467 = vmatpush1.msra.mxu0 0.0
        %468 = vmatprep.subr.mxu0 0.0
        %469 = vmatpush1.msra.mxu0 0.0
        %470 = vmatprep.subr.mxu0 0.0
        %471 = vmatpush1.msra.mxu0 0.0
        %472 = vmatprep.subr.mxu0 0.0
        %473 = vmatpush1.msra.mxu0 0.0
        %474 = vmatprep.subr.mxu0 0.0
        %475 = vmatpush1.msra.mxu0 0.0
        %476 = vmatprep.subr.mxu0 0.0
        %477 = vmatpush1.msra.mxu0 0.0
        %478 = vmatprep.subr.mxu0 0.0
        %479 = vmatpush1.msra.mxu0 0.0
        %480 = vmatprep.subr.mxu0 0.0
        %481 = vmatpush1.msra.mxu0 0.0
        %482 = vmatprep.subr.mxu0 0.0
        %483 = vmatpush1.msra.mxu0 0.0
        %484 = vmatprep.subr.mxu0 0.0
        %485 = vmatpush1.msra.mxu0 0.0
        %486 = vmatprep.subr.mxu0 0.0
        %487 = vmatpush1.msra.mxu0 0.0
        %488 = vmatprep.subr.mxu0 0.0
        %489 = vmatpush1.msra.mxu0 0.0
        %490 = vmatprep.subr.mxu0 0.0
        %491 = vmatpush1.msra.mxu0 0.0
        %492 = vmatprep.subr.mxu0 0.0
        %493 = vmatpush1.msra.mxu0 0.0
        %494 = vmatprep.subr.mxu0 0.0
        %495 = vmatpush1.msra.mxu0 0.0
        %496 = vmatprep.subr.mxu0 0.0
        %497 = vmatpush1.msra.mxu0 0.0
        %498 = vmatprep.subr.mxu0 0.0
        %499 = vmatpush1.msra.mxu0 0.0
        %500 = vmatprep.subr.mxu0 0.0
        %501 = vmatpush1.msra.mxu0 0.0
        %502 = vmatprep.subr.mxu0 0.0
        %503 = vmatpush1.msra.mxu0 0.0
        %504 = vmatprep.subr.mxu0 0.0
        %505 = vmatpush1.msra.mxu0 0.0
        %506 = vmatprep.subr.mxu0 0.0
        %507 = vmatpush1.msra.mxu0 0.0
        %508 = vmatprep.subr.mxu0 0.0
        %509 = vmatpush1.msra.mxu0 0.0
        %510 = vmatprep.subr.mxu0 0.0
        %511 = vmatpush1.msra.mxu0 0.0
        %512 = vmatprep.subr.mxu0 0.0
        %513 = vmatpush1.msra.mxu0 0.0
        %514 = vmatprep.subr.mxu0 0.0
        %515 = vmatpush1.msra.mxu0 0.0
        %516 = vmatprep.mubr.f32.mxu0 0.0
        %517 = vmatmul.mubr.f32.gmra.mrb[0].mxu0 %v432
        %v518 = vpop.f32.mrb[0].mxu0
        %v519 = vadd.f32 0.0, %v518
        %v520 = vpop.f32.mrb[0].mxu0
        %521 = vmatprep.mubr.f32.mxu0 0.0
        %522 = vmatmul.mubr.f32.gmra.mrb[0].mxu0 %v435
        %v523 = vpop.f32.mrb[0].mxu0
        %v524 = vadd.f32 0.0, %v523
        %v525 = vpop.f32.mrb[0].mxu0
        %526 = vmatprep.mubr.f32.mxu0 0.0
        %527 = vmatmul.mubr.f32.gmra.mrb[0].mxu0 %v438
        %v528 = vpop.f32.mrb[0].mxu0
        %v529 = vadd.f32 0.0, %v528
        %v530 = vpop.f32.mrb[0].mxu0
        %531 = vmatprep.mubr.f32.mxu0 0.0
        %532 = vmatmul.mubr.f32.gmra.mrb[0].mxu0 %v441
        %v533 = vpop.f32.mrb[0].mxu0
        %v534 = vadd.f32 0.0, %v533
        %v535 = vpop.f32.mrb[0].mxu0
        %536 = vmatprep.mubr.f32.mxu0 0.0
        %537 = vmatmul.mubr.f32.gmra.mrb[0].mxu0 %v444
        %v538 = vpop.f32.mrb[0].mxu0
        %v539 = vadd.f32 0.0, %v538
        %v540 = vpop.f32.mrb[0].mxu0
        %541 = vmatprep.mubr.f32.mxu0 0.0
        %542 = vmatmul.mubr.f32.gmra.mrb[0].mxu0 %v447
        %v543 = vpop.f32.mrb[0].mxu0
        %v544 = vadd.f32 0.0, %v543
        %v545 = vpop.f32.mrb[0].mxu0
        %546 = vmatprep.mubr.f32.mxu0 0.0
        %547 = vmatmul.mubr.f32.gmra.mrb[0].mxu0 %v450
        %v548 = vpop.f32.mrb[0].mxu0
        %v549 = vadd.f32 0.0, %v548
        %v550 = vpop.f32.mrb[0].mxu0
        %551 = vdwg.mxu0
        %553 = vset.pattern.permute.xlu0 0
        %554 = vperm.xlu0 %553, %v423
        %v555 = vpop.permute.xlu0 %554
        %558 = vset.pattern.permute.xlu0 0
        %559 = vperm.xlu0 %558, %v424
        %v560 = vpop.permute.xlu0 %559
        %563 = vset.pattern.permute.xlu0 0
        %564 = vperm.xlu0 %563, %v425
        %v565 = vpop.permute.xlu0 %564
        %568 = vset.pattern.permute.xlu0 0
        %569 = vperm.xlu0 %568, %v426
        %v570 = vpop.permute.xlu0 %569
        %573 = vset.pattern.permute.xlu0 0
        %574 = vperm.xlu0 %573, %v427
        %v575 = vpop.permute.xlu0 %574
        %578 = vset.pattern.permute.xlu0 0
        %579 = vperm.xlu0 %578, %v428
        %v580 = vpop.permute.xlu0 %579
        %583 = vset.pattern.permute.xlu0 0
        %584 = vperm.xlu0 %583, %v429
        %v585 = vpop.permute.xlu0 %584
        %v587 = vmul.f32 %v519, %v555
        %v588 = vmul.f32 %v524, %v560
        %v589 = vmul.f32 %v529, %v565
        %v590 = vmul.f32 %v534, %v570
        %v591 = vmul.f32 %v539, %v575
        %v592 = vmul.f32 %v544, %v580
        %v593 = vmul.f32 %v549, %v585
        %594 = vst [vmem:[%s405] sm:$0xff] %v587
        %595 = vst [vmem:[%s405 + $0x8] sm:$0xff] %v588
        %596 = vst [vmem:[%s405 + $0x10] sm:$0xff] %v589
        %597 = vst [vmem:[%s405 + $0x18] sm:$0xff] %v590
        %598 = vst [vmem:[%s405 + $0x20] sm:$0xff] %v591
        %599 = vst [vmem:[%s405 + $0x28] sm:$0xff] %v592
        %600 = vst [vmem:[%s405 + $0x30] sm:$0xff] %v593
        %v601 = vadd.f32 %v412, %v413
        %v602 = vrot.slane %v601, 4
        %v603 = vadd.f32 %v601, %v602
        %v604 = vrot.slane %v603, 2
        %v605 = vadd.f32 %v603, %v604
        %v606 = vrot.slane %v605, 1
        %v607 = vadd.f32 %v605, %v606
        %v608 = vmul.f32 %v607, 0.0625
        %v609 = vld [vmem:[#allocation10] sm:$0xff]
        %v610 = vld [vmem:[#allocation10 + $0x8] sm:$0xff]
        %v611 = vld [vmem:[#allocation10 + $0x10] sm:$0xff]
        %v612 = vld [vmem:[#allocation10 + $0x18] sm:$0xff]
        %v613 = vld [vmem:[#allocation10 + $0x20] sm:$0xff]
        %v614 = vld [vmem:[#allocation10 + $0x28] sm:$0xff]
        %v615 = vld [vmem:[#allocation10 + $0x30] sm:$0xff]
        %v616 = vld [vmem:[#allocation10 + $0x38] sm:$0xff]
        %v617 = vld [vmem:[#allocation10 + $0x40] sm:$0xff]
        %v618 = vld [vmem:[#allocation10 + $0x48] sm:$0xff]
        %v619 = vld [vmem:[#allocation10 + $0x50] sm:$0xff]
        %v620 = vld [vmem:[#allocation10 + $0x58] sm:$0xff]
        %v621 = vld [vmem:[#allocation10 + $0x60] sm:$0xff]
        %v622 = vld [vmem:[#allocation10 + $0x68] sm:$0xff]
        %v623 = vld [vmem:[#allocation10 + $0x70] sm:$0xff]
        %v624 = vld [vmem:[#allocation10 + $0x78] sm:$0xff]
        %v625 = vld [vmem:[#allocation11] sm:$0x1]
        %626 = vmatprep.subr.mxu0 0.0
        %627 = vmatpush1.msra.mxu0 %v609
        %628 = vmatprep.subr.mxu0 0.0
        %629 = vmatpush1.msra.mxu0 %v610
        %630 = vmatprep.subr.mxu0 0.0
        %631 = vmatpush1.msra.mxu0 %v611
        %632 = vmatprep.subr.mxu0 0.0
        %633 = vmatpush1.msra.mxu0 %v612
        %634 = vmatprep.subr.mxu0 0.0
        %635 = vmatpush1.msra.mxu0 %v613
        %636 = vmatprep.subr.mxu0 0.0
        %637 = vmatpush1.msra.mxu0 %v614
        %638 = vmatprep.subr.mxu0 0.0
        %639 = vmatpush1.msra.mxu0 %v615
        %640 = vmatprep.subr.mxu0 0.0
        %641 = vmatpush1.msra.mxu0 %v616
        %642 = vmatprep.subr.mxu0 0.0
        %643 = vmatpush1.msra.mxu0 %v617
        %644 = vmatprep.subr.mxu0 0.0
        %645 = vmatpush1.msra.mxu0 %v618
        %646 = vmatprep.subr.mxu0 0.0
        %647 = vmatpush1.msra.mxu0 %v619
        %648 = vmatprep.subr.mxu0 0.0
        %649 = vmatpush1.msra.mxu0 %v620
        %650 = vmatprep.subr.mxu0 0.0
        %651 = vmatpush1.msra.mxu0 %v621
        %652 = vmatprep.subr.mxu0 0.0
        %653 = vmatpush1.msra.mxu0 %v622
        %654 = vmatprep.subr.mxu0 0.0
        %655 = vmatpush1.msra.mxu0 %v623
        %656 = vmatprep.subr.mxu0 0.0
        %657 = vmatpush1.msra.mxu0 %v624
        %658 = vmatprep.subr.mxu0 0.0
        %659 = vmatpush1.msra.mxu0 0.0
        %660 = vmatprep.subr.mxu0 0.0
        %661 = vmatpush1.msra.mxu0 0.0
        %662 = vmatprep.subr.mxu0 0.0
        %663 = vmatpush1.msra.mxu0 0.0
        %664 = vmatprep.subr.mxu0 0.0
        %665 = vmatpush1.msra.mxu0 0.0
        %666 = vmatprep.subr.mxu0 0.0
        %667 = vmatpush1.msra.mxu0 0.0
        %668 = vmatprep.subr.mxu0 0.0
        %669 = vmatpush1.msra.mxu0 0.0
        %670 = vmatprep.subr.mxu0 0.0
        %671 = vmatpush1.msra.mxu0 0.0
        %672 = vmatprep.subr.mxu0 0.0
        %673 = vmatpush1.msra.mxu0 0.0
        %674 = vmatprep.subr.mxu0 0.0
        %675 = vmatpush1.msra.mxu0 0.0
        %676 = vmatprep.subr.mxu0 0.0
        %677 = vmatpush1.msra.mxu0 0.0
        %678 = vmatprep.subr.mxu0 0.0
        %679 = vmatpush1.msra.mxu0 0.0
        %680 = vmatprep.subr.mxu0 0.0
        %681 = vmatpush1.msra.mxu0 0.0
        %682 = vmatprep.subr.mxu0 0.0
        %683 = vmatpush1.msra.mxu0 0.0
        %684 = vmatprep.subr.mxu0 0.0
        %685 = vmatpush1.msra.mxu0 0.0
        %686 = vmatprep.subr.mxu0 0.0
        %687 = vmatpush1.msra.mxu0 0.0
        %688 = vmatprep.subr.mxu0 0.0
        %689 = vmatpush1.msra.mxu0 0.0
        %690 = vmatprep.mubr.f32.mxu0 0.0
        %691 = vmatmul.mubr.f32.gmra.mrb[0].mxu0 %v608
        %v692 = vpop.f32.mrb[0].mxu0
        %v693 = vadd.f32 %v625, %v692
        %v694 = vpop.f32.mrb[0].mxu0
        %695 = vdwg.mxu0
        %696 = vst [vmem:[%s411] sm:$0x1] %v693
        %vm697 = vcmp.gt.f32.partialorder %v421, 0.0
        %vm698 = vcmp.gt.f32.partialorder %v422, 0.0
        %v699 = vsel %vm697, 1, 0
        %v700 = vsel %vm698, 1, 0
        %701 = vset.pattern.permute.xlu0 0
        %702 = vperm.xlu0 %701, %v699
        %v703 = vpop.permute.xlu0 %702
        %704 = vset.pattern.permute.xlu0 0
        %705 = vperm.xlu0 %704, %v700
        %v706 = vpop.permute.xlu0 %705
        %vm707 = vcmp.eq.s32.totalorder %v703, 1
        %vm708 = vcmp.eq.s32.totalorder %v706, 1
        %v709 = vsel %vm707, %v412, -3.4e+38
        %v710 = vsel %vm708, %v413, -3.4e+38
        %v711 = vmax.f32 %v709, %v710
        %v712 = vrot.slane %v711, 4
        %v713 = vmax.f32 %v711, %v712
        %v714 = vrot.slane %v713, 2
        %v715 = vmax.f32 %v713, %v714
        %v716 = vrot.slane %v715, 1
        %v717 = vmax.f32 %v715, %v716
        %s718 = vtos %v423
        %p719 = scmp.gt.f32.partialorder %s718, 0.0
        %s720 = scalar_select %p719, 1, 0
        %v721 = vstv %s720
        %vm722 = vcmp.eq.s32.totalorder %v721, 1
        %v723 = vsel %vm722, %v717, 0.0
        %724 = vst [vmem:[%s398] sm:$0x1] %v723
        %725 = vset.pattern.permute.xlu0 1
        %726 = vperm.xlu0 %725, %v699
        %v727 = vpop.permute.xlu0 %726
        %728 = vset.pattern.permute.xlu0 1
        %729 = vperm.xlu0 %728, %v700
        %v730 = vpop.permute.xlu0 %729
        %vm731 = vcmp.eq.s32.totalorder %v727, 1
        %vm732 = vcmp.eq.s32.totalorder %v730, 1
        %v733 = vsel %vm731, %v412, -3.4e+38
        %v734 = vsel %vm732, %v413, -3.4e+38
        %v735 = vmax.f32 %v733, %v734
        %v736 = vrot.slane %v735, 4
        %v737 = vmax.f32 %v735, %v736
        %v738 = vrot.slane %v737, 2
        %v739 = vmax.f32 %v737, %v738
        %v740 = vrot.slane %v739, 1
        %v741 = vmax.f32 %v739, %v740
        %v742 = vrot.slane %v423, 1
        %s743 = vtos %v742
        %p744 = scmp.gt.f32.partialorder %s743, 0.0
        %s745 = scalar_select %p744, 1, 0
        %v746 = vstv %s745
        %vm747 = vcmp.eq.s32.totalorder %v746, 1
        %v748 = vsel %vm747, %v741, 0.0
        %749 = vst [vmem:[%s398 + $0x1] sm:$0x1] %v748
        %750 = vset.pattern.permute.xlu0 2
        %751 = vperm.xlu0 %750, %v699
        %v752 = vpop.permute.xlu0 %751
        %753 = vset.pattern.permute.xlu0 2
        %754 = vperm.xlu0 %753, %v700
        %v755 = vpop.permute.xlu0 %754
        %vm756 = vcmp.eq.s32.totalorder %v752, 1
        %vm757 = vcmp.eq.s32.totalorder %v755, 1
        %v758 = vsel %vm756, %v412, -3.4e+38
        %v759 = vsel %vm757, %v413, -3.4e+38
        %v760 = vmax.f32 %v758, %v759
        %v761 = vrot.slane %v760, 4
        %v762 = vmax.f32 %v760, %v761
        %v763 = vrot.slane %v762, 2
        %v764 = vmax.f32 %v762, %v763
        %v765 = vrot.slane %v764, 1
        %v766 = vmax.f32 %v764, %v765
        %v767 = vrot.slane %v423, 2
        %s768 = vtos %v767
        %p769 = scmp.gt.f32.partialorder %s768, 0.0
        %s770 = scalar_select %p769, 1, 0
        %v771 = vstv %s770
        %vm772 = vcmp.eq.s32.totalorder %v771, 1
        %v773 = vsel %vm772, %v766, 0.0
        %774 = vst [vmem:[%s398 + $0x2] sm:$0x1] %v773
        %775 = vset.pattern.permute.xlu0 3
        %776 = vperm.xlu0 %775, %v699
        %v777 = vpop.permute.xlu0 %776
        %778 = vset.pattern.permute.xlu0 3
        %779 = vperm.xlu0 %778, %v700
        %v780 = vpop.permute.xlu0 %779
        %vm781 = vcmp.eq.s32.totalorder %v777, 1
        %vm782 = vcmp.eq.s32.totalorder %v780, 1
        %v783 = vsel %vm781, %v412, -3.4e+38
        %v784 = vsel %vm782, %v413, -3.4e+38
        %v785 = vmax.f32 %v783, %v784
        %v786 = vrot.slane %v785, 4
        %v787 = vmax.f32 %v785, %v786
        %v788 = vrot.slane %v787, 2
        %v789 = vmax.f32 %v787, %v788
        %v790 = vrot.slane %v789, 1
        %v791 = vmax.f32 %v789, %v790
        %v792 = vrot.slane %v423, 3
        %s793 = vtos %v792
        %p794 = scmp.gt.f32.partialorder %s793, 0.0
        %s795 = scalar_select %p794, 1, 0
        %v796 = vstv %s795
        %vm797 = vcmp.eq.s32.totalorder %v796, 1
        %v798 = vsel %vm797, %v791, 0.0
        %799 = vst [vmem:[%s398 + $0x3] sm:$0x1] %v798
        %800 = vset.pattern.permute.xlu0 4
        %801 = vperm.xlu0 %800, %v699
        %v802 = vpop.permute.xlu0 %801
        %803 = vset.pattern.permute.xlu0 4
        %804 = vperm.xlu0 %803, %v700
        %v805 = vpop.permute.xlu0 %804
        %vm806 = vcmp.eq.s32.totalorder %v802, 1
        %vm807 = vcmp.eq.s32.totalorder %v805, 1
        %v808 = vsel %vm806, %v412, -3.4e+38
        %v809 = vsel %vm807, %v413, -3.4e+38
        %v810 = vmax.f32 %v808, %v809
        %v811 = vrot.slane %v810, 4
        %v812 = vmax.f32 %v810, %v811
        %v813 = vrot.slane %v812, 2
        %v814 = vmax.f32 %v812, %v813
        %v815 = vrot.slane %v814, 1
        %v816 = vmax.f32 %v814, %v815
        %v817 = vrot.slane %v423, 4
        %s818 = vtos %v817
        %p819 = scmp.gt.f32.partialorder %s818, 0.0
        %s820 = scalar_select %p819, 1, 0
        %v821 = vstv %s820
        %vm822 = vcmp.eq.s32.totalorder %v821, 1
        %v823 = vsel %vm822, %v816, 0.0
        %824 = vst [vmem:[%s398 + $0x4] sm:$0x1] %v823
        %825 = vset.pattern.permute.xlu0 5
        %826 = vperm.xlu0 %825, %v699
        %v827 = vpop.permute.xlu0 %826
        %828 = vset.pattern.permute.xlu0 5
        %829 = vperm.xlu0 %828, %v700
        %v830 = vpop.permute.xlu0 %829
        %vm831 = vcmp.eq.s32.totalorder %v827, 1
        %vm832 = vcmp.eq.s32.totalorder %v830, 1
        %v833 = vsel %vm831, %v412, -3.4e+38
        %v834 = vsel %vm832, %v413, -3.4e+38
        %v835 = vmax.f32 %v833, %v834
        %v836 = vrot.slane %v835, 4
        %v837 = vmax.f32 %v835, %v836
        %v838 = vrot.slane %v837, 2
        %v839 = vmax.f32 %v837, %v838
        %v840 = vrot.slane %v839, 1
        %v841 = vmax.f32 %v839, %v840
        %v842 = vrot.slane %v423, 5
        %s843 = vtos %v842
        %p844 = scmp.gt.f32.partialorder %s843, 0.0
        %s845 = scalar_select %p844, 1, 0
        %v846 = vstv %s845
        %vm847 = vcmp.eq.s32.totalorder %v846, 1
        %v848 = vsel %vm847, %v841, 0.0
        %849 = vst [vmem:[%s398 + $0x5] sm:$0x1] %v848
        %850 = vset.pattern.permute.xlu0 6
        %851 = vperm.xlu0 %850, %v699
        %v852 = vpop.permute.xlu0 %851
        %853 = vset.pattern.permute.xlu0 6
        %854 = vperm.xlu0 %853, %v700
        %v855 = vpop.permute.xlu0 %854
        %vm856 = vcmp.eq.s32.totalorder %v852, 1
        %vm857 = vcmp.eq.s32.totalorder %v855, 1
        %v858 = vsel %vm856, %v412, -3.4e+38
        %v859 = vsel %vm857, %v413, -3.4e+38
        %v860 = vmax.f32 %v858, %v859
        %v861 = vrot.slane %v860, 4
        %v862 = vmax.f32 %v860, %v861
        %v863 = vrot.slane %v862, 2
        %v864 = vmax.f32 %v862, %v863
        %v865 = vrot.slane %v864, 1
        %v866 = vmax.f32 %v864, %v865
        %v867 = vrot.slane %v423, 6
        %s868 = vtos %v867
        %p869 = scmp.gt.f32.partialorder %s868, 0.0
        %s870 = scalar_select %p869, 1, 0
        %v871 = vstv %s870
        %vm872 = vcmp.eq.s32.totalorder %v871, 1
        %v873 = vsel %vm872, %v866, 0.0
        %874 = vst [vmem:[%s398 + $0x6] sm:$0x1] %v873
        %875 = vset.pattern.permute.xlu0 7
        %876 = vperm.xlu0 %875, %v699
        %v877 = vpop.permute.xlu0 %876
        %878 = vset.pattern.permute.xlu0 7
        %879 = vperm.xlu0 %878, %v700
        %v880 = vpop.permute.xlu0 %879
        %vm881 = vcmp.eq.s32.totalorder %v877, 1
        %vm882 = vcmp.eq.s32.totalorder %v880, 1
        %v883 = vsel %vm881, %v412, -3.4e+38
        %v884 = vsel %vm882, %v413, -3.4e+38
        %v885 = vmax.f32 %v883, %v884
        %v886 = vrot.slane %v885, 4
        %v887 = vmax.f32 %v885, %v886
        %v888 = vrot.slane %v887, 2
        %v889 = vmax.f32 %v887, %v888
        %v890 = vrot.slane %v889, 1
        %v891 = vmax.f32 %v889, %v890
        %v892 = vrot.slane %v423, 7
        %s893 = vtos %v892
        %p894 = scmp.gt.f32.partialorder %s893, 0.0
        %s895 = scalar_select %p894, 1, 0
        %v896 = vstv %s895
        %vm897 = vcmp.eq.s32.totalorder %v896, 1
        %v898 = vsel %vm897, %v891, 0.0
        %899 = vst [vmem:[%s398 + $0x7] sm:$0x1] %v898
        %900 = vset.pattern.permute.xlu0 8
        %901 = vperm.xlu0 %900, %v699
        %v902 = vpop.permute.xlu0 %901
        %903 = vset.pattern.permute.xlu0 8
        %904 = vperm.xlu0 %903, %v700
        %v905 = vpop.permute.xlu0 %904
        %vm906 = vcmp.eq.s32.totalorder %v902, 1
        %vm907 = vcmp.eq.s32.totalorder %v905, 1
        %v908 = vsel %vm906, %v412, -3.4e+38
        %v909 = vsel %vm907, %v413, -3.4e+38
        %v910 = vmax.f32 %v908, %v909
        %v911 = vrot.slane %v910, 4
        %v912 = vmax.f32 %v910, %v911
        %v913 = vrot.slane %v912, 2
        %v914 = vmax.f32 %v912, %v913
        %v915 = vrot.slane %v914, 1
        %v916 = vmax.f32 %v914, %v915
        %s917 = vtos %v424
        %p918 = scmp.gt.f32.partialorder %s917, 0.0
        %s919 = scalar_select %p918, 1, 0
        %v920 = vstv %s919
        %vm921 = vcmp.eq.s32.totalorder %v920, 1
        %v922 = vsel %vm921, %v916, 0.0
        %923 = vst [vmem:[%s398 + $0x8] sm:$0x1] %v922
        %924 = vset.pattern.permute.xlu0 9
        %925 = vperm.xlu0 %924, %v699
        %v926 = vpop.permute.xlu0 %925
        %927 = vset.pattern.permute.xlu0 9
        %928 = vperm.xlu0 %927, %v700
        %v929 = vpop.permute.xlu0 %928
        %vm930 = vcmp.eq.s32.totalorder %v926, 1
        %vm931 = vcmp.eq.s32.totalorder %v929, 1
        %v932 = vsel %vm930, %v412, -3.4e+38
        %v933 = vsel %vm931, %v413, -3.4e+38
        %v934 = vmax.f32 %v932, %v933
        %v935 = vrot.slane %v934, 4
        %v936 = vmax.f32 %v934, %v935
        %v937 = vrot.slane %v936, 2
        %v938 = vmax.f32 %v936, %v937
        %v939 = vrot.slane %v938, 1
        %v940 = vmax.f32 %v938, %v939
        %v941 = vrot.slane %v424, 1
        %s942 = vtos %v941
        %p943 = scmp.gt.f32.partialorder %s942, 0.0
        %s944 = scalar_select %p943, 1, 0
        %v945 = vstv %s944
        %vm946 = vcmp.eq.s32.totalorder %v945, 1
        %v947 = vsel %vm946, %v940, 0.0
        %948 = vst [vmem:[%s398 + $0x9] sm:$0x1] %v947
        %949 = vset.pattern.permute.xlu0 10
        %950 = vperm.xlu0 %949, %v699
        %v951 = vpop.permute.xlu0 %950
        %952 = vset.pattern.permute.xlu0 10
        %953 = vperm.xlu0 %952, %v700
        %v954 = vpop.permute.xlu0 %953
        %vm955 = vcmp.eq.s32.totalorder %v951, 1
        %vm956 = vcmp.eq.s32.totalorder %v954, 1
        %v957 = vsel %vm955, %v412, -3.4e+38
        %v958 = vsel %vm956, %v413, -3.4e+38
        %v959 = vmax.f32 %v957, %v958
        %v960 = vrot.slane %v959, 4
        %v961 = vmax.f32 %v959, %v960
        %v962 = vrot.slane %v961, 2
        %v963 = vmax.f32 %v961, %v962
        %v964 = vrot.slane %v963, 1
        %v965 = vmax.f32 %v963, %v964
        %v966 = vrot.slane %v424, 2
        %s967 = vtos %v966
        %p968 = scmp.gt.f32.partialorder %s967, 0.0
        %s969 = scalar_select %p968, 1, 0
        %v970 = vstv %s969
        %vm971 = vcmp.eq.s32.totalorder %v970, 1
        %v972 = vsel %vm971, %v965, 0.0
        %973 = vst [vmem:[%s398 + $0xa] sm:$0x1] %v972
        %974 = vset.pattern.permute.xlu0 11
        %975 = vperm.xlu0 %974, %v699
        %v976 = vpop.permute.xlu0 %975
        %977 = vset.pattern.permute.xlu0 11
        %978 = vperm.xlu0 %977, %v700
        %v979 = vpop.permute.xlu0 %978
        %vm980 = vcmp.eq.s32.totalorder %v976, 1
        %vm981 = vcmp.eq.s32.totalorder %v979, 1
        %v982 = vsel %vm980, %v412, -3.4e+38
        %v983 = vsel %vm981, %v413, -3.4e+38
        %v984 = vmax.f32 %v982, %v983
        %v985 = vrot.slane %v984, 4
        %v986 = vmax.f32 %v984, %v985
        %v987 = vrot.slane %v986, 2
        %v988 = vmax.f32 %v986, %v987
        %v989 = vrot.slane %v988, 1
        %v990 = vmax.f32 %v988, %v989
        %v991 = vrot.slane %v424, 3
        %s992 = vtos %v991
        %p993 = scmp.gt.f32.partialorder %s992, 0.0
        %s994 = scalar_select %p993, 1, 0
        %v995 = vstv %s994
        %vm996 = vcmp.eq.s32.totalorder %v995, 1
        %v997 = vsel %vm996, %v990, 0.0
        %998 = vst [vmem:[%s398 + $0xb] sm:$0x1] %v997
        %999 = vset.pattern.permute.xlu0 12
        %1000 = vperm.xlu0 %999, %v699
        %v1001 = vpop.permute.xlu0 %1000
        %1002 = vset.pattern.permute.xlu0 12
        %1003 = vperm.xlu0 %1002, %v700
        %v1004 = vpop.permute.xlu0 %1003
        %vm1005 = vcmp.eq.s32.totalorder %v1001, 1
        %vm1006 = vcmp.eq.s32.totalorder %v1004, 1
        %v1007 = vsel %vm1005, %v412, -3.4e+38
        %v1008 = vsel %vm1006, %v413, -3.4e+38
        %v1009 = vmax.f32 %v1007, %v1008
        %v1010 = vrot.slane %v1009, 4
        %v1011 = vmax.f32 %v1009, %v1010
        %v1012 = vrot.slane %v1011, 2
        %v1013 = vmax.f32 %v1011, %v1012
        %v1014 = vrot.slane %v1013, 1
        %v1015 = vmax.f32 %v1013, %v1014
        %v1016 = vrot.slane %v424, 4
        %s1017 = vtos %v1016
        %p1018 = scmp.gt.f32.partialorder %s1017, 0.0
        %s1019 = scalar_select %p1018, 1, 0
        %v1020 = vstv %s1019
        %vm1021 = vcmp.eq.s32.totalorder %v1020, 1
        %v1022 = vsel %vm1021, %v1015, 0.0
        %1023 = vst [vmem:[%s398 + $0xc] sm:$0x1] %v1022
        %1024 = vset.pattern.permute.xlu0 13
        %1025 = vperm.xlu0 %1024, %v699
        %v1026 = vpop.permute.xlu0 %1025
        %1027 = vset.pattern.permute.xlu0 13
        %1028 = vperm.xlu0 %1027, %v700
        %v1029 = vpop.permute.xlu0 %1028
        %vm1030 = vcmp.eq.s32.totalorder %v1026, 1
        %vm1031 = vcmp.eq.s32.totalorder %v1029, 1
        %v1032 = vsel %vm1030, %v412, -3.4e+38
        %v1033 = vsel %vm1031, %v413, -3.4e+38
        %v1034 = vmax.f32 %v1032, %v1033
        %v1035 = vrot.slane %v1034, 4
        %v1036 = vmax.f32 %v1034, %v1035
        %v1037 = vrot.slane %v1036, 2
        %v1038 = vmax.f32 %v1036, %v1037
        %v1039 = vrot.slane %v1038, 1
        %v1040 = vmax.f32 %v1038, %v1039
        %v1041 = vrot.slane %v424, 5
        %s1042 = vtos %v1041
        %p1043 = scmp.gt.f32.partialorder %s1042, 0.0
        %s1044 = scalar_select %p1043, 1, 0
        %v1045 = vstv %s1044
        %vm1046 = vcmp.eq.s32.totalorder %v1045, 1
        %v1047 = vsel %vm1046, %v1040, 0.0
        %1048 = vst [vmem:[%s398 + $0xd] sm:$0x1] %v1047
        %1049 = vset.pattern.permute.xlu0 14
        %1050 = vperm.xlu0 %1049, %v699
        %v1051 = vpop.permute.xlu0 %1050
        %1052 = vset.pattern.permute.xlu0 14
        %1053 = vperm.xlu0 %1052, %v700
        %v1054 = vpop.permute.xlu0 %1053
        %vm1055 = vcmp.eq.s32.totalorder %v1051, 1
        %vm1056 = vcmp.eq.s32.totalorder %v1054, 1
        %v1057 = vsel %vm1055, %v412, -3.4e+38
        %v1058 = vsel %vm1056, %v413, -3.4e+38
        %v1059 = vmax.f32 %v1057, %v1058
        %v1060 = vrot.slane %v1059, 4
        %v1061 = vmax.f32 %v1059, %v1060
        %v1062 = vrot.slane %v1061, 2
        %v1063 = vmax.f32 %v1061, %v1062
        %v1064 = vrot.slane %v1063, 1
        %v1065 = vmax.f32 %v1063, %v1064
        %v1066 = vrot.slane %v424, 6
        %s1067 = vtos %v1066
        %p1068 = scmp.gt.f32.partialorder %s1067, 0.0
        %s1069 = scalar_select %p1068, 1, 0
        %v1070 = vstv %s1069
        %vm1071 = vcmp.eq.s32.totalorder %v1070, 1
        %v1072 = vsel %vm1071, %v1065, 0.0
        %1073 = vst [vmem:[%s398 + $0xe] sm:$0x1] %v1072
        %1074 = vset.pattern.permute.xlu0 15
        %1075 = vperm.xlu0 %1074, %v699
        %v1076 = vpop.permute.xlu0 %1075
        %1077 = vset.pattern.permute.xlu0 15
        %1078 = vperm.xlu0 %1077, %v700
        %v1079 = vpop.permute.xlu0 %1078
        %vm1080 = vcmp.eq.s32.totalorder %v1076, 1
        %vm1081 = vcmp.eq.s32.totalorder %v1079, 1
        %v1082 = vsel %vm1080, %v412, -3.4e+38
        %v1083 = vsel %vm1081, %v413, -3.4e+38
        %v1084 = vmax.f32 %v1082, %v1083
        %v1085 = vrot.slane %v1084, 4
        %v1086 = vmax.f32 %v1084, %v1085
        %v1087 = vrot.slane %v1086, 2
        %v1088 = vmax.f32 %v1086, %v1087
        %v1089 = vrot.slane %v1088, 1
        %v1090 = vmax.f32 %v1088, %v1089
        %v1091 = vrot.slane %v424, 7
        %s1092 = vtos %v1091
        %p1093 = scmp.gt.f32.partialorder %s1092, 0.0
        %s1094 = scalar_select %p1093, 1, 0
        %v1095 = vstv %s1094
        %vm1096 = vcmp.eq.s32.totalorder %v1095, 1
        %v1097 = vsel %vm1096, %v1090, 0.0
        %1098 = vst [vmem:[%s398 + $0xf] sm:$0x1] %v1097
        %1099 = vset.pattern.permute.xlu0 16
        %1100 = vperm.xlu0 %1099, %v699
        %v1101 = vpop.permute.xlu0 %1100
        %1102 = vset.pattern.permute.xlu0 16
        %1103 = vperm.xlu0 %1102, %v700
        %v1104 = vpop.permute.xlu0 %1103
        %vm1105 = vcmp.eq.s32.totalorder %v1101, 1
        %vm1106 = vcmp.eq.s32.totalorder %v1104, 1
        %v1107 = vsel %vm1105, %v412, -3.4e+38
        %v1108 = vsel %vm1106, %v413, -3.4e+38
        %v1109 = vmax.f32 %v1107, %v1108
        %v1110 = vrot.slane %v1109, 4
        %v1111 = vmax.f32 %v1109, %v1110
        %v1112 = vrot.slane %v1111, 2
        %v1113 = vmax.f32 %v1111, %v1112
        %v1114 = vrot.slane %v1113, 1
        %v1115 = vmax.f32 %v1113, %v1114
        %s1116 = vtos %v425
        %p1117 = scmp.gt.f32.partialorder %s1116, 0.0
        %s1118 = scalar_select %p1117, 1, 0
        %v1119 = vstv %s1118
        %vm1120 = vcmp.eq.s32.totalorder %v1119, 1
        %v1121 = vsel %vm1120, %v1115, 0.0
        %1122 = vst [vmem:[%s398 + $0x10] sm:$0x1] %v1121
        %1123 = vset.pattern.permute.xlu0 17
        %1124 = vperm.xlu0 %1123, %v699
        %v1125 = vpop.permute.xlu0 %1124
        %1126 = vset.pattern.permute.xlu0 17
        %1127 = vperm.xlu0 %1126, %v700
        %v1128 = vpop.permute.xlu0 %1127
        %vm1129 = vcmp.eq.s32.totalorder %v1125, 1
        %vm1130 = vcmp.eq.s32.totalorder %v1128, 1
        %v1131 = vsel %vm1129, %v412, -3.4e+38
        %v1132 = vsel %vm1130, %v413, -3.4e+38
        %v1133 = vmax.f32 %v1131, %v1132
        %v1134 = vrot.slane %v1133, 4
        %v1135 = vmax.f32 %v1133, %v1134
        %v1136 = vrot.slane %v1135, 2
        %v1137 = vmax.f32 %v1135, %v1136
        %v1138 = vrot.slane %v1137, 1
        %v1139 = vmax.f32 %v1137, %v1138
        %v1140 = vrot.slane %v425, 1
        %s1141 = vtos %v1140
        %p1142 = scmp.gt.f32.partialorder %s1141, 0.0
        %s1143 = scalar_select %p1142, 1, 0
        %v1144 = vstv %s1143
        %vm1145 = vcmp.eq.s32.totalorder %v1144, 1
        %v1146 = vsel %vm1145, %v1139, 0.0
        %1147 = vst [vmem:[%s398 + $0x11] sm:$0x1] %v1146
        %1148 = vset.pattern.permute.xlu0 18
        %1149 = vperm.xlu0 %1148, %v699
        %v1150 = vpop.permute.xlu0 %1149
        %1151 = vset.pattern.permute.xlu0 18
        %1152 = vperm.xlu0 %1151, %v700
        %v1153 = vpop.permute.xlu0 %1152
        %vm1154 = vcmp.eq.s32.totalorder %v1150, 1
        %vm1155 = vcmp.eq.s32.totalorder %v1153, 1
        %v1156 = vsel %vm1154, %v412, -3.4e+38
        %v1157 = vsel %vm1155, %v413, -3.4e+38
        %v1158 = vmax.f32 %v1156, %v1157
        %v1159 = vrot.slane %v1158, 4
        %v1160 = vmax.f32 %v1158, %v1159
        %v1161 = vrot.slane %v1160, 2
        %v1162 = vmax.f32 %v1160, %v1161
        %v1163 = vrot.slane %v1162, 1
        %v1164 = vmax.f32 %v1162, %v1163
        %v1165 = vrot.slane %v425, 2
        %s1166 = vtos %v1165
        %p1167 = scmp.gt.f32.partialorder %s1166, 0.0
        %s1168 = scalar_select %p1167, 1, 0
        %v1169 = vstv %s1168
        %vm1170 = vcmp.eq.s32.totalorder %v1169, 1
        %v1171 = vsel %vm1170, %v1164, 0.0
        %1172 = vst [vmem:[%s398 + $0x12] sm:$0x1] %v1171
        %1173 = vset.pattern.permute.xlu0 19
        %1174 = vperm.xlu0 %1173, %v699
        %v1175 = vpop.permute.xlu0 %1174
        %1176 = vset.pattern.permute.xlu0 19
        %1177 = vperm.xlu0 %1176, %v700
        %v1178 = vpop.permute.xlu0 %1177
        %vm1179 = vcmp.eq.s32.totalorder %v1175, 1
        %vm1180 = vcmp.eq.s32.totalorder %v1178, 1
        %v1181 = vsel %vm1179, %v412, -3.4e+38
        %v1182 = vsel %vm1180, %v413, -3.4e+38
        %v1183 = vmax.f32 %v1181, %v1182
        %v1184 = vrot.slane %v1183, 4
        %v1185 = vmax.f32 %v1183, %v1184
        %v1186 = vrot.slane %v1185, 2
        %v1187 = vmax.f32 %v1185, %v1186
        %v1188 = vrot.slane %v1187, 1
        %v1189 = vmax.f32 %v1187, %v1188
        %v1190 = vrot.slane %v425, 3
        %s1191 = vtos %v1190
        %p1192 = scmp.gt.f32.partialorder %s1191, 0.0
        %s1193 = scalar_select %p1192, 1, 0
        %v1194 = vstv %s1193
        %vm1195 = vcmp.eq.s32.totalorder %v1194, 1
        %v1196 = vsel %vm1195, %v1189, 0.0
        %1197 = vst [vmem:[%s398 + $0x13] sm:$0x1] %v1196
        %1198 = vset.pattern.permute.xlu0 20
        %1199 = vperm.xlu0 %1198, %v699
        %v1200 = vpop.permute.xlu0 %1199
        %1201 = vset.pattern.permute.xlu0 20
        %1202 = vperm.xlu0 %1201, %v700
        %v1203 = vpop.permute.xlu0 %1202
        %vm1204 = vcmp.eq.s32.totalorder %v1200, 1
        %vm1205 = vcmp.eq.s32.totalorder %v1203, 1
        %v1206 = vsel %vm1204, %v412, -3.4e+38
        %v1207 = vsel %vm1205, %v413, -3.4e+38
        %v1208 = vmax.f32 %v1206, %v1207
        %v1209 = vrot.slane %v1208, 4
        %v1210 = vmax.f32 %v1208, %v1209
        %v1211 = vrot.slane %v1210, 2
        %v1212 = vmax.f32 %v1210, %v1211
        %v1213 = vrot.slane %v1212, 1
        %v1214 = vmax.f32 %v1212, %v1213
        %v1215 = vrot.slane %v425, 4
        %s1216 = vtos %v1215
        %p1217 = scmp.gt.f32.partialorder %s1216, 0.0
        %s1218 = scalar_select %p1217, 1, 0
        %v1219 = vstv %s1218
        %vm1220 = vcmp.eq.s32.totalorder %v1219, 1
        %v1221 = vsel %vm1220, %v1214, 0.0
        %1222 = vst [vmem:[%s398 + $0x14] sm:$0x1] %v1221
        %1223 = vset.pattern.permute.xlu0 21
        %1224 = vperm.xlu0 %1223, %v699
        %v1225 = vpop.permute.xlu0 %1224
        %1226 = vset.pattern.permute.xlu0 21
        %1227 = vperm.xlu0 %1226, %v700
        %v1228 = vpop.permute.xlu0 %1227
        %vm1229 = vcmp.eq.s32.totalorder %v1225, 1
        %vm1230 = vcmp.eq.s32.totalorder %v1228, 1
        %v1231 = vsel %vm1229, %v412, -3.4e+38
        %v1232 = vsel %vm1230, %v413, -3.4e+38
        %v1233 = vmax.f32 %v1231, %v1232
        %v1234 = vrot.slane %v1233, 4
        %v1235 = vmax.f32 %v1233, %v1234
        %v1236 = vrot.slane %v1235, 2
        %v1237 = vmax.f32 %v1235, %v1236
        %v1238 = vrot.slane %v1237, 1
        %v1239 = vmax.f32 %v1237, %v1238
        %v1240 = vrot.slane %v425, 5
        %s1241 = vtos %v1240
        %p1242 = scmp.gt.f32.partialorder %s1241, 0.0
        %s1243 = scalar_select %p1242, 1, 0
        %v1244 = vstv %s1243
        %vm1245 = vcmp.eq.s32.totalorder %v1244, 1
        %v1246 = vsel %vm1245, %v1239, 0.0
        %1247 = vst [vmem:[%s398 + $0x15] sm:$0x1] %v1246
        %1248 = vset.pattern.permute.xlu0 22
        %1249 = vperm.xlu0 %1248, %v699
        %v1250 = vpop.permute.xlu0 %1249
        %1251 = vset.pattern.permute.xlu0 22
        %1252 = vperm.xlu0 %1251, %v700
        %v1253 = vpop.permute.xlu0 %1252
        %vm1254 = vcmp.eq.s32.totalorder %v1250, 1
        %vm1255 = vcmp.eq.s32.totalorder %v1253, 1
        %v1256 = vsel %vm1254, %v412, -3.4e+38
        %v1257 = vsel %vm1255, %v413, -3.4e+38
        %v1258 = vmax.f32 %v1256, %v1257
        %v1259 = vrot.slane %v1258, 4
        %v1260 = vmax.f32 %v1258, %v1259
        %v1261 = vrot.slane %v1260, 2
        %v1262 = vmax.f32 %v1260, %v1261
        %v1263 = vrot.slane %v1262, 1
        %v1264 = vmax.f32 %v1262, %v1263
        %v1265 = vrot.slane %v425, 6
        %s1266 = vtos %v1265
        %p1267 = scmp.gt.f32.partialorder %s1266, 0.0
        %s1268 = scalar_select %p1267, 1, 0
        %v1269 = vstv %s1268
        %vm1270 = vcmp.eq.s32.totalorder %v1269, 1
        %v1271 = vsel %vm1270, %v1264, 0.0
        %1272 = vst [vmem:[%s398 + $0x16] sm:$0x1] %v1271
        %1273 = vset.pattern.permute.xlu0 23
        %1274 = vperm.xlu0 %1273, %v699
        %v1275 = vpop.permute.xlu0 %1274
        %1276 = vset.pattern.permute.xlu0 23
        %1277 = vperm.xlu0 %1276, %v700
        %v1278 = vpop.permute.xlu0 %1277
        %vm1279 = vcmp.eq.s32.totalorder %v1275, 1
        %vm1280 = vcmp.eq.s32.totalorder %v1278, 1
        %v1281 = vsel %vm1279, %v412, -3.4e+38
        %v1282 = vsel %vm1280, %v413, -3.4e+38
        %v1283 = vmax.f32 %v1281, %v1282
        %v1284 = vrot.slane %v1283, 4
        %v1285 = vmax.f32 %v1283, %v1284
        %v1286 = vrot.slane %v1285, 2
        %v1287 = vmax.f32 %v1285, %v1286
        %v1288 = vrot.slane %v1287, 1
        %v1289 = vmax.f32 %v1287, %v1288
        %v1290 = vrot.slane %v425, 7
        %s1291 = vtos %v1290
        %p1292 = scmp.gt.f32.partialorder %s1291, 0.0
        %s1293 = scalar_select %p1292, 1, 0
        %v1294 = vstv %s1293
        %vm1295 = vcmp.eq.s32.totalorder %v1294, 1
        %v1296 = vsel %vm1295, %v1289, 0.0
        %1297 = vst [vmem:[%s398 + $0x17] sm:$0x1] %v1296
        %1298 = vset.pattern.permute.xlu0 24
        %1299 = vperm.xlu0 %1298, %v699
        %v1300 = vpop.permute.xlu0 %1299
        %1301 = vset.pattern.permute.xlu0 24
        %1302 = vperm.xlu0 %1301, %v700
        %v1303 = vpop.permute.xlu0 %1302
        %vm1304 = vcmp.eq.s32.totalorder %v1300, 1
        %vm1305 = vcmp.eq.s32.totalorder %v1303, 1
        %v1306 = vsel %vm1304, %v412, -3.4e+38
        %v1307 = vsel %vm1305, %v413, -3.4e+38
        %v1308 = vmax.f32 %v1306, %v1307
        %v1309 = vrot.slane %v1308, 4
        %v1310 = vmax.f32 %v1308, %v1309
        %v1311 = vrot.slane %v1310, 2
        %v1312 = vmax.f32 %v1310, %v1311
        %v1313 = vrot.slane %v1312, 1
        %v1314 = vmax.f32 %v1312, %v1313
        %s1315 = vtos %v426
        %p1316 = scmp.gt.f32.partialorder %s1315, 0.0
        %s1317 = scalar_select %p1316, 1, 0
        %v1318 = vstv %s1317
        %vm1319 = vcmp.eq.s32.totalorder %v1318, 1
        %v1320 = vsel %vm1319, %v1314, 0.0
        %1321 = vst [vmem:[%s398 + $0x18] sm:$0x1] %v1320
        %1322 = vset.pattern.permute.xlu0 25
        %1323 = vperm.xlu0 %1322, %v699
        %v1324 = vpop.permute.xlu0 %1323
        %1325 = vset.pattern.permute.xlu0 25
        %1326 = vperm.xlu0 %1325, %v700
        %v1327 = vpop.permute.xlu0 %1326
        %vm1328 = vcmp.eq.s32.totalorder %v1324, 1
        %vm1329 = vcmp.eq.s32.totalorder %v1327, 1
        %v1330 = vsel %vm1328, %v412, -3.4e+38
        %v1331 = vsel %vm1329, %v413, -3.4e+38
        %v1332 = vmax.f32 %v1330, %v1331
        %v1333 = vrot.slane %v1332, 4
        %v1334 = vmax.f32 %v1332, %v1333
        %v1335 = vrot.slane %v1334, 2
        %v1336 = vmax.f32 %v1334, %v1335
        %v1337 = vrot.slane %v1336, 1
        %v1338 = vmax.f32 %v1336, %v1337
        %v1339 = vrot.slane %v426, 1
        %s1340 = vtos %v1339
        %p1341 = scmp.gt.f32.partialorder %s1340, 0.0
        %s1342 = scalar_select %p1341, 1, 0
        %v1343 = vstv %s1342
        %vm1344 = vcmp.eq.s32.totalorder %v1343, 1
        %v1345 = vsel %vm1344, %v1338, 0.0
        %1346 = vst [vmem:[%s398 + $0x19] sm:$0x1] %v1345
        %1347 = vset.pattern.permute.xlu0 26
        %1348 = vperm.xlu0 %1347, %v699
        %v1349 = vpop.permute.xlu0 %1348
        %1350 = vset.pattern.permute.xlu0 26
        %1351 = vperm.xlu0 %1350, %v700
        %v1352 = vpop.permute.xlu0 %1351
        %vm1353 = vcmp.eq.s32.totalorder %v1349, 1
        %vm1354 = vcmp.eq.s32.totalorder %v1352, 1
        %v1355 = vsel %vm1353, %v412, -3.4e+38
        %v1356 = vsel %vm1354, %v413, -3.4e+38
        %v1357 = vmax.f32 %v1355, %v1356
        %v1358 = vrot.slane %v1357, 4
        %v1359 = vmax.f32 %v1357, %v1358
        %v1360 = vrot.slane %v1359, 2
        %v1361 = vmax.f32 %v1359, %v1360
        %v1362 = vrot.slane %v1361, 1
        %v1363 = vmax.f32 %v1361, %v1362
        %v1364 = vrot.slane %v426, 2
        %s1365 = vtos %v1364
        %p1366 = scmp.gt.f32.partialorder %s1365, 0.0
        %s1367 = scalar_select %p1366, 1, 0
        %v1368 = vstv %s1367
        %vm1369 = vcmp.eq.s32.totalorder %v1368, 1
        %v1370 = vsel %vm1369, %v1363, 0.0
        %1371 = vst [vmem:[%s398 + $0x1a] sm:$0x1] %v1370
        %1372 = vset.pattern.permute.xlu0 27
        %1373 = vperm.xlu0 %1372, %v699
        %v1374 = vpop.permute.xlu0 %1373
        %1375 = vset.pattern.permute.xlu0 27
        %1376 = vperm.xlu0 %1375, %v700
        %v1377 = vpop.permute.xlu0 %1376
        %vm1378 = vcmp.eq.s32.totalorder %v1374, 1
        %vm1379 = vcmp.eq.s32.totalorder %v1377, 1
        %v1380 = vsel %vm1378, %v412, -3.4e+38
        %v1381 = vsel %vm1379, %v413, -3.4e+38
        %v1382 = vmax.f32 %v1380, %v1381
        %v1383 = vrot.slane %v1382, 4
        %v1384 = vmax.f32 %v1382, %v1383
        %v1385 = vrot.slane %v1384, 2
        %v1386 = vmax.f32 %v1384, %v1385
        %v1387 = vrot.slane %v1386, 1
        %v1388 = vmax.f32 %v1386, %v1387
        %v1389 = vrot.slane %v426, 3
        %s1390 = vtos %v1389
        %p1391 = scmp.gt.f32.partialorder %s1390, 0.0
        %s1392 = scalar_select %p1391, 1, 0
        %v1393 = vstv %s1392
        %vm1394 = vcmp.eq.s32.totalorder %v1393, 1
        %v1395 = vsel %vm1394, %v1388, 0.0
        %1396 = vst [vmem:[%s398 + $0x1b] sm:$0x1] %v1395
        %1397 = vset.pattern.permute.xlu0 28
        %1398 = vperm.xlu0 %1397, %v699
        %v1399 = vpop.permute.xlu0 %1398
        %1400 = vset.pattern.permute.xlu0 28
        %1401 = vperm.xlu0 %1400, %v700
        %v1402 = vpop.permute.xlu0 %1401
        %vm1403 = vcmp.eq.s32.totalorder %v1399, 1
        %vm1404 = vcmp.eq.s32.totalorder %v1402, 1
        %v1405 = vsel %vm1403, %v412, -3.4e+38
        %v1406 = vsel %vm1404, %v413, -3.4e+38
        %v1407 = vmax.f32 %v1405, %v1406
        %v1408 = vrot.slane %v1407, 4
        %v1409 = vmax.f32 %v1407, %v1408
        %v1410 = vrot.slane %v1409, 2
        %v1411 = vmax.f32 %v1409, %v1410
        %v1412 = vrot.slane %v1411, 1
        %v1413 = vmax.f32 %v1411, %v1412
        %v1414 = vrot.slane %v426, 4
        %s1415 = vtos %v1414
        %p1416 = scmp.gt.f32.partialorder %s1415, 0.0
        %s1417 = scalar_select %p1416, 1, 0
        %v1418 = vstv %s1417
        %vm1419 = vcmp.eq.s32.totalorder %v1418, 1
        %v1420 = vsel %vm1419, %v1413, 0.0
        %1421 = vst [vmem:[%s398 + $0x1c] sm:$0x1] %v1420
        %1422 = vset.pattern.permute.xlu0 29
        %1423 = vperm.xlu0 %1422, %v699
        %v1424 = vpop.permute.xlu0 %1423
        %1425 = vset.pattern.permute.xlu0 29
        %1426 = vperm.xlu0 %1425, %v700
        %v1427 = vpop.permute.xlu0 %1426
        %vm1428 = vcmp.eq.s32.totalorder %v1424, 1
        %vm1429 = vcmp.eq.s32.totalorder %v1427, 1
        %v1430 = vsel %vm1428, %v412, -3.4e+38
        %v1431 = vsel %vm1429, %v413, -3.4e+38
        %v1432 = vmax.f32 %v1430, %v1431
        %v1433 = vrot.slane %v1432, 4
        %v1434 = vmax.f32 %v1432, %v1433
        %v1435 = vrot.slane %v1434, 2
        %v1436 = vmax.f32 %v1434, %v1435
        %v1437 = vrot.slane %v1436, 1
        %v1438 = vmax.f32 %v1436, %v1437
        %v1439 = vrot.slane %v426, 5
        %s1440 = vtos %v1439
        %p1441 = scmp.gt.f32.partialorder %s1440, 0.0
        %s1442 = scalar_select %p1441, 1, 0
        %v1443 = vstv %s1442
        %vm1444 = vcmp.eq.s32.totalorder %v1443, 1
        %v1445 = vsel %vm1444, %v1438, 0.0
        %1446 = vst [vmem:[%s398 + $0x1d] sm:$0x1] %v1445
        %1447 = vset.pattern.permute.xlu0 30
        %1448 = vperm.xlu0 %1447, %v699
        %v1449 = vpop.permute.xlu0 %1448
        %1450 = vset.pattern.permute.xlu0 30
        %1451 = vperm.xlu0 %1450, %v700
        %v1452 = vpop.permute.xlu0 %1451
        %vm1453 = vcmp.eq.s32.totalorder %v1449, 1
        %vm1454 = vcmp.eq.s32.totalorder %v1452, 1
        %v1455 = vsel %vm1453, %v412, -3.4e+38
        %v1456 = vsel %vm1454, %v413, -3.4e+38
        %v1457 = vmax.f32 %v1455, %v1456
        %v1458 = vrot.slane %v1457, 4
        %v1459 = vmax.f32 %v1457, %v1458
        %v1460 = vrot.slane %v1459, 2
        %v1461 = vmax.f32 %v1459, %v1460
        %v1462 = vrot.slane %v1461, 1
        %v1463 = vmax.f32 %v1461, %v1462
        %v1464 = vrot.slane %v426, 6
        %s1465 = vtos %v1464
        %p1466 = scmp.gt.f32.partialorder %s1465, 0.0
        %s1467 = scalar_select %p1466, 1, 0
        %v1468 = vstv %s1467
        %vm1469 = vcmp.eq.s32.totalorder %v1468, 1
        %v1470 = vsel %vm1469, %v1463, 0.0
        %1471 = vst [vmem:[%s398 + $0x1e] sm:$0x1] %v1470
        %1472 = vset.pattern.permute.xlu0 31
        %1473 = vperm.xlu0 %1472, %v699
        %v1474 = vpop.permute.xlu0 %1473
        %1475 = vset.pattern.permute.xlu0 31
        %1476 = vperm.xlu0 %1475, %v700
        %v1477 = vpop.permute.xlu0 %1476
        %vm1478 = vcmp.eq.s32.totalorder %v1474, 1
        %vm1479 = vcmp.eq.s32.totalorder %v1477, 1
        %v1480 = vsel %vm1478, %v412, -3.4e+38
        %v1481 = vsel %vm1479, %v413, -3.4e+38
        %v1482 = vmax.f32 %v1480, %v1481
        %v1483 = vrot.slane %v1482, 4
        %v1484 = vmax.f32 %v1482, %v1483
        %v1485 = vrot.slane %v1484, 2
        %v1486 = vmax.f32 %v1484, %v1485
        %v1487 = vrot.slane %v1486, 1
        %v1488 = vmax.f32 %v1486, %v1487
        %v1489 = vrot.slane %v426, 7
        %s1490 = vtos %v1489
        %p1491 = scmp.gt.f32.partialorder %s1490, 0.0
        %s1492 = scalar_select %p1491, 1, 0
        %v1493 = vstv %s1492
        %vm1494 = vcmp.eq.s32.totalorder %v1493, 1
        %v1495 = vsel %vm1494, %v1488, 0.0
        %1496 = vst [vmem:[%s398 + $0x1f] sm:$0x1] %v1495
        %1497 = vset.pattern.permute.xlu0 32
        %1498 = vperm.xlu0 %1497, %v699
        %v1499 = vpop.permute.xlu0 %1498
        %1500 = vset.pattern.permute.xlu0 32
        %1501 = vperm.xlu0 %1500, %v700
        %v1502 = vpop.permute.xlu0 %1501
        %vm1503 = vcmp.eq.s32.totalorder %v1499, 1
        %vm1504 = vcmp.eq.s32.totalorder %v1502, 1
        %v1505 = vsel %vm1503, %v412, -3.4e+38
        %v1506 = vsel %vm1504, %v413, -3.4e+38
        %v1507 = vmax.f32 %v1505, %v1506
        %v1508 = vrot.slane %v1507, 4
        %v1509 = vmax.f32 %v1507, %v1508
        %v1510 = vrot.slane %v1509, 2
        %v1511 = vmax.f32 %v1509, %v1510
        %v1512 = vrot.slane %v1511, 1
        %v1513 = vmax.f32 %v1511, %v1512
        %s1514 = vtos %v427
        %p1515 = scmp.gt.f32.partialorder %s1514, 0.0
        %s1516 = scalar_select %p1515, 1, 0
        %v1517 = vstv %s1516
        %vm1518 = vcmp.eq.s32.totalorder %v1517, 1
        %v1519 = vsel %vm1518, %v1513, 0.0
        %1520 = vst [vmem:[%s398 + $0x20] sm:$0x1] %v1519
        %1521 = vset.pattern.permute.xlu0 33
        %1522 = vperm.xlu0 %1521, %v699
        %v1523 = vpop.permute.xlu0 %1522
        %1524 = vset.pattern.permute.xlu0 33
        %1525 = vperm.xlu0 %1524, %v700
        %v1526 = vpop.permute.xlu0 %1525
        %vm1527 = vcmp.eq.s32.totalorder %v1523, 1
        %vm1528 = vcmp.eq.s32.totalorder %v1526, 1
        %v1529 = vsel %vm1527, %v412, -3.4e+38
        %v1530 = vsel %vm1528, %v413, -3.4e+38
        %v1531 = vmax.f32 %v1529, %v1530
        %v1532 = vrot.slane %v1531, 4
        %v1533 = vmax.f32 %v1531, %v1532
        %v1534 = vrot.slane %v1533, 2
        %v1535 = vmax.f32 %v1533, %v1534
        %v1536 = vrot.slane %v1535, 1
        %v1537 = vmax.f32 %v1535, %v1536
        %v1538 = vrot.slane %v427, 1
        %s1539 = vtos %v1538
        %p1540 = scmp.gt.f32.partialorder %s1539, 0.0
        %s1541 = scalar_select %p1540, 1, 0
        %v1542 = vstv %s1541
        %vm1543 = vcmp.eq.s32.totalorder %v1542, 1
        %v1544 = vsel %vm1543, %v1537, 0.0
        %1545 = vst [vmem:[%s398 + $0x21] sm:$0x1] %v1544
        %1546 = vset.pattern.permute.xlu0 34
        %1547 = vperm.xlu0 %1546, %v699
        %v1548 = vpop.permute.xlu0 %1547
        %1549 = vset.pattern.permute.xlu0 34
        %1550 = vperm.xlu0 %1549, %v700
        %v1551 = vpop.permute.xlu0 %1550
        %vm1552 = vcmp.eq.s32.totalorder %v1548, 1
        %vm1553 = vcmp.eq.s32.totalorder %v1551, 1
        %v1554 = vsel %vm1552, %v412, -3.4e+38
        %v1555 = vsel %vm1553, %v413, -3.4e+38
        %v1556 = vmax.f32 %v1554, %v1555
        %v1557 = vrot.slane %v1556, 4
        %v1558 = vmax.f32 %v1556, %v1557
        %v1559 = vrot.slane %v1558, 2
        %v1560 = vmax.f32 %v1558, %v1559
        %v1561 = vrot.slane %v1560, 1
        %v1562 = vmax.f32 %v1560, %v1561
        %v1563 = vrot.slane %v427, 2
        %s1564 = vtos %v1563
        %p1565 = scmp.gt.f32.partialorder %s1564, 0.0
        %s1566 = scalar_select %p1565, 1, 0
        %v1567 = vstv %s1566
        %vm1568 = vcmp.eq.s32.totalorder %v1567, 1
        %v1569 = vsel %vm1568, %v1562, 0.0
        %1570 = vst [vmem:[%s398 + $0x22] sm:$0x1] %v1569
        %1571 = vset.pattern.permute.xlu0 35
        %1572 = vperm.xlu0 %1571, %v699
        %v1573 = vpop.permute.xlu0 %1572
        %1574 = vset.pattern.permute.xlu0 35
        %1575 = vperm.xlu0 %1574, %v700
        %v1576 = vpop.permute.xlu0 %1575
        %vm1577 = vcmp.eq.s32.totalorder %v1573, 1
        %vm1578 = vcmp.eq.s32.totalorder %v1576, 1
        %v1579 = vsel %vm1577, %v412, -3.4e+38
        %v1580 = vsel %vm1578, %v413, -3.4e+38
        %v1581 = vmax.f32 %v1579, %v1580
        %v1582 = vrot.slane %v1581, 4
        %v1583 = vmax.f32 %v1581, %v1582
        %v1584 = vrot.slane %v1583, 2
        %v1585 = vmax.f32 %v1583, %v1584
        %v1586 = vrot.slane %v1585, 1
        %v1587 = vmax.f32 %v1585, %v1586
        %v1588 = vrot.slane %v427, 3
        %s1589 = vtos %v1588
        %p1590 = scmp.gt.f32.partialorder %s1589, 0.0
        %s1591 = scalar_select %p1590, 1, 0
        %v1592 = vstv %s1591
        %vm1593 = vcmp.eq.s32.totalorder %v1592, 1
        %v1594 = vsel %vm1593, %v1587, 0.0
        %1595 = vst [vmem:[%s398 + $0x23] sm:$0x1] %v1594
        %1596 = vset.pattern.permute.xlu0 36
        %1597 = vperm.xlu0 %1596, %v699
        %v1598 = vpop.permute.xlu0 %1597
        %1599 = vset.pattern.permute.xlu0 36
        %1600 = vperm.xlu0 %1599, %v700
        %v1601 = vpop.permute.xlu0 %1600
        %vm1602 = vcmp.eq.s32.totalorder %v1598, 1
        %vm1603 = vcmp.eq.s32.totalorder %v1601, 1
        %v1604 = vsel %vm1602, %v412, -3.4e+38
        %v1605 = vsel %vm1603, %v413, -3.4e+38
        %v1606 = vmax.f32 %v1604, %v1605
        %v1607 = vrot.slane %v1606, 4
        %v1608 = vmax.f32 %v1606, %v1607
        %v1609 = vrot.slane %v1608, 2
        %v1610 = vmax.f32 %v1608, %v1609
        %v1611 = vrot.slane %v1610, 1
        %v1612 = vmax.f32 %v1610, %v1611
        %v1613 = vrot.slane %v427, 4
        %s1614 = vtos %v1613
        %p1615 = scmp.gt.f32.partialorder %s1614, 0.0
        %s1616 = scalar_select %p1615, 1, 0
        %v1617 = vstv %s1616
        %vm1618 = vcmp.eq.s32.totalorder %v1617, 1
        %v1619 = vsel %vm1618, %v1612, 0.0
        %1620 = vst [vmem:[%s398 + $0x24] sm:$0x1] %v1619
        %1621 = vset.pattern.permute.xlu0 37
        %1622 = vperm.xlu0 %1621, %v699
        %v1623 = vpop.permute.xlu0 %1622
        %1624 = vset.pattern.permute.xlu0 37
        %1625 = vperm.xlu0 %1624, %v700
        %v1626 = vpop.permute.xlu0 %1625
        %vm1627 = vcmp.eq.s32.totalorder %v1623, 1
        %vm1628 = vcmp.eq.s32.totalorder %v1626, 1
        %v1629 = vsel %vm1627, %v412, -3.4e+38
        %v1630 = vsel %vm1628, %v413, -3.4e+38
        %v1631 = vmax.f32 %v1629, %v1630
        %v1632 = vrot.slane %v1631, 4
        %v1633 = vmax.f32 %v1631, %v1632
        %v1634 = vrot.slane %v1633, 2
        %v1635 = vmax.f32 %v1633, %v1634
        %v1636 = vrot.slane %v1635, 1
        %v1637 = vmax.f32 %v1635, %v1636
        %v1638 = vrot.slane %v427, 5
        %s1639 = vtos %v1638
        %p1640 = scmp.gt.f32.partialorder %s1639, 0.0
        %s1641 = scalar_select %p1640, 1, 0
        %v1642 = vstv %s1641
        %vm1643 = vcmp.eq.s32.totalorder %v1642, 1
        %v1644 = vsel %vm1643, %v1637, 0.0
        %1645 = vst [vmem:[%s398 + $0x25] sm:$0x1] %v1644
        %1646 = vset.pattern.permute.xlu0 38
        %1647 = vperm.xlu0 %1646, %v699
        %v1648 = vpop.permute.xlu0 %1647
        %1649 = vset.pattern.permute.xlu0 38
        %1650 = vperm.xlu0 %1649, %v700
        %v1651 = vpop.permute.xlu0 %1650
        %vm1652 = vcmp.eq.s32.totalorder %v1648, 1
        %vm1653 = vcmp.eq.s32.totalorder %v1651, 1
        %v1654 = vsel %vm1652, %v412, -3.4e+38
        %v1655 = vsel %vm1653, %v413, -3.4e+38
        %v1656 = vmax.f32 %v1654, %v1655
        %v1657 = vrot.slane %v1656, 4
        %v1658 = vmax.f32 %v1656, %v1657
        %v1659 = vrot.slane %v1658, 2
        %v1660 = vmax.f32 %v1658, %v1659
        %v1661 = vrot.slane %v1660, 1
        %v1662 = vmax.f32 %v1660, %v1661
        %v1663 = vrot.slane %v427, 6
        %s1664 = vtos %v1663
        %p1665 = scmp.gt.f32.partialorder %s1664, 0.0
        %s1666 = scalar_select %p1665, 1, 0
        %v1667 = vstv %s1666
        %vm1668 = vcmp.eq.s32.totalorder %v1667, 1
        %v1669 = vsel %vm1668, %v1662, 0.0
        %1670 = vst [vmem:[%s398 + $0x26] sm:$0x1] %v1669
        %1671 = vset.pattern.permute.xlu0 39
        %1672 = vperm.xlu0 %1671, %v699
        %v1673 = vpop.permute.xlu0 %1672
        %1674 = vset.pattern.permute.xlu0 39
        %1675 = vperm.xlu0 %1674, %v700
        %v1676 = vpop.permute.xlu0 %1675
        %vm1677 = vcmp.eq.s32.totalorder %v1673, 1
        %vm1678 = vcmp.eq.s32.totalorder %v1676, 1
        %v1679 = vsel %vm1677, %v412, -3.4e+38
        %v1680 = vsel %vm1678, %v413, -3.4e+38
        %v1681 = vmax.f32 %v1679, %v1680
        %v1682 = vrot.slane %v1681, 4
        %v1683 = vmax.f32 %v1681, %v1682
        %v1684 = vrot.slane %v1683, 2
        %v1685 = vmax.f32 %v1683, %v1684
        %v1686 = vrot.slane %v1685, 1
        %v1687 = vmax.f32 %v1685, %v1686
        %v1688 = vrot.slane %v427, 7
        %s1689 = vtos %v1688
        %p1690 = scmp.gt.f32.partialorder %s1689, 0.0
        %s1691 = scalar_select %p1690, 1, 0
        %v1692 = vstv %s1691
        %vm1693 = vcmp.eq.s32.totalorder %v1692, 1
        %v1694 = vsel %vm1693, %v1687, 0.0
        %1695 = vst [vmem:[%s398 + $0x27] sm:$0x1] %v1694
        %1696 = vset.pattern.permute.xlu0 40
        %1697 = vperm.xlu0 %1696, %v699
        %v1698 = vpop.permute.xlu0 %1697
        %1699 = vset.pattern.permute.xlu0 40
        %1700 = vperm.xlu0 %1699, %v700
        %v1701 = vpop.permute.xlu0 %1700
        %vm1702 = vcmp.eq.s32.totalorder %v1698, 1
        %vm1703 = vcmp.eq.s32.totalorder %v1701, 1
        %v1704 = vsel %vm1702, %v412, -3.4e+38
        %v1705 = vsel %vm1703, %v413, -3.4e+38
        %v1706 = vmax.f32 %v1704, %v1705
        %v1707 = vrot.slane %v1706, 4
        %v1708 = vmax.f32 %v1706, %v1707
        %v1709 = vrot.slane %v1708, 2
        %v1710 = vmax.f32 %v1708, %v1709
        %v1711 = vrot.slane %v1710, 1
        %v1712 = vmax.f32 %v1710, %v1711
        %s1713 = vtos %v428
        %p1714 = scmp.gt.f32.partialorder %s1713, 0.0
        %s1715 = scalar_select %p1714, 1, 0
        %v1716 = vstv %s1715
        %vm1717 = vcmp.eq.s32.totalorder %v1716, 1
        %v1718 = vsel %vm1717, %v1712, 0.0
        %1719 = vst [vmem:[%s398 + $0x28] sm:$0x1] %v1718
        %1720 = vset.pattern.permute.xlu0 41
        %1721 = vperm.xlu0 %1720, %v699
        %v1722 = vpop.permute.xlu0 %1721
        %1723 = vset.pattern.permute.xlu0 41
        %1724 = vperm.xlu0 %1723, %v700
        %v1725 = vpop.permute.xlu0 %1724
        %vm1726 = vcmp.eq.s32.totalorder %v1722, 1
        %vm1727 = vcmp.eq.s32.totalorder %v1725, 1
        %v1728 = vsel %vm1726, %v412, -3.4e+38
        %v1729 = vsel %vm1727, %v413, -3.4e+38
        %v1730 = vmax.f32 %v1728, %v1729
        %v1731 = vrot.slane %v1730, 4
        %v1732 = vmax.f32 %v1730, %v1731
        %v1733 = vrot.slane %v1732, 2
        %v1734 = vmax.f32 %v1732, %v1733
        %v1735 = vrot.slane %v1734, 1
        %v1736 = vmax.f32 %v1734, %v1735
        %v1737 = vrot.slane %v428, 1
        %s1738 = vtos %v1737
        %p1739 = scmp.gt.f32.partialorder %s1738, 0.0
        %s1740 = scalar_select %p1739, 1, 0
        %v1741 = vstv %s1740
        %vm1742 = vcmp.eq.s32.totalorder %v1741, 1
        %v1743 = vsel %vm1742, %v1736, 0.0
        %1744 = vst [vmem:[%s398 + $0x29] sm:$0x1] %v1743
        %1745 = vset.pattern.permute.xlu0 42
        %1746 = vperm.xlu0 %1745, %v699
        %v1747 = vpop.permute.xlu0 %1746
        %1748 = vset.pattern.permute.xlu0 42
        %1749 = vperm.xlu0 %1748, %v700
        %v1750 = vpop.permute.xlu0 %1749
        %vm1751 = vcmp.eq.s32.totalorder %v1747, 1
        %vm1752 = vcmp.eq.s32.totalorder %v1750, 1
        %v1753 = vsel %vm1751, %v412, -3.4e+38
        %v1754 = vsel %vm1752, %v413, -3.4e+38
        %v1755 = vmax.f32 %v1753, %v1754
        %v1756 = vrot.slane %v1755, 4
        %v1757 = vmax.f32 %v1755, %v1756
        %v1758 = vrot.slane %v1757, 2
        %v1759 = vmax.f32 %v1757, %v1758
        %v1760 = vrot.slane %v1759, 1
        %v1761 = vmax.f32 %v1759, %v1760
        %v1762 = vrot.slane %v428, 2
        %s1763 = vtos %v1762
        %p1764 = scmp.gt.f32.partialorder %s1763, 0.0
        %s1765 = scalar_select %p1764, 1, 0
        %v1766 = vstv %s1765
        %vm1767 = vcmp.eq.s32.totalorder %v1766, 1
        %v1768 = vsel %vm1767, %v1761, 0.0
        %1769 = vst [vmem:[%s398 + $0x2a] sm:$0x1] %v1768
        %1770 = vset.pattern.permute.xlu0 43
        %1771 = vperm.xlu0 %1770, %v699
        %v1772 = vpop.permute.xlu0 %1771
        %1773 = vset.pattern.permute.xlu0 43
        %1774 = vperm.xlu0 %1773, %v700
        %v1775 = vpop.permute.xlu0 %1774
        %vm1776 = vcmp.eq.s32.totalorder %v1772, 1
        %vm1777 = vcmp.eq.s32.totalorder %v1775, 1
        %v1778 = vsel %vm1776, %v412, -3.4e+38
        %v1779 = vsel %vm1777, %v413, -3.4e+38
        %v1780 = vmax.f32 %v1778, %v1779
        %v1781 = vrot.slane %v1780, 4
        %v1782 = vmax.f32 %v1780, %v1781
        %v1783 = vrot.slane %v1782, 2
        %v1784 = vmax.f32 %v1782, %v1783
        %v1785 = vrot.slane %v1784, 1
        %v1786 = vmax.f32 %v1784, %v1785
        %v1787 = vrot.slane %v428, 3
        %s1788 = vtos %v1787
        %p1789 = scmp.gt.f32.partialorder %s1788, 0.0
        %s1790 = scalar_select %p1789, 1, 0
        %v1791 = vstv %s1790
        %vm1792 = vcmp.eq.s32.totalorder %v1791, 1
        %v1793 = vsel %vm1792, %v1786, 0.0
        %1794 = vst [vmem:[%s398 + $0x2b] sm:$0x1] %v1793
        %1795 = vset.pattern.permute.xlu0 44
        %1796 = vperm.xlu0 %1795, %v699
        %v1797 = vpop.permute.xlu0 %1796
        %1798 = vset.pattern.permute.xlu0 44
        %1799 = vperm.xlu0 %1798, %v700
        %v1800 = vpop.permute.xlu0 %1799
        %vm1801 = vcmp.eq.s32.totalorder %v1797, 1
        %vm1802 = vcmp.eq.s32.totalorder %v1800, 1
        %v1803 = vsel %vm1801, %v412, -3.4e+38
        %v1804 = vsel %vm1802, %v413, -3.4e+38
        %v1805 = vmax.f32 %v1803, %v1804
        %v1806 = vrot.slane %v1805, 4
        %v1807 = vmax.f32 %v1805, %v1806
        %v1808 = vrot.slane %v1807, 2
        %v1809 = vmax.f32 %v1807, %v1808
        %v1810 = vrot.slane %v1809, 1
        %v1811 = vmax.f32 %v1809, %v1810
        %v1812 = vrot.slane %v428, 4
        %s1813 = vtos %v1812
        %p1814 = scmp.gt.f32.partialorder %s1813, 0.0
        %s1815 = scalar_select %p1814, 1, 0
        %v1816 = vstv %s1815
        %vm1817 = vcmp.eq.s32.totalorder %v1816, 1
        %v1818 = vsel %vm1817, %v1811, 0.0
        %1819 = vst [vmem:[%s398 + $0x2c] sm:$0x1] %v1818
        %1820 = vset.pattern.permute.xlu0 45
        %1821 = vperm.xlu0 %1820, %v699
        %v1822 = vpop.permute.xlu0 %1821
        %1823 = vset.pattern.permute.xlu0 45
        %1824 = vperm.xlu0 %1823, %v700
        %v1825 = vpop.permute.xlu0 %1824
        %vm1826 = vcmp.eq.s32.totalorder %v1822, 1
        %vm1827 = vcmp.eq.s32.totalorder %v1825, 1
        %v1828 = vsel %vm1826, %v412, -3.4e+38
        %v1829 = vsel %vm1827, %v413, -3.4e+38
        %v1830 = vmax.f32 %v1828, %v1829
        %v1831 = vrot.slane %v1830, 4
        %v1832 = vmax.f32 %v1830, %v1831
        %v1833 = vrot.slane %v1832, 2
        %v1834 = vmax.f32 %v1832, %v1833
        %v1835 = vrot.slane %v1834, 1
        %v1836 = vmax.f32 %v1834, %v1835
        %v1837 = vrot.slane %v428, 5
        %s1838 = vtos %v1837
        %p1839 = scmp.gt.f32.partialorder %s1838, 0.0
        %s1840 = scalar_select %p1839, 1, 0
        %v1841 = vstv %s1840
        %vm1842 = vcmp.eq.s32.totalorder %v1841, 1
        %v1843 = vsel %vm1842, %v1836, 0.0
        %1844 = vst [vmem:[%s398 + $0x2d] sm:$0x1] %v1843
        %1845 = vset.pattern.permute.xlu0 46
        %1846 = vperm.xlu0 %1845, %v699
        %v1847 = vpop.permute.xlu0 %1846
        %1848 = vset.pattern.permute.xlu0 46
        %1849 = vperm.xlu0 %1848, %v700
        %v1850 = vpop.permute.xlu0 %1849
        %vm1851 = vcmp.eq.s32.totalorder %v1847, 1
        %vm1852 = vcmp.eq.s32.totalorder %v1850, 1
        %v1853 = vsel %vm1851, %v412, -3.4e+38
        %v1854 = vsel %vm1852, %v413, -3.4e+38
        %v1855 = vmax.f32 %v1853, %v1854
        %v1856 = vrot.slane %v1855, 4
        %v1857 = vmax.f32 %v1855, %v1856
        %v1858 = vrot.slane %v1857, 2
        %v1859 = vmax.f32 %v1857, %v1858
        %v1860 = vrot.slane %v1859, 1
        %v1861 = vmax.f32 %v1859, %v1860
        %v1862 = vrot.slane %v428, 6
        %s1863 = vtos %v1862
        %p1864 = scmp.gt.f32.partialorder %s1863, 0.0
        %s1865 = scalar_select %p1864, 1, 0
        %v1866 = vstv %s1865
        %vm1867 = vcmp.eq.s32.totalorder %v1866, 1
        %v1868 = vsel %vm1867, %v1861, 0.0
        %1869 = vst [vmem:[%s398 + $0x2e] sm:$0x1] %v1868
        %1870 = vset.pattern.permute.xlu0 47
        %1871 = vperm.xlu0 %1870, %v699
        %v1872 = vpop.permute.xlu0 %1871
        %1873 = vset.pattern.permute.xlu0 47
        %1874 = vperm.xlu0 %1873, %v700
        %v1875 = vpop.permute.xlu0 %1874
        %vm1876 = vcmp.eq.s32.totalorder %v1872, 1
        %vm1877 = vcmp.eq.s32.totalorder %v1875, 1
        %v1878 = vsel %vm1876, %v412, -3.4e+38
        %v1879 = vsel %vm1877, %v413, -3.4e+38
        %v1880 = vmax.f32 %v1878, %v1879
        %v1881 = vrot.slane %v1880, 4
        %v1882 = vmax.f32 %v1880, %v1881
        %v1883 = vrot.slane %v1882, 2
        %v1884 = vmax.f32 %v1882, %v1883
        %v1885 = vrot.slane %v1884, 1
        %v1886 = vmax.f32 %v1884, %v1885
        %v1887 = vrot.slane %v428, 7
        %s1888 = vtos %v1887
        %p1889 = scmp.gt.f32.partialorder %s1888, 0.0
        %s1890 = scalar_select %p1889, 1, 0
        %v1891 = vstv %s1890
        %vm1892 = vcmp.eq.s32.totalorder %v1891, 1
        %v1893 = vsel %vm1892, %v1886, 0.0
        %1894 = vst [vmem:[%s398 + $0x2f] sm:$0x1] %v1893
        %1895 = vset.pattern.permute.xlu0 48
        %1896 = vperm.xlu0 %1895, %v699
        %v1897 = vpop.permute.xlu0 %1896
        %1898 = vset.pattern.permute.xlu0 48
        %1899 = vperm.xlu0 %1898, %v700
        %v1900 = vpop.permute.xlu0 %1899
        %vm1901 = vcmp.eq.s32.totalorder %v1897, 1
        %vm1902 = vcmp.eq.s32.totalorder %v1900, 1
        %v1903 = vsel %vm1901, %v412, -3.4e+38
        %v1904 = vsel %vm1902, %v413, -3.4e+38
        %v1905 = vmax.f32 %v1903, %v1904
        %v1906 = vrot.slane %v1905, 4
        %v1907 = vmax.f32 %v1905, %v1906
        %v1908 = vrot.slane %v1907, 2
        %v1909 = vmax.f32 %v1907, %v1908
        %v1910 = vrot.slane %v1909, 1
        %v1911 = vmax.f32 %v1909, %v1910
        %s1912 = vtos %v429
        %p1913 = scmp.gt.f32.partialorder %s1912, 0.0
        %s1914 = scalar_select %p1913, 1, 0
        %v1915 = vstv %s1914
        %vm1916 = vcmp.eq.s32.totalorder %v1915, 1
        %v1917 = vsel %vm1916, %v1911, 0.0
        %1918 = vst [vmem:[%s398 + $0x30] sm:$0x1] %v1917
        %1919 = vset.pattern.permute.xlu0 49
        %1920 = vperm.xlu0 %1919, %v699
        %v1921 = vpop.permute.xlu0 %1920
        %1922 = vset.pattern.permute.xlu0 49
        %1923 = vperm.xlu0 %1922, %v700
        %v1924 = vpop.permute.xlu0 %1923
        %vm1925 = vcmp.eq.s32.totalorder %v1921, 1
        %vm1926 = vcmp.eq.s32.totalorder %v1924, 1
        %v1927 = vsel %vm1925, %v412, -3.4e+38
        %v1928 = vsel %vm1926, %v413, -3.4e+38
        %v1929 = vmax.f32 %v1927, %v1928
        %v1930 = vrot.slane %v1929, 4
        %v1931 = vmax.f32 %v1929, %v1930
        %v1932 = vrot.slane %v1931, 2
        %v1933 = vmax.f32 %v1931, %v1932
        %v1934 = vrot.slane %v1933, 1
        %v1935 = vmax.f32 %v1933, %v1934
        %v1936 = vrot.slane %v429, 1
        %s1937 = vtos %v1936
        %p1938 = scmp.gt.f32.partialorder %s1937, 0.0
        %s1939 = scalar_select %p1938, 1, 0
        %v1940 = vstv %s1939
        %vm1941 = vcmp.eq.s32.totalorder %v1940, 1
        %v1942 = vsel %vm1941, %v1935, 0.0
        %1943 = vst [vmem:[%s398 + $0x31] sm:$0x1] %v1942
        %1944 = vset.pattern.permute.xlu0 50
        %1945 = vperm.xlu0 %1944, %v699
        %v1946 = vpop.permute.xlu0 %1945
        %1947 = vset.pattern.permute.xlu0 50
        %1948 = vperm.xlu0 %1947, %v700
        %v1949 = vpop.permute.xlu0 %1948
        %vm1950 = vcmp.eq.s32.totalorder %v1946, 1
        %vm1951 = vcmp.eq.s32.totalorder %v1949, 1
        %v1952 = vsel %vm1950, %v412, -3.4e+38
        %v1953 = vsel %vm1951, %v413, -3.4e+38
        %v1954 = vmax.f32 %v1952, %v1953
        %v1955 = vrot.slane %v1954, 4
        %v1956 = vmax.f32 %v1954, %v1955
        %v1957 = vrot.slane %v1956, 2
        %v1958 = vmax.f32 %v1956, %v1957
        %v1959 = vrot.slane %v1958, 1
        %v1960 = vmax.f32 %v1958, %v1959
        %v1961 = vrot.slane %v429, 2
        %s1962 = vtos %v1961
        %p1963 = scmp.gt.f32.partialorder %s1962, 0.0
        %s1964 = scalar_select %p1963, 1, 0
        %v1965 = vstv %s1964
        %vm1966 = vcmp.eq.s32.totalorder %v1965, 1
        %v1967 = vsel %vm1966, %v1960, 0.0
        %1968 = vst [vmem:[%s398 + $0x32] sm:$0x1] %v1967
        %1969 = vset.pattern.permute.xlu0 51
        %1970 = vperm.xlu0 %1969, %v699
        %v1971 = vpop.permute.xlu0 %1970
        %1972 = vset.pattern.permute.xlu0 51
        %1973 = vperm.xlu0 %1972, %v700
        %v1974 = vpop.permute.xlu0 %1973
        %vm1975 = vcmp.eq.s32.totalorder %v1971, 1
        %vm1976 = vcmp.eq.s32.totalorder %v1974, 1
        %v1977 = vsel %vm1975, %v412, -3.4e+38
        %v1978 = vsel %vm1976, %v413, -3.4e+38
        %v1979 = vmax.f32 %v1977, %v1978
        %v1980 = vrot.slane %v1979, 4
        %v1981 = vmax.f32 %v1979, %v1980
        %v1982 = vrot.slane %v1981, 2
        %v1983 = vmax.f32 %v1981, %v1982
        %v1984 = vrot.slane %v1983, 1
        %v1985 = vmax.f32 %v1983, %v1984
        %v1986 = vrot.slane %v429, 3
        %s1987 = vtos %v1986
        %p1988 = scmp.gt.f32.partialorder %s1987, 0.0
        %s1989 = scalar_select %p1988, 1, 0
        %v1990 = vstv %s1989
        %vm1991 = vcmp.eq.s32.totalorder %v1990, 1
        %v1992 = vsel %vm1991, %v1985, 0.0
        %1993 = vst [vmem:[%s398 + $0x33] sm:$0x1] %v1992
        %1994 = vset.pattern.permute.xlu0 52
        %1995 = vperm.xlu0 %1994, %v699
        %v1996 = vpop.permute.xlu0 %1995
        %1997 = vset.pattern.permute.xlu0 52
        %1998 = vperm.xlu0 %1997, %v700
        %v1999 = vpop.permute.xlu0 %1998
        %vm2000 = vcmp.eq.s32.totalorder %v1996, 1
        %vm2001 = vcmp.eq.s32.totalorder %v1999, 1
        %v2002 = vsel %vm2000, %v412, -3.4e+38
        %v2003 = vsel %vm2001, %v413, -3.4e+38
        %v2004 = vmax.f32 %v2002, %v2003
        %v2005 = vrot.slane %v2004, 4
        %v2006 = vmax.f32 %v2004, %v2005
        %v2007 = vrot.slane %v2006, 2
        %v2008 = vmax.f32 %v2006, %v2007
        %v2009 = vrot.slane %v2008, 1
        %v2010 = vmax.f32 %v2008, %v2009
        %v2011 = vrot.slane %v429, 4
        %s2012 = vtos %v2011
        %p2013 = scmp.gt.f32.partialorder %s2012, 0.0
        %s2014 = scalar_select %p2013, 1, 0
        %v2015 = vstv %s2014
        %vm2016 = vcmp.eq.s32.totalorder %v2015, 1
        %v2017 = vsel %vm2016, %v2010, 0.0
        %2018 = vst [vmem:[%s398 + $0x34] sm:$0x1] %v2017
        %2019 = vset.pattern.permute.xlu0 53
        %2020 = vperm.xlu0 %2019, %v699
        %v2021 = vpop.permute.xlu0 %2020
        %2022 = vset.pattern.permute.xlu0 53
        %2023 = vperm.xlu0 %2022, %v700
        %v2024 = vpop.permute.xlu0 %2023
        %vm2025 = vcmp.eq.s32.totalorder %v2021, 1
        %vm2026 = vcmp.eq.s32.totalorder %v2024, 1
        %v2027 = vsel %vm2025, %v412, -3.4e+38
        %v2028 = vsel %vm2026, %v413, -3.4e+38
        %v2029 = vmax.f32 %v2027, %v2028
        %v2030 = vrot.slane %v2029, 4
        %v2031 = vmax.f32 %v2029, %v2030
        %v2032 = vrot.slane %v2031, 2
        %v2033 = vmax.f32 %v2031, %v2032
        %v2034 = vrot.slane %v2033, 1
        %v2035 = vmax.f32 %v2033, %v2034
        %v2036 = vrot.slane %v429, 5
        %s2037 = vtos %v2036
        %p2038 = scmp.gt.f32.partialorder %s2037, 0.0
        %s2039 = scalar_select %p2038, 1, 0
        %v2040 = vstv %s2039
        %vm2041 = vcmp.eq.s32.totalorder %v2040, 1
        %v2042 = vsel %vm2041, %v2035, 0.0
        %2043 = vst [vmem:[%s398 + $0x35] sm:$0x1] %v2042
        %2044 = vset.pattern.permute.xlu0 54
        %2045 = vperm.xlu0 %2044, %v699
        %v2046 = vpop.permute.xlu0 %2045
        %2047 = vset.pattern.permute.xlu0 54
        %2048 = vperm.xlu0 %2047, %v700
        %v2049 = vpop.permute.xlu0 %2048
        %vm2050 = vcmp.eq.s32.totalorder %v2046, 1
        %vm2051 = vcmp.eq.s32.totalorder %v2049, 1
        %v2052 = vsel %vm2050, %v412, -3.4e+38
        %v2053 = vsel %vm2051, %v413, -3.4e+38
        %v2054 = vmax.f32 %v2052, %v2053
        %v2055 = vrot.slane %v2054, 4
        %v2056 = vmax.f32 %v2054, %v2055
        %v2057 = vrot.slane %v2056, 2
        %v2058 = vmax.f32 %v2056, %v2057
        %v2059 = vrot.slane %v2058, 1
        %v2060 = vmax.f32 %v2058, %v2059
        %v2061 = vrot.slane %v429, 6
        %s2062 = vtos %v2061
        %p2063 = scmp.gt.f32.partialorder %s2062, 0.0
        %s2064 = scalar_select %p2063, 1, 0
        %v2065 = vstv %s2064
        %vm2066 = vcmp.eq.s32.totalorder %v2065, 1
        %v2067 = vsel %vm2066, %v2060, 0.0
        %2068 = vst [vmem:[%s398 + $0x36] sm:$0x1] %v2067
        %2069 = vst [vmem:[%s398 + $0x37] sm:$0x1] 0.0
        %s2070 = sand.u32 %s171, 1
        %s2071 = scalar_lea.sflag [#allocation4], %s2070
        %s2072 = sand.u32 %s171, 1
        %s2073 = smul.addr %s2072, 56
        %s2074 = scalar_lea.vmem [#allocation13], %s2073
        %s2075 = sand.u32 %s32, 1
        %s2076 = scalar_lea.sflag [#allocation15], %s2075
        %s2077 = sand.u32 %s197, 1
        %s2078 = smul.addr %s2077, 56
        %s2079 = scalar_lea.vmem [#allocation14], %s2078
        %s2080 = sand.u32 %s32, 1
        %s2081 = scalar_lea.sflag [#allocation15], %s2080
        %s2082 = sand.u32 %s223, 1
        %s2083 = scalar_lea.vmem [#allocation16], %s2082
        // Predicated region
        $region69: #{tpu_custom_call.1} parent=43 // pred_check
          %p2084 = pneg %p181
        $region70: #{tpu_custom_call.1} parent=43 // pred_check_branch
          %2086 = sbr.rel (%p2084) target = $region72
        $region71: #{tpu_custom_call.1} parent=43 // pred_region
          %s2088 = ssub.s32 896, 896
          %2089 = vsyncadd %s2071, %s2088
          %s2090 = smul.addr %s32, 7
          %s2091 = smul.addr %s2090, 128
          %s2092 = scalar_lea.hbm %s6, %s2091
          %s2093 = sshll.u32 %s2074, 4
          %s2094 = int_to_ptr.vmem [resolvable:$true] %s2093
          %2099 = dma.vmem_to_hbm [thread:$0]  %s2094, 896, %s2092, %s2071, 128, 128, 8
        $region72: #{tpu_custom_call.1} parent=43 // pred_fallthru
          _
        // Predicated region
        $region73: #{tpu_custom_call.1} parent=43 // pred_check
          %p2100 = pneg %p207
        $region74: #{tpu_custom_call.1} parent=43 // pred_check_branch
          %2102 = sbr.rel (%p2100) target = $region76
        $region75: #{tpu_custom_call.1} parent=43 // pred_region
          %s2104 = ssub.s32 896, 896
          %2105 = vsyncadd %s2076, %s2104
          %s2106 = smul.addr %s32, 7
          %s2107 = smul.addr %s2106, 128
          %s2108 = scalar_lea.hbm %s7, %s2107
          %s2109 = sshll.u32 %s2079, 4
          %s2110 = int_to_ptr.vmem [resolvable:$true] %s2109
          %2115 = dma.vmem_to_hbm [thread:$0]  %s2110, 896, %s2108, %s2076, 128, 128, 8
        $region76: #{tpu_custom_call.1} parent=43 // pred_fallthru
          _
        // Predicated region
        $region77: #{tpu_custom_call.1} parent=43 // pred_check
          %p2116 = pneg %p233
        $region78: #{tpu_custom_call.1} parent=43 // pred_check_branch
          %2118 = sbr.rel (%p2116) target = $region80
        $region79: #{tpu_custom_call.1} parent=43 // pred_region
          %s2120 = ssub.s32 16, 16
          %2121 = vsyncadd %s2081, %s2120
          %s2122 = smul.addr %s32, 16
          %s2123 = scalar_lea.hbm %s8, %s2122
          %s2125 = sshll.u32 %s2083, 4
          %s2126 = int_to_ptr.vmem [resolvable:$true] %s2125
          %2128 = dma.vmem_to_hbm [thread:$0]  %s2126, 16, %s2123, %s2081
        $region80: #{tpu_custom_call.1} parent=43 // pred_fallthru
          _
      $region44: #{tpu_custom_call.1} parent=5 // pred_fallthru
        _
      %p2129 = scmp.le.s32.totalorder 2, %s27
      // Predicated region
      $region81: #{tpu_custom_call.1} parent=5 // pred_check
        %p2130 = pneg %p2129
      $region82: #{tpu_custom_call.1} parent=5 // pred_check_branch
        %2132 = sbr.rel (%p2130) target = $region84
      $region83: #{tpu_custom_call.1} parent=5 // pred_region
        %s2133 = ssub.s32 %s27, 2
        // Predicated region
        $region85: #{tpu_custom_call.1} parent=83 // pred_check
          %p2134 = pneg %p187
        $region86: #{tpu_custom_call.1} parent=83 // pred_check_branch
          %2136 = sbr.rel (%p2134) target = $region88
        $region87: #{tpu_custom_call.1} parent=83 // pred_region
          %s2137 = sand.u32 %s172, 1
          %s2138 = scalar_lea.sflag [#allocation4], %s2137
          %s2139 = sand.u32 %s172, 1
          %s2140 = smul.addr %s2139, 56
          %s2141 = scalar_lea.vmem [#allocation13], %s2140
          %2142 = dma.done %s2138, 896
        $region88: #{tpu_custom_call.1} parent=83 // pred_fallthru
          _
        // Predicated region
        $region89: #{tpu_custom_call.1} parent=83 // pred_check
          %p2143 = pneg %p213
        $region90: #{tpu_custom_call.1} parent=83 // pred_check_branch
          %2145 = sbr.rel (%p2143) target = $region92
        $region91: #{tpu_custom_call.1} parent=83 // pred_region
          %s2146 = sand.u32 %s33, 1
          %s2147 = scalar_lea.sflag [#allocation15], %s2146
          %s2148 = sand.u32 %s198, 1
          %s2149 = smul.addr %s2148, 56
          %s2150 = scalar_lea.vmem [#allocation14], %s2149
          %2151 = dma.done %s2147, 896
        $region92: #{tpu_custom_call.1} parent=83 // pred_fallthru
          _
        // Predicated region
        $region93: #{tpu_custom_call.1} parent=83 // pred_check
          %p2152 = pneg %p239
        $region94: #{tpu_custom_call.1} parent=83 // pred_check_branch
          %2154 = sbr.rel (%p2152) target = $region96
        $region95: #{tpu_custom_call.1} parent=83 // pred_region
          %s2155 = sand.u32 %s33, 1
          %s2156 = scalar_lea.sflag [#allocation15], %s2155
          %s2157 = sand.u32 %s224, 1
          %s2158 = scalar_lea.vmem [#allocation16], %s2157
          %2159 = dma.done %s2156, 16
        $region96: #{tpu_custom_call.1} parent=83 // pred_fallthru
          _
      $region84: #{tpu_custom_call.1} parent=5 // pred_fallthru
        _
    $region6: #{tpu_custom_call.1} parent=1 // loop_footer
      %s31 = sadd.s32 1, %s27
    $region7: #{tpu_custom_call.1} parent=1 // loop_footer_branch
      %26 = sbr.rel target = $region3
    $region8: #{tpu_custom_call.1} parent=1 // loop_exit
      _
    %2160 = vsyncpa [#allocation3], 1
    %s2161 = scalar_lea.sflag [#allocation3], 1
    %2162 = vsyncpa %s2161, 1
    %2163 = vsyncpa [#allocation6], 1
    %2164 = vsyncpa [#allocation9], 1
    %2165 = vsyncpa [#allocation12], 1
    %2166 = vsyncpa [#allocation4], 1
    %s2167 = scalar_lea.sflag [#allocation4], 1
    %2168 = vsyncpa %s2167, 1
    %2169 = vsyncpa [#allocation15], 1
    %s2170 = scalar_lea.sflag [#allocation15], 1
    %2171 = vsyncpa %s2170, 1

</llo_original>
